<compile_context>
chip_gen: v7x
topology: tpu7x:2x2x1
jax: 0.10.0
libtpu: 0.0.40
codegen_flags: <defaults>
</compile_context>

<pallas_src>
import functools

import jax
import jax.numpy as jnp
from jax.experimental import pallas as pl
from jax.experimental.pallas import tpu as pltpu

# Logical (PyTorch) dims
IN_F = 100
HID = 300
OUT_F = 784

# Lane-aligned (padded) dims
IN_P = 128
HID_P = 384
OUT_P = 896


def _round_up(n, m):
    return (n + m - 1) // m * m


def gan_g_kernel(x_ref, w1_ref, b1_ref, w2_ref, b2_ref, w3_ref, b3_ref, o_ref):
    # fc1 + ReLU: bf16 MXU matmul, f32 accumulation; elementwise math in f32.
    h = jnp.dot(x_ref[...], w1_ref[...], preferred_element_type=jnp.float32)
    h = jnp.maximum(h + b1_ref[...], 0.0)
    # fc2 + ReLU
    h = jnp.dot(h.astype(jnp.bfloat16), w2_ref[...], preferred_element_type=jnp.float32)
    h = jnp.maximum(h + b2_ref[...], 0.0)
    # fc3 + Sigmoid
    z = jnp.dot(h.astype(jnp.bfloat16), w3_ref[...], preferred_element_type=jnp.float32)
    o_ref[...] = jax.nn.sigmoid(z + b3_ref[...])


@functools.partial(jax.jit, static_argnames=("block_m",))
def gan_g_forward(x, w1, b1, w2, b2, w3, b3, *, block_m=128):
    B = x.shape[0]
    tm = min(block_m, _round_up(B, 8))       # batch tile: >= 8 sublanes, <= block_m
    b_pad = _round_up(B, tm)

    # Zero-pad + cast matmul operands to bf16; biases stay f32.
    xp = jnp.zeros((b_pad, IN_P), jnp.bfloat16).at[:B, :IN_F].set(x.astype(jnp.bfloat16))
    w1p = jnp.zeros((IN_P, HID_P), jnp.bfloat16).at[:IN_F, :HID].set(w1.astype(jnp.bfloat16))
    w2p = jnp.zeros((HID_P, HID_P), jnp.bfloat16).at[:HID, :HID].set(w2.astype(jnp.bfloat16))
    w3p = jnp.zeros((HID_P, OUT_P), jnp.bfloat16).at[:HID, :OUT_F].set(w3.astype(jnp.bfloat16))
    b1p = jnp.zeros((1, HID_P), jnp.float32).at[:, :HID].set(b1.reshape(1, HID))
    b2p = jnp.zeros((1, HID_P), jnp.float32).at[:, :HID].set(b2.reshape(1, HID))
    b3p = jnp.zeros((1, OUT_P), jnp.float32).at[:, :OUT_F].set(b3.reshape(1, OUT_F))

    grid = (b_pad // tm,)
    const = lambda i: (0, 0)  # weights / biases: same block every step -> VMEM-resident

    flops = 2 * B * (IN_F * HID + HID * HID + HID * OUT_F)
    bytes_accessed = (
        xp.size * 2 + w1p.size * 2 + w2p.size * 2 + w3p.size * 2
        + (b1p.size + b2p.size + b3p.size) * 4 + b_pad * OUT_P * 4
    )

    out_padded = pl.pallas_call(
        gan_g_kernel,
        out_shape=jax.ShapeDtypeStruct((b_pad, OUT_P), jnp.float32),
        grid=grid,
        in_specs=[
            pl.BlockSpec((tm, IN_P), lambda i: (i, 0)),   # x: tiled over batch
            pl.BlockSpec((IN_P, HID_P), const),           # w1
            pl.BlockSpec((1, HID_P), const),              # b1
            pl.BlockSpec((HID_P, HID_P), const),          # w2
            pl.BlockSpec((1, HID_P), const),              # b2
            pl.BlockSpec((HID_P, OUT_P), const),          # w3
            pl.BlockSpec((1, OUT_P), const),              # b3
        ],
        out_specs=pl.BlockSpec((tm, OUT_P), lambda i: (i, 0)),
        compiler_params=pltpu.CompilerParams(
            dimension_semantics=("parallel",),            # v7x: shard batch tiles across TCs
            vmem_limit_bytes=32 * 1024 * 1024,
        ),
        cost_estimate=pl.CostEstimate(
            flops=flops,
            transcendentals=B * OUT_F,
            bytes_accessed=bytes_accessed,
        ),
    )(xp, w1p, b1p, w2p, b2p, w3p, b3p)

    return out_padded[:B, :OUT_F]


def init_params(key):
    """Deterministic init mimicking nn.Linear's U(-1/sqrt(fan_in), 1/sqrt(fan_in)).

    Weights are stored as (in_features, out_features); PyTorch checkpoints
    (weight shape (out, in)) must be transposed when loading.
    """
    def linear(key, fan_in, fan_out):
        kw, kb = jax.random.split(key)
        bound = 1.0 / float(fan_in) ** 0.5
        w = jax.random.uniform(kw, (fan_in, fan_out), jnp.float32, -bound, bound)
        b = jax.random.uniform(kb, (fan_out,), jnp.float32, -bound, bound)
        return w, b

    k1, k2, k3 = jax.random.split(key, 3)
    w1, b1 = linear(k1, IN_F, HID)
    w2, b2 = linear(k2, HID, HID)
    w3, b3 = linear(k3, HID, OUT_F)
    return w1, b1, w2, b2, w3, b3


if __name__ == "__main__":
    key = jax.random.PRNGKey(0)
    k_x, k_p = jax.random.split(key)

    # B=256 exercises the batch grid (two 128-row tiles) and fills the MXU rows.
    B = 256
    x = jax.random.normal(k_x, (B, IN_F), dtype=jnp.float32)
    params = init_params(k_p)

    out = gan_g_forward(x, *params)
    out = jax.block_until_ready(out)
    assert out.shape == (B, OUT_F)

    # Reference in plain JAX with the same bf16-matmul / f32-accumulate recipe.
    w1, b1, w2, b2, w3, b3 = params
    xb = x.astype(jnp.bfloat16)
    h = jnp.maximum(
        jnp.dot(xb, w1.astype(jnp.bfloat16), preferred_element_type=jnp.float32) + b1, 0.0)
    h = jnp.maximum(
        jnp.dot(h.astype(jnp.bfloat16), w2.astype(jnp.bfloat16),
                preferred_element_type=jnp.float32) + b2, 0.0)
    ref = jax.nn.sigmoid(
        jnp.dot(h.astype(jnp.bfloat16), w3.astype(jnp.bfloat16),
                preferred_element_type=jnp.float32) + b3)

    assert jnp.allclose(out, ref, atol=2e-3, rtol=0), float(jnp.max(jnp.abs(out - ref)))

    print("KERNEL_OK")
</pallas_src>

<mosaic_0001>
module attributes {stable_mosaic.version = 11 : i64} {
  func.func @gan_g_kernel(%arg0: i32, %arg1: memref<128x128xbf16, #tpu.memory_space<vmem>>, %arg2: memref<128x384xbf16, #tpu.memory_space<vmem>>, %arg3: memref<1x384xf32, #tpu.memory_space<vmem>>, %arg4: memref<384x384xbf16, #tpu.memory_space<vmem>>, %arg5: memref<1x384xf32, #tpu.memory_space<vmem>>, %arg6: memref<384x896xbf16, #tpu.memory_space<vmem>>, %arg7: memref<1x896xf32, #tpu.memory_space<vmem>>, %arg8: memref<128x896xf32, #tpu.memory_space<vmem>>) attributes {dimension_semantics = [#tpu.dimension_semantics<parallel>], iteration_bounds = array<i64: 2>, scalar_prefetch = 0 : i64, scratch_operands = 0 : i64, tpu.core_type = #tpu.core_type<tc>, window_params = [{transform_indices = @transform_0, window_bounds = array<i64: 128, 128>}, {pipeline_mode = #tpu.pipeline_mode<synchronous>, transform_indices = @transform_1, window_bounds = array<i64: 128, 384>}, {pipeline_mode = #tpu.pipeline_mode<synchronous>, transform_indices = @transform_2, window_bounds = array<i64: 1, 384>}, {pipeline_mode = #tpu.pipeline_mode<synchronous>, transform_indices = @transform_3, window_bounds = array<i64: 384, 384>}, {pipeline_mode = #tpu.pipeline_mode<synchronous>, transform_indices = @transform_4, window_bounds = array<i64: 1, 384>}, {pipeline_mode = #tpu.pipeline_mode<synchronous>, transform_indices = @transform_5, window_bounds = array<i64: 384, 896>}, {pipeline_mode = #tpu.pipeline_mode<synchronous>, transform_indices = @transform_6, window_bounds = array<i64: 1, 896>}, {transform_indices = @transform_7, window_bounds = array<i64: 128, 896>}]} {
    %c0 = arith.constant 0 : index
    %c0_0 = arith.constant 0 : index
    %0 = vector.load %arg1[%c0, %c0_0] : memref<128x128xbf16, #tpu.memory_space<vmem>>, vector<128x128xbf16>
    %c0_1 = arith.constant 0 : index
    %c0_2 = arith.constant 0 : index
    %1 = vector.load %arg2[%c0_1, %c0_2] : memref<128x384xbf16, #tpu.memory_space<vmem>>, vector<128x384xbf16>
    %cst = arith.constant dense<0.000000e+00> : vector<128x384xf32>
    %2 = tpu.matmul %0, %1, %cst {dimension_numbers = #tpu.dot_dimension_numbers<[1], [0], [0], [1], [0, 0, 1, 1], [], []>} : vector<128x128xbf16>, vector<128x384xbf16>, vector<128x384xf32> -> vector<128x384xf32>
    %c0_3 = arith.constant 0 : index
    %c0_4 = arith.constant 0 : index
    %3 = vector.load %arg3[%c0_3, %c0_4] : memref<1x384xf32, #tpu.memory_space<vmem>>, vector<1x384xf32>
    %4 = vector.broadcast %3 : vector<1x384xf32> to vector<128x384xf32>
    %5 = arith.addf %2, %4 : vector<128x384xf32>
    %cst_5 = arith.constant 0.000000e+00 : f32
    %6 = vector.broadcast %cst_5 : f32 to vector<128x384xf32>
    %7 = arith.maximumf %5, %6 : vector<128x384xf32>
    %8 = arith.truncf %7 : vector<128x384xf32> to vector<128x384xbf16>
    %c0_6 = arith.constant 0 : index
    %c0_7 = arith.constant 0 : index
    %9 = vector.load %arg4[%c0_6, %c0_7] : memref<384x384xbf16, #tpu.memory_space<vmem>>, vector<384x384xbf16>
    %cst_8 = arith.constant dense<0.000000e+00> : vector<128x384xf32>
    %10 = tpu.matmul %8, %9, %cst_8 {dimension_numbers = #tpu.dot_dimension_numbers<[1], [0], [0], [1], [0, 0, 1, 1], [], []>} : vector<128x384xbf16>, vector<384x384xbf16>, vector<128x384xf32> -> vector<128x384xf32>
    %c0_9 = arith.constant 0 : index
    %c0_10 = arith.constant 0 : index
    %11 = vector.load %arg5[%c0_9, %c0_10] : memref<1x384xf32, #tpu.memory_space<vmem>>, vector<1x384xf32>
    %12 = vector.broadcast %11 : vector<1x384xf32> to vector<128x384xf32>
    %13 = arith.addf %10, %12 : vector<128x384xf32>
    %cst_11 = arith.constant 0.000000e+00 : f32
    %14 = vector.broadcast %cst_11 : f32 to vector<128x384xf32>
    %15 = arith.maximumf %13, %14 : vector<128x384xf32>
    %16 = arith.truncf %15 : vector<128x384xf32> to vector<128x384xbf16>
    %c0_12 = arith.constant 0 : index
    %c0_13 = arith.constant 0 : index
    %17 = vector.load %arg6[%c0_12, %c0_13] : memref<384x896xbf16, #tpu.memory_space<vmem>>, vector<384x896xbf16>
    %cst_14 = arith.constant dense<0.000000e+00> : vector<128x896xf32>
    %18 = tpu.matmul %16, %17, %cst_14 {dimension_numbers = #tpu.dot_dimension_numbers<[1], [0], [0], [1], [0, 0, 1, 1], [], []>} : vector<128x384xbf16>, vector<384x896xbf16>, vector<128x896xf32> -> vector<128x896xf32>
    %c0_15 = arith.constant 0 : index
    %c0_16 = arith.constant 0 : index
    %19 = vector.load %arg7[%c0_15, %c0_16] : memref<1x896xf32, #tpu.memory_space<vmem>>, vector<1x896xf32>
    %20 = vector.broadcast %19 : vector<1x896xf32> to vector<128x896xf32>
    %21 = arith.addf %18, %20 : vector<128x896xf32>
    %22 = arith.negf %21 : vector<128x896xf32>
    %23 = math.exp %22 : vector<128x896xf32>
    %cst_17 = arith.constant 1.000000e+00 : f32
    %24 = vector.broadcast %cst_17 : f32 to vector<128x896xf32>
    %25 = arith.addf %24, %23 : vector<128x896xf32>
    %26 = arith.divf %24, %25 : vector<128x896xf32>
    %c0_18 = arith.constant 0 : index
    %c0_19 = arith.constant 0 : index
    %27 = vector.load %arg8[%c0_18, %c0_19] : memref<128x896xf32, #tpu.memory_space<vmem>>, vector<128x896xf32>
    tpu.vector_store %arg8[%c0_18, %c0_19], %26 {strides = array<i32>} : memref<128x896xf32, #tpu.memory_space<vmem>>, vector<128x896xf32>,
    return
  }
  func.func @transform_0(%arg0: i32) -> (i32, i32) {
    %c0_i32 = arith.constant 0 : i32
    %c0_i32_0 = arith.constant 0 : i32
    return %arg0, %c0_i32 : i32, i32
  }
  func.func @transform_1(%arg0: i32) -> (i32, i32) {
    %c0_i32 = arith.constant 0 : i32
    %c0_i32_0 = arith.constant 0 : i32
    %c0_i32_1 = arith.constant 0 : i32
    return %c0_i32, %c0_i32_0 : i32, i32
  }
  func.func @transform_2(%arg0: i32) -> (i32, i32) {
    %c0_i32 = arith.constant 0 : i32
    %c0_i32_0 = arith.constant 0 : i32
    %c0_i32_1 = arith.constant 0 : i32
    return %c0_i32, %c0_i32_0 : i32, i32
  }
  func.func @transform_3(%arg0: i32) -> (i32, i32) {
    %c0_i32 = arith.constant 0 : i32
    %c0_i32_0 = arith.constant 0 : i32
    %c0_i32_1 = arith.constant 0 : i32
    return %c0_i32, %c0_i32_0 : i32, i32
  }
  func.func @transform_4(%arg0: i32) -> (i32, i32) {
    %c0_i32 = arith.constant 0 : i32
    %c0_i32_0 = arith.constant 0 : i32
    %c0_i32_1 = arith.constant 0 : i32
    return %c0_i32, %c0_i32_0 : i32, i32
  }
  func.func @transform_5(%arg0: i32) -> (i32, i32) {
    %c0_i32 = arith.constant 0 : i32
    %c0_i32_0 = arith.constant 0 : i32
    %c0_i32_1 = arith.constant 0 : i32
    return %c0_i32, %c0_i32_0 : i32, i32
  }
  func.func @transform_6(%arg0: i32) -> (i32, i32) {
    %c0_i32 = arith.constant 0 : i32
    %c0_i32_0 = arith.constant 0 : i32
    %c0_i32_1 = arith.constant 0 : i32
    return %c0_i32, %c0_i32_0 : i32, i32
  }
  func.func @transform_7(%arg0: i32) -> (i32, i32) {
    %c0_i32 = arith.constant 0 : i32
    %c0_i32_0 = arith.constant 0 : i32
    return %arg0, %c0_i32 : i32, i32
  }
}

</mosaic_0001>

<llo_original>
// kernel: gan_g_forward.1
$region0: #{gan_g_forward.1}
  #allocation0 [shape = 'u32[]', space=smem, size = 0x4, offset = 0x4, fixed_abs, tag = 'smem constant byte address 0x4 - core index']
  #allocation1 [shape = 'u32[144,128]{1,0:T(1,128)}', space=vmem, size = 0x12000, scoped, tag = 'internal scratch']
  %s0 = inlined_call_operand.vmem [shape: bf16[256,128], index: 0, kind: input, shape index: {}]
  %s1 = inlined_call_operand.vmem [shape: bf16[128,384], index: 1, kind: input, shape index: {}]
  %s2 = inlined_call_operand.vmem [shape: f32[1,384], index: 2, kind: input, shape index: {}]
  %s3 = inlined_call_operand.vmem [shape: bf16[384,384], index: 3, kind: input, shape index: {}]
  %s4 = inlined_call_operand.vmem [shape: f32[1,384], index: 4, kind: input, shape index: {}]
  %s5 = inlined_call_operand.vmem [shape: bf16[384,896], index: 5, kind: input, shape index: {}]
  %s6 = inlined_call_operand.vmem [shape: f32[1,896], index: 6, kind: input, shape index: {}]
  %s7 = inlined_call_operand.vmem [shape: f32[256,896], index: 7, kind: output, shape index: {}]
  %s8 = sld [smem:[#allocation0]]
  $region61: #{gan_g_forward.1} parent=0
    _
  %s10 = ssub.s32 1, %s8
  %s11 = scalar_select 0, %s10, %s8
  loop: start=0, step=1, limit=4
  $region2: #{gan_g_forward.1} parent=0 // loop_pre_header
    _
  $region3: #{gan_g_forward.1} parent=0 // loop_header
    %s13 = sphi 0, %s17
    %p14 = scmp.ge.s32.totalorder %s13, 4
    %s23 = sphi 0, %s25
    %s26 = sphi 0, %s23
    %s27 = sphi 0, %s26
    %s43 = sphi 0, %s27
    %s47 = sphi 0, %s47
    %s49 = sphi 0, %s47
    %s50 = sphi 0, %s49
    %s64 = sphi 0, %s50
    %s68 = sphi 0, %s68
    %s70 = sphi 0, %s68
    %s71 = sphi 0, %s70
    %s85 = sphi 0, %s71
    %s89 = sphi 0, %s89
    %s91 = sphi 0, %s89
    %s92 = sphi 0, %s91
    %s106 = sphi 0, %s92
    %s110 = sphi 0, %s110
    %s112 = sphi 0, %s110
    %s113 = sphi 0, %s112
    %s127 = sphi 0, %s113
    %s131 = sphi 0, %s131
    %s133 = sphi 0, %s131
    %s134 = sphi 0, %s133
    %s148 = sphi 0, %s134
    %s152 = sphi 0, %s152
    %s154 = sphi 0, %s152
    %s155 = sphi 0, %s154
    %s169 = sphi 0, %s155
    %s175 = sphi 0, %s177
    %s178 = sphi 0, %s175
    %s179 = sphi 0, %s178
    %s195 = sphi 0, %s179
  $region4: #{gan_g_forward.1} parent=0 // loop_header_branch
    %16 = sbr.rel (%p14) target = $region8
  $region5: #{gan_g_forward.1} parent=0 // loop_body
    %s18 = ssub.s32 %s13, 1
    %s19 = ssub.s32 %s13, 2
    %s20 = sadd.s32 %s13, 1
    %s21 = ssub.s32 %s13, %s20
    %p22 = scmp.eq.s32.totalorder %s21, 0
    %s24 = sadd.s32 %s23, 1
    %s25 = scalar_select %p22, %s23, %s24
    %p28 = pneg %p22
    %p29 = scmp.eq.s32.totalorder %s13, 1
    %p30 = por %p28, %p29
    %p31 = scmp.ne.s32.totalorder %s23, %s26
    %p32 = scmp.eq.s32.totalorder %s13, 0
    %p33 = por %p31, %p32
    %p34 = scmp.ne.s32.totalorder %s23, %s26
    %p35 = scmp.eq.s32.totalorder %s18, 1
    %p36 = por %p34, %p35
    %p37 = scmp.ne.s32.totalorder %s26, %s27
    %p38 = scmp.eq.s32.totalorder %s18, 0
    %p39 = por %p37, %p38
    %p40 = scmp.ne.s32.totalorder %s26, %s27
    %p41 = scmp.eq.s32.totalorder %s19, 1
    %p42 = por %p40, %p41
    %p44 = scmp.ne.s32.totalorder %s27, %s43
    %p45 = scmp.eq.s32.totalorder %s19, 0
    %p46 = por %p44, %p45
    %s48 = sadd.s32 %s47, 1
    %p51 = scmp.eq.s32.totalorder %s13, 1
    %p52 = scmp.ne.s32.totalorder %s47, %s49
    %p53 = scmp.eq.s32.totalorder %s13, 0
    %p54 = por %p52, %p53
    %p55 = scmp.ne.s32.totalorder %s47, %s49
    %p56 = scmp.eq.s32.totalorder %s18, 1
    %p57 = por %p55, %p56
    %p58 = scmp.ne.s32.totalorder %s49, %s50
    %p59 = scmp.eq.s32.totalorder %s18, 0
    %p60 = por %p58, %p59
    %p61 = scmp.ne.s32.totalorder %s49, %s50
    %p62 = scmp.eq.s32.totalorder %s19, 1
    %p63 = por %p61, %p62
    %p65 = scmp.ne.s32.totalorder %s50, %s64
    %p66 = scmp.eq.s32.totalorder %s19, 0
    %p67 = por %p65, %p66
    %s69 = sadd.s32 %s68, 1
    %p72 = scmp.eq.s32.totalorder %s13, 1
    %p73 = scmp.ne.s32.totalorder %s68, %s70
    %p74 = scmp.eq.s32.totalorder %s13, 0
    %p75 = por %p73, %p74
    %p76 = scmp.ne.s32.totalorder %s68, %s70
    %p77 = scmp.eq.s32.totalorder %s18, 1
    %p78 = por %p76, %p77
    %p79 = scmp.ne.s32.totalorder %s70, %s71
    %p80 = scmp.eq.s32.totalorder %s18, 0
    %p81 = por %p79, %p80
    %p82 = scmp.ne.s32.totalorder %s70, %s71
    %p83 = scmp.eq.s32.totalorder %s19, 1
    %p84 = por %p82, %p83
    %p86 = scmp.ne.s32.totalorder %s71, %s85
    %p87 = scmp.eq.s32.totalorder %s19, 0
    %p88 = por %p86, %p87
    %s90 = sadd.s32 %s89, 1
    %p93 = scmp.eq.s32.totalorder %s13, 1
    %p94 = scmp.ne.s32.totalorder %s89, %s91
    %p95 = scmp.eq.s32.totalorder %s13, 0
    %p96 = por %p94, %p95
    %p97 = scmp.ne.s32.totalorder %s89, %s91
    %p98 = scmp.eq.s32.totalorder %s18, 1
    %p99 = por %p97, %p98
    %p100 = scmp.ne.s32.totalorder %s91, %s92
    %p101 = scmp.eq.s32.totalorder %s18, 0
    %p102 = por %p100, %p101
    %p103 = scmp.ne.s32.totalorder %s91, %s92
    %p104 = scmp.eq.s32.totalorder %s19, 1
    %p105 = por %p103, %p104
    %p107 = scmp.ne.s32.totalorder %s92, %s106
    %p108 = scmp.eq.s32.totalorder %s19, 0
    %p109 = por %p107, %p108
    %s111 = sadd.s32 %s110, 1
    %p114 = scmp.eq.s32.totalorder %s13, 1
    %p115 = scmp.ne.s32.totalorder %s110, %s112
    %p116 = scmp.eq.s32.totalorder %s13, 0
    %p117 = por %p115, %p116
    %p118 = scmp.ne.s32.totalorder %s110, %s112
    %p119 = scmp.eq.s32.totalorder %s18, 1
    %p120 = por %p118, %p119
    %p121 = scmp.ne.s32.totalorder %s112, %s113
    %p122 = scmp.eq.s32.totalorder %s18, 0
    %p123 = por %p121, %p122
    %p124 = scmp.ne.s32.totalorder %s112, %s113
    %p125 = scmp.eq.s32.totalorder %s19, 1
    %p126 = por %p124, %p125
    %p128 = scmp.ne.s32.totalorder %s113, %s127
    %p129 = scmp.eq.s32.totalorder %s19, 0
    %p130 = por %p128, %p129
    %s132 = sadd.s32 %s131, 1
    %p135 = scmp.eq.s32.totalorder %s13, 1
    %p136 = scmp.ne.s32.totalorder %s131, %s133
    %p137 = scmp.eq.s32.totalorder %s13, 0
    %p138 = por %p136, %p137
    %p139 = scmp.ne.s32.totalorder %s131, %s133
    %p140 = scmp.eq.s32.totalorder %s18, 1
    %p141 = por %p139, %p140
    %p142 = scmp.ne.s32.totalorder %s133, %s134
    %p143 = scmp.eq.s32.totalorder %s18, 0
    %p144 = por %p142, %p143
    %p145 = scmp.ne.s32.totalorder %s133, %s134
    %p146 = scmp.eq.s32.totalorder %s19, 1
    %p147 = por %p145, %p146
    %p149 = scmp.ne.s32.totalorder %s134, %s148
    %p150 = scmp.eq.s32.totalorder %s19, 0
    %p151 = por %p149, %p150
    %s153 = sadd.s32 %s152, 1
    %p156 = scmp.eq.s32.totalorder %s13, 1
    %p157 = scmp.ne.s32.totalorder %s152, %s154
    %p158 = scmp.eq.s32.totalorder %s13, 0
    %p159 = por %p157, %p158
    %p160 = scmp.ne.s32.totalorder %s152, %s154
    %p161 = scmp.eq.s32.totalorder %s18, 1
    %p162 = por %p160, %p161
    %p163 = scmp.ne.s32.totalorder %s154, %s155
    %p164 = scmp.eq.s32.totalorder %s18, 0
    %p165 = por %p163, %p164
    %p166 = scmp.ne.s32.totalorder %s154, %s155
    %p167 = scmp.eq.s32.totalorder %s19, 1
    %p168 = por %p166, %p167
    %p170 = scmp.ne.s32.totalorder %s155, %s169
    %p171 = scmp.eq.s32.totalorder %s19, 0
    %p172 = por %p170, %p171
    %s173 = ssub.s32 %s13, %s20
    %p174 = scmp.eq.s32.totalorder %s173, 0
    %s176 = sadd.s32 %s175, 1
    %s177 = scalar_select %p174, %s175, %s176
    %p180 = pneg %p174
    %p181 = scmp.eq.s32.totalorder %s13, 1
    %p182 = por %p180, %p181
    %p183 = scmp.ne.s32.totalorder %s175, %s178
    %p184 = scmp.eq.s32.totalorder %s13, 0
    %p185 = por %p183, %p184
    %p186 = scmp.ne.s32.totalorder %s175, %s178
    %p187 = scmp.eq.s32.totalorder %s18, 1
    %p188 = por %p186, %p187
    %p189 = scmp.ne.s32.totalorder %s178, %s179
    %p190 = scmp.eq.s32.totalorder %s18, 0
    %p191 = por %p189, %p190
    %p192 = scmp.ne.s32.totalorder %s178, %s179
    %p193 = scmp.eq.s32.totalorder %s19, 1
    %p194 = por %p192, %p193
    %p196 = scmp.ne.s32.totalorder %s179, %s195
    %p197 = scmp.eq.s32.totalorder %s19, 0
    %p198 = por %p196, %p197
    %p199 = scmp.le.s32.totalorder 1, %s13
    %p200 = scmp.lt.s32.totalorder %s13, 3
    %p201 = pnand %p199, %p200
    %p202 = pneg %p201
    // Predicated region
    $region9: #{gan_g_forward.1} parent=5 // pred_check
      _
    $region10: #{gan_g_forward.1} parent=5 // pred_check_branch
      %204 = sbr.rel (%p201) target = $region12
    $region11: #{gan_g_forward.1} parent=5 // pred_region
      %s205 = ssub.s32 %s13, 1
      // Predicated region
      $region13: #{gan_g_forward.1} parent=11 // pred_check
        %p206 = pneg %p60
      $region14: #{gan_g_forward.1} parent=11 // pred_check_branch
        %208 = sbr.rel (%p206) target = $region16
      $region15: #{gan_g_forward.1} parent=11 // pred_region
        _
      $region16: #{gan_g_forward.1} parent=11 // pred_fallthru
        _
      // Predicated region
      $region17: #{gan_g_forward.1} parent=11 // pred_check
        %p209 = pneg %p81
      $region18: #{gan_g_forward.1} parent=11 // pred_check_branch
        %211 = sbr.rel (%p209) target = $region20
      $region19: #{gan_g_forward.1} parent=11 // pred_region
        _
      $region20: #{gan_g_forward.1} parent=11 // pred_fallthru
        _
      // Predicated region
      $region21: #{gan_g_forward.1} parent=11 // pred_check
        %p212 = pneg %p102
      $region22: #{gan_g_forward.1} parent=11 // pred_check_branch
        %214 = sbr.rel (%p212) target = $region24
      $region23: #{gan_g_forward.1} parent=11 // pred_region
        _
      $region24: #{gan_g_forward.1} parent=11 // pred_fallthru
        _
      // Predicated region
      $region25: #{gan_g_forward.1} parent=11 // pred_check
        %p215 = pneg %p123
      $region26: #{gan_g_forward.1} parent=11 // pred_check_branch
        %217 = sbr.rel (%p215) target = $region28
      $region27: #{gan_g_forward.1} parent=11 // pred_region
        _
      $region28: #{gan_g_forward.1} parent=11 // pred_fallthru
        _
      // Predicated region
      $region29: #{gan_g_forward.1} parent=11 // pred_check
        %p218 = pneg %p144
      $region30: #{gan_g_forward.1} parent=11 // pred_check_branch
        %220 = sbr.rel (%p218) target = $region32
      $region31: #{gan_g_forward.1} parent=11 // pred_region
        _
      $region32: #{gan_g_forward.1} parent=11 // pred_fallthru
        _
      // Predicated region
      $region33: #{gan_g_forward.1} parent=11 // pred_check
        %p221 = pneg %p165
      $region34: #{gan_g_forward.1} parent=11 // pred_check_branch
        %223 = sbr.rel (%p221) target = $region36
      $region35: #{gan_g_forward.1} parent=11 // pred_region
        _
      $region36: #{gan_g_forward.1} parent=11 // pred_fallthru
        _
    $region12: #{gan_g_forward.1} parent=5 // pred_fallthru
      _
    %p224 = scmp.lt.s32.totalorder %s13, 2
    // Predicated region
    $region37: #{gan_g_forward.1} parent=5 // pred_check
      %p225 = pneg %p224
    $region38: #{gan_g_forward.1} parent=5 // pred_check_branch
      %227 = sbr.rel (%p225) target = $region40
    $region39: #{gan_g_forward.1} parent=5 // pred_region
      // Predicated region
      $region41: #{gan_g_forward.1} parent=39 // pred_check
        %p228 = pneg %p33
      $region42: #{gan_g_forward.1} parent=39 // pred_check_branch
        %230 = sbr.rel (%p228) target = $region44
      $region43: #{gan_g_forward.1} parent=39 // pred_region
        %s231 = smul.u32 16, %s13
        %p232 = scmp.lt.s32.totalorder %s231, 31
        %s233 = scalar_select %p232, %s231, 31
        %s234 = smul.addr %s233, 4
        %s235 = scalar_lea.vmem %s0, %s234
        %s236 = smul.u32 16, %s13
      $region44: #{gan_g_forward.1} parent=39 // pred_fallthru
        _
    $region40: #{gan_g_forward.1} parent=5 // pred_fallthru
      _
    %p237 = scmp.le.s32.totalorder 1, %s13
    %p238 = scmp.lt.s32.totalorder %s13, 3
    %p239 = pnand %p237, %p238
    %p240 = pneg %p239
    // Predicated region
    $region45: #{gan_g_forward.1} parent=5 // pred_check
      _
    $region46: #{gan_g_forward.1} parent=5 // pred_check_branch
      %242 = sbr.rel (%p239) target = $region48
    $region47: #{gan_g_forward.1} parent=5 // pred_region
      %s243 = ssub.s32 %s13, 1
      %s244 = smul.u32 16, %s18
      %p245 = scmp.lt.s32.totalorder %s244, 31
      %s246 = scalar_select %p245, %s244, 31
      %s247 = smul.addr %s246, 4
      %s248 = scalar_lea.vmem %s0, %s247
      %p249 = pneg %p39
      %p250 = pneg %p36
      %p251 = pneg %p60
      %p252 = pneg %p57
      %p253 = pneg %p81
      %p254 = pneg %p78
      %p255 = pneg %p102
      %p256 = pneg %p99
      %p257 = pneg %p123
      %p258 = pneg %p120
      %p259 = pneg %p144
      %p260 = pneg %p141
      %p261 = pneg %p165
      %p262 = pneg %p162
      %p263 = pneg %p191
      %p264 = pneg %p188
      %s265 = smul.u32 16, %s18
      %p266 = scmp.lt.s32.totalorder %s265, 31
      %s267 = scalar_select %p266, %s265, 31
      %s268 = smul.addr %s267, 7
      %s269 = smul.addr %s268, 8
      %s270 = scalar_lea.vmem %s7, %s269
      %s271 = smul.u32 16, %s18
      %p272 = scmp.lt.s32.totalorder %s271, 31
      %s273 = scalar_select %p272, %s271, 31
      %s274 = smul.addr %s273, 4
      %s275 = scalar_lea.vmem %s0, %s274
      %s276 = smul.u32 16, %s18
      %s277 = smul.u32 16, %s18
      %p278 = scmp.lt.s32.totalorder %s277, 31
      %s279 = scalar_select %p278, %s277, 31
      %s280 = smul.addr %s279, 7
      %s281 = smul.addr %s280, 8
      %s282 = scalar_lea.vmem %s7, %s281
      %s283 = smul.u32 16, %s18
      %v285 = vld [vmem:[%s275] sm:$0xf]
      %v286 = vld [vmem:[%s275 + $0x4] sm:$0xf]
      %v287 = vld [vmem:[%s275 + $0x8] sm:$0xf]
      %v288 = vld [vmem:[%s275 + $0xc] sm:$0xf]
      %v289 = vld [vmem:[%s275 + $0x10] sm:$0xf]
      %v290 = vld [vmem:[%s275 + $0x14] sm:$0xf]
      %v291 = vld [vmem:[%s275 + $0x18] sm:$0xf]
      %v292 = vld [vmem:[%s275 + $0x1c] sm:$0xf]
      %v293 = vld [vmem:[%s275 + $0x20] sm:$0xf]
      %v294 = vld [vmem:[%s275 + $0x24] sm:$0xf]
      %v295 = vld [vmem:[%s275 + $0x28] sm:$0xf]
      %v296 = vld [vmem:[%s275 + $0x2c] sm:$0xf]
      %v297 = vld [vmem:[%s275 + $0x30] sm:$0xf]
      %v298 = vld [vmem:[%s275 + $0x34] sm:$0xf]
      %v299 = vld [vmem:[%s275 + $0x38] sm:$0xf]
      %v300 = vld [vmem:[%s275 + $0x3c] sm:$0xf]
      %v301 = vld [vmem:[%s1] sm:$0xff]
      %v302 = vld [vmem:[%s1 + $0x8] sm:$0xf]
      %v303 = vld [vmem:[%s1 + $0xc] sm:$0xff]
      %v304 = vld [vmem:[%s1 + $0x14] sm:$0xf]
      %v305 = vld [vmem:[%s1 + $0x18] sm:$0xff]
      %v306 = vld [vmem:[%s1 + $0x20] sm:$0xf]
      %v307 = vld [vmem:[%s1 + $0x24] sm:$0xff]
      %v308 = vld [vmem:[%s1 + $0x2c] sm:$0xf]
      %v309 = vld [vmem:[%s1 + $0x30] sm:$0xff]
      %v310 = vld [vmem:[%s1 + $0x38] sm:$0xf]
      %v311 = vld [vmem:[%s1 + $0x3c] sm:$0xff]
      %v312 = vld [vmem:[%s1 + $0x44] sm:$0xf]
      %v313 = vld [vmem:[%s1 + $0x48] sm:$0xff]
      %v314 = vld [vmem:[%s1 + $0x50] sm:$0xf]
      %v315 = vld [vmem:[%s1 + $0x54] sm:$0xff]
      %v316 = vld [vmem:[%s1 + $0x5c] sm:$0xf]
      %v317 = vld [vmem:[%s1 + $0x60] sm:$0xff]
      %v318 = vld [vmem:[%s1 + $0x68] sm:$0xf]
      %v319 = vld [vmem:[%s1 + $0x6c] sm:$0xff]
      %v320 = vld [vmem:[%s1 + $0x74] sm:$0xf]
      %v321 = vld [vmem:[%s1 + $0x78] sm:$0xff]
      %v322 = vld [vmem:[%s1 + $0x80] sm:$0xf]
      %v323 = vld [vmem:[%s1 + $0x84] sm:$0xff]
      %v324 = vld [vmem:[%s1 + $0x8c] sm:$0xf]
      %v325 = vld [vmem:[%s1 + $0x90] sm:$0xff]
      %v326 = vld [vmem:[%s1 + $0x98] sm:$0xf]
      %v327 = vld [vmem:[%s1 + $0x9c] sm:$0xff]
      %v328 = vld [vmem:[%s1 + $0xa4] sm:$0xf]
      %v329 = vld [vmem:[%s1 + $0xa8] sm:$0xff]
      %v330 = vld [vmem:[%s1 + $0xb0] sm:$0xf]
      %v331 = vld [vmem:[%s1 + $0xb4] sm:$0xff]
      %v332 = vld [vmem:[%s1 + $0xbc] sm:$0xf]
      %v333 = vld [vmem:[%s2] sm:$0x7]
      %v335 = vlaneseq
      %v336 = vshrl.u32 %v335, 7
      %v337 = vsub.s32 0, %v336
      %v338 = vrot.slane %v333, %v337
      %v339 = vlaneseq
      %v340 = vshrl.u32 %v339, 7
      %v341 = vsub.s32 1, %v340
      %v342 = vrot.slane %v333, %v341
      %v343 = vlaneseq
      %v344 = vshrl.u32 %v343, 7
      %v345 = vsub.s32 2, %v344
      %v346 = vrot.slane %v333, %v345
      %v366 = vunpack.c.l.b16 %v285
      %v367 = vunpack.c.l.b16 %v286
      %v368 = vunpack.c.l.b16 %v287
      %v369 = vunpack.c.l.b16 %v288
      %v370 = vunpack.c.l.b16 %v289
      %v371 = vunpack.c.l.b16 %v290
      %v372 = vunpack.c.l.b16 %v291
      %v373 = vunpack.c.l.b16 %v292
      %v374 = vunpack.c.l.b16 %v293
      %v375 = vunpack.c.l.b16 %v294
      %v376 = vunpack.c.l.b16 %v295
      %v377 = vunpack.c.l.b16 %v296
      %v378 = vunpack.c.l.b16 %v297
      %v379 = vunpack.c.l.b16 %v298
      %v380 = vunpack.c.l.b16 %v299
      %v381 = vunpack.c.l.b16 %v300
      %v382 = vpack.c.b16 %v367, %v366
      %v383 = vpack.c.b16 %v369, %v368
      %v384 = vpack.c.b16 %v371, %v370
      %v385 = vpack.c.b16 %v373, %v372
      %v386 = vpack.c.b16 %v375, %v374
      %v387 = vpack.c.b16 %v377, %v376
      %v388 = vpack.c.b16 %v379, %v378
      %v389 = vpack.c.b16 %v381, %v380
      %v430 = vunpack.c.l.b16 %v301
      %v431 = vunpack.c.h.b16 %v301
      %v432 = vunpack.c.l.b16 %v302
      %v433 = vunpack.c.l.b16 %v303
      %v434 = vunpack.c.h.b16 %v303
      %v435 = vunpack.c.l.b16 %v304
      %v436 = vunpack.c.l.b16 %v305
      %v437 = vunpack.c.h.b16 %v305
      %v438 = vunpack.c.l.b16 %v306
      %v439 = vunpack.c.l.b16 %v307
      %v440 = vunpack.c.h.b16 %v307
      %v441 = vunpack.c.l.b16 %v308
      %v442 = vunpack.c.l.b16 %v309
      %v443 = vunpack.c.h.b16 %v309
      %v444 = vunpack.c.l.b16 %v310
      %v445 = vunpack.c.l.b16 %v311
      %v446 = vunpack.c.h.b16 %v311
      %v447 = vunpack.c.l.b16 %v312
      %v448 = vunpack.c.l.b16 %v313
      %v449 = vunpack.c.h.b16 %v313
      %v450 = vunpack.c.l.b16 %v314
      %v451 = vunpack.c.l.b16 %v315
      %v452 = vunpack.c.h.b16 %v315
      %v453 = vunpack.c.l.b16 %v316
      %v454 = vunpack.c.l.b16 %v317
      %v455 = vunpack.c.h.b16 %v317
      %v456 = vunpack.c.l.b16 %v318
      %v457 = vunpack.c.l.b16 %v319
      %v458 = vunpack.c.h.b16 %v319
      %v459 = vunpack.c.l.b16 %v320
      %v460 = vunpack.c.l.b16 %v321
      %v461 = vunpack.c.h.b16 %v321
      %v462 = vunpack.c.l.b16 %v322
      %v463 = vunpack.c.l.b16 %v323
      %v464 = vunpack.c.h.b16 %v323
      %v465 = vunpack.c.l.b16 %v324
      %v466 = vunpack.c.l.b16 %v325
      %v467 = vunpack.c.h.b16 %v325
      %v468 = vunpack.c.l.b16 %v326
      %v469 = vunpack.c.l.b16 %v327
      %v470 = vunpack.c.h.b16 %v327
      %v471 = vunpack.c.l.b16 %v328
      %v472 = vunpack.c.l.b16 %v329
      %v473 = vunpack.c.h.b16 %v329
      %v474 = vunpack.c.l.b16 %v330
      %v475 = vunpack.c.l.b16 %v331
      %v476 = vunpack.c.h.b16 %v331
      %v477 = vunpack.c.l.b16 %v332
      %v478 = vpack.c.b16 %v433, %v430
      %v479 = vpack.c.b16 %v434, %v431
      %v480 = vpack.c.b16 %v435, %v432
      %v481 = vpack.c.b16 %v439, %v436
      %v482 = vpack.c.b16 %v440, %v437
      %v483 = vpack.c.b16 %v441, %v438
      %v484 = vpack.c.b16 %v445, %v442
      %v485 = vpack.c.b16 %v446, %v443
      %v486 = vpack.c.b16 %v447, %v444
      %v487 = vpack.c.b16 %v451, %v448
      %v488 = vpack.c.b16 %v452, %v449
      %v489 = vpack.c.b16 %v453, %v450
      %v490 = vpack.c.b16 %v457, %v454
      %v491 = vpack.c.b16 %v458, %v455
      %v492 = vpack.c.b16 %v459, %v456
      %v493 = vpack.c.b16 %v463, %v460
      %v494 = vpack.c.b16 %v464, %v461
      %v495 = vpack.c.b16 %v465, %v462
      %v496 = vpack.c.b16 %v469, %v466
      %v497 = vpack.c.b16 %v470, %v467
      %v498 = vpack.c.b16 %v471, %v468
      %v499 = vpack.c.b16 %v475, %v472
      %v500 = vpack.c.b16 %v476, %v473
      %v501 = vpack.c.b16 %v477, %v474
      %526 = vmatprep.subr.bf16.mxu0 %v479
      %527 = vmatpush1.bf16.msra.mxu0 %v478
      %528 = vmatprep.subr.bf16.mxu0 %v482
      %529 = vmatpush1.bf16.msra.mxu0 %v481
      %530 = vmatprep.subr.bf16.mxu0 %v485
      %531 = vmatpush1.bf16.msra.mxu0 %v484
      %532 = vmatprep.subr.bf16.mxu0 %v488
      %533 = vmatpush1.bf16.msra.mxu0 %v487
      %534 = vmatprep.subr.bf16.mxu0 %v491
      %535 = vmatpush1.bf16.msra.mxu0 %v490
      %536 = vmatprep.subr.bf16.mxu0 %v494
      %537 = vmatpush1.bf16.msra.mxu0 %v493
      %538 = vmatprep.subr.bf16.mxu0 %v497
      %539 = vmatpush1.bf16.msra.mxu0 %v496
      %540 = vmatprep.subr.bf16.mxu0 %v500
      %541 = vmatpush1.bf16.msra.mxu0 %v499
      %542 = vmatprep.subr.bf16.mxu0 0
      %543 = vmatpush1.bf16.msra.mxu0 0
      %544 = vmatprep.subr.bf16.mxu0 0
      %545 = vmatpush1.bf16.msra.mxu0 0
      %546 = vmatprep.subr.bf16.mxu0 0
      %547 = vmatpush1.bf16.msra.mxu0 0
      %548 = vmatprep.subr.bf16.mxu0 0
      %549 = vmatpush1.bf16.msra.mxu0 0
      %550 = vmatprep.subr.bf16.mxu0 0
      %551 = vmatpush1.bf16.msra.mxu0 0
      %552 = vmatprep.subr.bf16.mxu0 0
      %553 = vmatpush1.bf16.msra.mxu0 0
      %554 = vmatprep.subr.bf16.mxu0 0
      %555 = vmatpush1.bf16.msra.mxu0 0
      %556 = vmatprep.subr.bf16.mxu0 0
      %557 = vmatpush1.bf16.msra.mxu0 0
      %558 = vmatprep.mubr.bf16.mxu0 0
      %559 = vmatmul.mubr.bf16.gmra.mrb[0].mxu0 %v382
      %v560 = vpop.f32.mrb[0].mxu0
      %v561 = vadd.f32 %v338, %v560
      %v562 = vpop.f32.mrb[0].mxu0
      %v563 = vadd.f32 %v342, %v562
      %v564 = vpop.f32.mrb[0].mxu0
      %v565 = vadd.f32 %v338, %v564
      %v566 = vpop.f32.mrb[0].mxu0
      %v567 = vadd.f32 %v342, %v566
      %568 = vmatprep.mubr.bf16.mxu0 0
      %569 = vmatmul.mubr.bf16.gmra.mrb[0].mxu0 %v383
      %v570 = vpop.f32.mrb[0].mxu0
      %v571 = vadd.f32 %v338, %v570
      %v572 = vpop.f32.mrb[0].mxu0
      %v573 = vadd.f32 %v342, %v572
      %v574 = vpop.f32.mrb[0].mxu0
      %v575 = vadd.f32 %v338, %v574
      %v576 = vpop.f32.mrb[0].mxu0
      %v577 = vadd.f32 %v342, %v576
      %578 = vmatprep.mubr.bf16.mxu0 0
      %579 = vmatmul.mubr.bf16.gmra.mrb[0].mxu0 %v384
      %v580 = vpop.f32.mrb[0].mxu0
      %v581 = vadd.f32 %v338, %v580
      %v582 = vpop.f32.mrb[0].mxu0
      %v583 = vadd.f32 %v342, %v582
      %v584 = vpop.f32.mrb[0].mxu0
      %v585 = vadd.f32 %v338, %v584
      %v586 = vpop.f32.mrb[0].mxu0
      %v587 = vadd.f32 %v342, %v586
      %588 = vmatprep.mubr.bf16.mxu0 0
      %589 = vmatmul.mubr.bf16.gmra.mrb[0].mxu0 %v385
      %v590 = vpop.f32.mrb[0].mxu0
      %v591 = vadd.f32 %v338, %v590
      %v592 = vpop.f32.mrb[0].mxu0
      %v593 = vadd.f32 %v342, %v592
      %v594 = vpop.f32.mrb[0].mxu0
      %v595 = vadd.f32 %v338, %v594
      %v596 = vpop.f32.mrb[0].mxu0
      %v597 = vadd.f32 %v342, %v596
      %598 = vmatprep.mubr.bf16.mxu0 0
      %599 = vmatmul.mubr.bf16.gmra.mrb[0].mxu0 %v386
      %v600 = vpop.f32.mrb[0].mxu0
      %v601 = vadd.f32 %v338, %v600
      %v602 = vpop.f32.mrb[0].mxu0
      %v603 = vadd.f32 %v342, %v602
      %v604 = vpop.f32.mrb[0].mxu0
      %v605 = vadd.f32 %v338, %v604
      %v606 = vpop.f32.mrb[0].mxu0
      %v607 = vadd.f32 %v342, %v606
      %608 = vmatprep.mubr.bf16.mxu0 0
      %609 = vmatmul.mubr.bf16.gmra.mrb[0].mxu0 %v387
      %v610 = vpop.f32.mrb[0].mxu0
      %v611 = vadd.f32 %v338, %v610
      %v612 = vpop.f32.mrb[0].mxu0
      %v613 = vadd.f32 %v342, %v612
      %v614 = vpop.f32.mrb[0].mxu0
      %v615 = vadd.f32 %v338, %v614
      %v616 = vpop.f32.mrb[0].mxu0
      %v617 = vadd.f32 %v342, %v616
      %618 = vmatprep.mubr.bf16.mxu0 0
      %619 = vmatmul.mubr.bf16.gmra.mrb[0].mxu0 %v388
      %v620 = vpop.f32.mrb[0].mxu0
      %v621 = vadd.f32 %v338, %v620
      %v622 = vpop.f32.mrb[0].mxu0
      %v623 = vadd.f32 %v342, %v622
      %v624 = vpop.f32.mrb[0].mxu0
      %v625 = vadd.f32 %v338, %v624
      %v626 = vpop.f32.mrb[0].mxu0
      %v627 = vadd.f32 %v342, %v626
      %628 = vmatprep.mubr.bf16.mxu0 0
      %629 = vmatmul.mubr.bf16.gmra.mrb[0].mxu0 %v389
      %v630 = vpop.f32.mrb[0].mxu0
      %v631 = vadd.f32 %v338, %v630
      %v632 = vpop.f32.mrb[0].mxu0
      %v633 = vadd.f32 %v342, %v632
      %v634 = vpop.f32.mrb[0].mxu0
      %v635 = vadd.f32 %v338, %v634
      %v636 = vpop.f32.mrb[0].mxu0
      %v637 = vadd.f32 %v342, %v636
      %638 = vdwg.mxu0
      %639 = vmatprep.subr.bf16.mxu0 0
      %640 = vmatpush1.bf16.msra.mxu0 %v480
      %641 = vmatprep.subr.bf16.mxu0 0
      %642 = vmatpush1.bf16.msra.mxu0 %v483
      %643 = vmatprep.subr.bf16.mxu0 0
      %644 = vmatpush1.bf16.msra.mxu0 %v486
      %645 = vmatprep.subr.bf16.mxu0 0
      %646 = vmatpush1.bf16.msra.mxu0 %v489
      %647 = vmatprep.subr.bf16.mxu0 0
      %648 = vmatpush1.bf16.msra.mxu0 %v492
      %649 = vmatprep.subr.bf16.mxu0 0
      %650 = vmatpush1.bf16.msra.mxu0 %v495
      %651 = vmatprep.subr.bf16.mxu0 0
      %652 = vmatpush1.bf16.msra.mxu0 %v498
      %653 = vmatprep.subr.bf16.mxu0 0
      %654 = vmatpush1.bf16.msra.mxu0 %v501
      %655 = vmatprep.subr.bf16.mxu0 0
      %656 = vmatpush1.bf16.msra.mxu0 0
      %657 = vmatprep.subr.bf16.mxu0 0
      %658 = vmatpush1.bf16.msra.mxu0 0
      %659 = vmatprep.subr.bf16.mxu0 0
      %660 = vmatpush1.bf16.msra.mxu0 0
      %661 = vmatprep.subr.bf16.mxu0 0
      %662 = vmatpush1.bf16.msra.mxu0 0
      %663 = vmatprep.subr.bf16.mxu0 0
      %664 = vmatpush1.bf16.msra.mxu0 0
      %665 = vmatprep.subr.bf16.mxu0 0
      %666 = vmatpush1.bf16.msra.mxu0 0
      %667 = vmatprep.subr.bf16.mxu0 0
      %668 = vmatpush1.bf16.msra.mxu0 0
      %669 = vmatprep.subr.bf16.mxu0 0
      %670 = vmatpush1.bf16.msra.mxu0 0
      %671 = vmatprep.mubr.bf16.mxu0 0
      %672 = vmatmul.mubr.bf16.gmra.mrb[0].mxu0 %v382
      %v673 = vpop.f32.mrb[0].mxu0
      %v674 = vadd.f32 %v346, %v673
      %v675 = vpop.f32.mrb[0].mxu0
      %v676 = vpop.f32.mrb[0].mxu0
      %v677 = vadd.f32 %v346, %v676
      %v678 = vpop.f32.mrb[0].mxu0
      %679 = vmatprep.mubr.bf16.mxu0 0
      %680 = vmatmul.mubr.bf16.gmra.mrb[0].mxu0 %v383
      %v681 = vpop.f32.mrb[0].mxu0
      %v682 = vadd.f32 %v346, %v681
      %v683 = vpop.f32.mrb[0].mxu0
      %v684 = vpop.f32.mrb[0].mxu0
      %v685 = vadd.f32 %v346, %v684
      %v686 = vpop.f32.mrb[0].mxu0
      %687 = vmatprep.mubr.bf16.mxu0 0
      %688 = vmatmul.mubr.bf16.gmra.mrb[0].mxu0 %v384
      %v689 = vpop.f32.mrb[0].mxu0
      %v690 = vadd.f32 %v346, %v689
      %v691 = vpop.f32.mrb[0].mxu0
      %v692 = vpop.f32.mrb[0].mxu0
      %v693 = vadd.f32 %v346, %v692
      %v694 = vpop.f32.mrb[0].mxu0
      %695 = vmatprep.mubr.bf16.mxu0 0
      %696 = vmatmul.mubr.bf16.gmra.mrb[0].mxu0 %v385
      %v697 = vpop.f32.mrb[0].mxu0
      %v698 = vadd.f32 %v346, %v697
      %v699 = vpop.f32.mrb[0].mxu0
      %v700 = vpop.f32.mrb[0].mxu0
      %v701 = vadd.f32 %v346, %v700
      %v702 = vpop.f32.mrb[0].mxu0
      %703 = vmatprep.mubr.bf16.mxu0 0
      %704 = vmatmul.mubr.bf16.gmra.mrb[0].mxu0 %v386
      %v705 = vpop.f32.mrb[0].mxu0
      %v706 = vadd.f32 %v346, %v705
      %v707 = vpop.f32.mrb[0].mxu0
      %v708 = vpop.f32.mrb[0].mxu0
      %v709 = vadd.f32 %v346, %v708
      %v710 = vpop.f32.mrb[0].mxu0
      %711 = vmatprep.mubr.bf16.mxu0 0
      %712 = vmatmul.mubr.bf16.gmra.mrb[0].mxu0 %v387
      %v713 = vpop.f32.mrb[0].mxu0
      %v714 = vadd.f32 %v346, %v713
      %v715 = vpop.f32.mrb[0].mxu0
      %v716 = vpop.f32.mrb[0].mxu0
      %v717 = vadd.f32 %v346, %v716
      %v718 = vpop.f32.mrb[0].mxu0
      %719 = vmatprep.mubr.bf16.mxu0 0
      %720 = vmatmul.mubr.bf16.gmra.mrb[0].mxu0 %v388
      %v721 = vpop.f32.mrb[0].mxu0
      %v722 = vadd.f32 %v346, %v721
      %v723 = vpop.f32.mrb[0].mxu0
      %v724 = vpop.f32.mrb[0].mxu0
      %v725 = vadd.f32 %v346, %v724
      %v726 = vpop.f32.mrb[0].mxu0
      %727 = vmatprep.mubr.bf16.mxu0 0
      %728 = vmatmul.mubr.bf16.gmra.mrb[0].mxu0 %v389
      %v729 = vpop.f32.mrb[0].mxu0
      %v730 = vadd.f32 %v346, %v729
      %v731 = vpop.f32.mrb[0].mxu0
      %v732 = vpop.f32.mrb[0].mxu0
      %v733 = vadd.f32 %v346, %v732
      %v734 = vpop.f32.mrb[0].mxu0
      %735 = vdwg.mxu0
      %v736 = vmax.f32 %v561, 0.0
      %v737 = vmax.f32 %v563, 0.0
      %v738 = vmax.f32 %v674, 0.0
      %v739 = vmax.f32 %v565, 0.0
      %v740 = vmax.f32 %v567, 0.0
      %v741 = vmax.f32 %v677, 0.0
      %v742 = vmax.f32 %v571, 0.0
      %v743 = vmax.f32 %v573, 0.0
      %v744 = vmax.f32 %v682, 0.0
      %v745 = vmax.f32 %v575, 0.0
      %v746 = vmax.f32 %v577, 0.0
      %v747 = vmax.f32 %v685, 0.0
      %v748 = vmax.f32 %v581, 0.0
      %v749 = vmax.f32 %v583, 0.0
      %v750 = vmax.f32 %v690, 0.0
      %v751 = vmax.f32 %v585, 0.0
      %v752 = vmax.f32 %v587, 0.0
      %v753 = vmax.f32 %v693, 0.0
      %v754 = vmax.f32 %v591, 0.0
      %v755 = vmax.f32 %v593, 0.0
      %v756 = vmax.f32 %v698, 0.0
      %v757 = vmax.f32 %v595, 0.0
      %v758 = vmax.f32 %v597, 0.0
      %v759 = vmax.f32 %v701, 0.0
      %v760 = vmax.f32 %v601, 0.0
      %v761 = vmax.f32 %v603, 0.0
      %v762 = vmax.f32 %v706, 0.0
      %v763 = vmax.f32 %v605, 0.0
      %v764 = vmax.f32 %v607, 0.0
      %v765 = vmax.f32 %v709, 0.0
      %v766 = vmax.f32 %v611, 0.0
      %v767 = vmax.f32 %v613, 0.0
      %v768 = vmax.f32 %v714, 0.0
      %v769 = vmax.f32 %v615, 0.0
      %v770 = vmax.f32 %v617, 0.0
      %v771 = vmax.f32 %v717, 0.0
      %v772 = vmax.f32 %v621, 0.0
      %v773 = vmax.f32 %v623, 0.0
      %v774 = vmax.f32 %v722, 0.0
      %v775 = vmax.f32 %v625, 0.0
      %v776 = vmax.f32 %v627, 0.0
      %v777 = vmax.f32 %v725, 0.0
      %v778 = vmax.f32 %v631, 0.0
      %v779 = vmax.f32 %v633, 0.0
      %v780 = vmax.f32 %v730, 0.0
      %v781 = vmax.f32 %v635, 0.0
      %v782 = vmax.f32 %v637, 0.0
      %v783 = vmax.f32 %v733, 0.0
      %v784 = vpack.c.bf16 %v739, %v736
      %v785 = vpack.c.bf16 %v740, %v737
      %v786 = vpack.c.bf16 %v741, %v738
      %v787 = vpack.c.bf16 %v745, %v742
      %v788 = vpack.c.bf16 %v746, %v743
      %v789 = vpack.c.bf16 %v747, %v744
      %v790 = vpack.c.bf16 %v751, %v748
      %v791 = vpack.c.bf16 %v752, %v749
      %v792 = vpack.c.bf16 %v753, %v750
      %v793 = vpack.c.bf16 %v757, %v754
      %v794 = vpack.c.bf16 %v758, %v755
      %v795 = vpack.c.bf16 %v759, %v756
      %v796 = vpack.c.bf16 %v763, %v760
      %v797 = vpack.c.bf16 %v764, %v761
      %v798 = vpack.c.bf16 %v765, %v762
      %v799 = vpack.c.bf16 %v769, %v766
      %v800 = vpack.c.bf16 %v770, %v767
      %v801 = vpack.c.bf16 %v771, %v768
      %v802 = vpack.c.bf16 %v775, %v772
      %v803 = vpack.c.bf16 %v776, %v773
      %v804 = vpack.c.bf16 %v777, %v774
      %v805 = vpack.c.bf16 %v781, %v778
      %v806 = vpack.c.bf16 %v782, %v779
      %v807 = vpack.c.bf16 %v783, %v780
      %v808 = vld [vmem:[%s3] sm:$0xff]
      %v809 = vld [vmem:[%s3 + $0x8] sm:$0xf]
      %v810 = vld [vmem:[%s3 + $0xc] sm:$0xff]
      %v811 = vld [vmem:[%s3 + $0x14] sm:$0xf]
      %v812 = vld [vmem:[%s3 + $0x18] sm:$0xff]
      %v813 = vld [vmem:[%s3 + $0x20] sm:$0xf]
      %v814 = vld [vmem:[%s3 + $0x24] sm:$0xff]
      %v815 = vld [vmem:[%s3 + $0x2c] sm:$0xf]
      %v816 = vld [vmem:[%s3 + $0x30] sm:$0xff]
      %v817 = vld [vmem:[%s3 + $0x38] sm:$0xf]
      %v818 = vld [vmem:[%s3 + $0x3c] sm:$0xff]
      %v819 = vld [vmem:[%s3 + $0x44] sm:$0xf]
      %v820 = vld [vmem:[%s3 + $0x48] sm:$0xff]
      %v821 = vld [vmem:[%s3 + $0x50] sm:$0xf]
      %v822 = vld [vmem:[%s3 + $0x54] sm:$0xff]
      %v823 = vld [vmem:[%s3 + $0x5c] sm:$0xf]
      %v824 = vld [vmem:[%s3 + $0x60] sm:$0xff]
      %v825 = vld [vmem:[%s3 + $0x68] sm:$0xf]
      %v826 = vld [vmem:[%s3 + $0x6c] sm:$0xff]
      %v827 = vld [vmem:[%s3 + $0x74] sm:$0xf]
      %v828 = vld [vmem:[%s3 + $0x78] sm:$0xff]
      %v829 = vld [vmem:[%s3 + $0x80] sm:$0xf]
      %v830 = vld [vmem:[%s3 + $0x84] sm:$0xff]
      %v831 = vld [vmem:[%s3 + $0x8c] sm:$0xf]
      %v832 = vld [vmem:[%s3 + $0x90] sm:$0xff]
      %v833 = vld [vmem:[%s3 + $0x98] sm:$0xf]
      %v834 = vld [vmem:[%s3 + $0x9c] sm:$0xff]
      %v835 = vld [vmem:[%s3 + $0xa4] sm:$0xf]
      %v836 = vld [vmem:[%s3 + $0xa8] sm:$0xff]
      %v837 = vld [vmem:[%s3 + $0xb0] sm:$0xf]
      %v838 = vld [vmem:[%s3 + $0xb4] sm:$0xff]
      %v839 = vld [vmem:[%s3 + $0xbc] sm:$0xf]
      %v840 = vld [vmem:[%s3 + $0xc0] sm:$0xff]
      %v841 = vld [vmem:[%s3 + $0xc8] sm:$0xf]
      %v842 = vld [vmem:[%s3 + $0xcc] sm:$0xff]
      %v843 = vld [vmem:[%s3 + $0xd4] sm:$0xf]
      %v844 = vld [vmem:[%s3 + $0xd8] sm:$0xff]
      %v845 = vld [vmem:[%s3 + $0xe0] sm:$0xf]
      %v846 = vld [vmem:[%s3 + $0xe4] sm:$0xff]
      %v847 = vld [vmem:[%s3 + $0xec] sm:$0xf]
      %v848 = vld [vmem:[%s3 + $0xf0] sm:$0xff]
      %v849 = vld [vmem:[%s3 + $0xf8] sm:$0xf]
      %v850 = vld [vmem:[%s3 + $0xfc] sm:$0xff]
      %v851 = vld [vmem:[%s3 + $0x104] sm:$0xf]
      %v852 = vld [vmem:[%s3 + $0x108] sm:$0xff]
      %v853 = vld [vmem:[%s3 + $0x110] sm:$0xf]
      %v854 = vld [vmem:[%s3 + $0x114] sm:$0xff]
      %v855 = vld [vmem:[%s3 + $0x11c] sm:$0xf]
      %v856 = vld [vmem:[%s3 + $0x120] sm:$0xff]
      %v857 = vld [vmem:[%s3 + $0x128] sm:$0xf]
      %v858 = vld [vmem:[%s3 + $0x12c] sm:$0xff]
      %v859 = vld [vmem:[%s3 + $0x134] sm:$0xf]
      %v860 = vld [vmem:[%s3 + $0x138] sm:$0xff]
      %v861 = vld [vmem:[%s3 + $0x140] sm:$0xf]
      %v862 = vld [vmem:[%s3 + $0x144] sm:$0xff]
      %v863 = vld [vmem:[%s3 + $0x14c] sm:$0xf]
      %v864 = vld [vmem:[%s3 + $0x150] sm:$0xff]
      %v865 = vld [vmem:[%s3 + $0x158] sm:$0xf]
      %v866 = vld [vmem:[%s3 + $0x15c] sm:$0xff]
      %v867 = vld [vmem:[%s3 + $0x164] sm:$0xf]
      %v868 = vld [vmem:[%s3 + $0x168] sm:$0xff]
      %v869 = vld [vmem:[%s3 + $0x170] sm:$0xf]
      %v870 = vld [vmem:[%s3 + $0x174] sm:$0xff]
      %v871 = vld [vmem:[%s3 + $0x17c] sm:$0xf]
      %v872 = vld [vmem:[%s3 + $0x180] sm:$0xff]
      %v873 = vld [vmem:[%s3 + $0x188] sm:$0xf]
      %v874 = vld [vmem:[%s3 + $0x18c] sm:$0xff]
      %v875 = vld [vmem:[%s3 + $0x194] sm:$0xf]
      %v876 = vld [vmem:[%s3 + $0x198] sm:$0xff]
      %v877 = vld [vmem:[%s3 + $0x1a0] sm:$0xf]
      %v878 = vld [vmem:[%s3 + $0x1a4] sm:$0xff]
      %v879 = vld [vmem:[%s3 + $0x1ac] sm:$0xf]
      %v880 = vld [vmem:[%s3 + $0x1b0] sm:$0xff]
      %v881 = vld [vmem:[%s3 + $0x1b8] sm:$0xf]
      %v882 = vld [vmem:[%s3 + $0x1bc] sm:$0xff]
      %v883 = vld [vmem:[%s3 + $0x1c4] sm:$0xf]
      %v884 = vld [vmem:[%s3 + $0x1c8] sm:$0xff]
      %v885 = vld [vmem:[%s3 + $0x1d0] sm:$0xf]
      %v886 = vld [vmem:[%s3 + $0x1d4] sm:$0xff]
      %v887 = vld [vmem:[%s3 + $0x1dc] sm:$0xf]
      %v888 = vld [vmem:[%s3 + $0x1e0] sm:$0xff]
      %v889 = vld [vmem:[%s3 + $0x1e8] sm:$0xf]
      %v890 = vld [vmem:[%s3 + $0x1ec] sm:$0xff]
      %v891 = vld [vmem:[%s3 + $0x1f4] sm:$0xf]
      %v892 = vld [vmem:[%s3 + $0x1f8] sm:$0xff]
      %v893 = vld [vmem:[%s3 + $0x200] sm:$0xf]
      %v894 = vld [vmem:[%s3 + $0x204] sm:$0xff]
      %v895 = vld [vmem:[%s3 + $0x20c] sm:$0xf]
      %v896 = vld [vmem:[%s3 + $0x210] sm:$0xff]
      %v897 = vld [vmem:[%s3 + $0x218] sm:$0xf]
      %v898 = vld [vmem:[%s3 + $0x21c] sm:$0xff]
      %v899 = vld [vmem:[%s3 + $0x224] sm:$0xf]
      %v900 = vld [vmem:[%s3 + $0x228] sm:$0xff]
      %v901 = vld [vmem:[%s3 + $0x230] sm:$0xf]
      %v902 = vld [vmem:[%s3 + $0x234] sm:$0xff]
      %v903 = vld [vmem:[%s3 + $0x23c] sm:$0xf]
      %v904 = vld [vmem:[%s4] sm:$0x7]
      %v906 = vlaneseq
      %v907 = vshrl.u32 %v906, 7
      %v908 = vsub.s32 0, %v907
      %v909 = vrot.slane %v904, %v908
      %v910 = vlaneseq
      %v911 = vshrl.u32 %v910, 7
      %v912 = vsub.s32 1, %v911
      %v913 = vrot.slane %v904, %v912
      %v914 = vlaneseq
      %v915 = vshrl.u32 %v914, 7
      %v916 = vsub.s32 2, %v915
      %v917 = vrot.slane %v904, %v916
      %v1017 = vunpack.c.l.b16 %v808
      %v1018 = vunpack.c.h.b16 %v808
      %v1019 = vunpack.c.l.b16 %v809
      %v1020 = vunpack.c.l.b16 %v810
      %v1021 = vunpack.c.h.b16 %v810
      %v1022 = vunpack.c.l.b16 %v811
      %v1023 = vunpack.c.l.b16 %v812
      %v1024 = vunpack.c.h.b16 %v812
      %v1025 = vunpack.c.l.b16 %v813
      %v1026 = vunpack.c.l.b16 %v814
      %v1027 = vunpack.c.h.b16 %v814
      %v1028 = vunpack.c.l.b16 %v815
      %v1029 = vunpack.c.l.b16 %v816
      %v1030 = vunpack.c.h.b16 %v816
      %v1031 = vunpack.c.l.b16 %v817
      %v1032 = vunpack.c.l.b16 %v818
      %v1033 = vunpack.c.h.b16 %v818
      %v1034 = vunpack.c.l.b16 %v819
      %v1035 = vunpack.c.l.b16 %v820
      %v1036 = vunpack.c.h.b16 %v820
      %v1037 = vunpack.c.l.b16 %v821
      %v1038 = vunpack.c.l.b16 %v822
      %v1039 = vunpack.c.h.b16 %v822
      %v1040 = vunpack.c.l.b16 %v823
      %v1041 = vunpack.c.l.b16 %v824
      %v1042 = vunpack.c.h.b16 %v824
      %v1043 = vunpack.c.l.b16 %v825
      %v1044 = vunpack.c.l.b16 %v826
      %v1045 = vunpack.c.h.b16 %v826
      %v1046 = vunpack.c.l.b16 %v827
      %v1047 = vunpack.c.l.b16 %v828
      %v1048 = vunpack.c.h.b16 %v828
      %v1049 = vunpack.c.l.b16 %v829
      %v1050 = vunpack.c.l.b16 %v830
      %v1051 = vunpack.c.h.b16 %v830
      %v1052 = vunpack.c.l.b16 %v831
      %v1053 = vunpack.c.l.b16 %v832
      %v1054 = vunpack.c.h.b16 %v832
      %v1055 = vunpack.c.l.b16 %v833
      %v1056 = vunpack.c.l.b16 %v834
      %v1057 = vunpack.c.h.b16 %v834
      %v1058 = vunpack.c.l.b16 %v835
      %v1059 = vunpack.c.l.b16 %v836
      %v1060 = vunpack.c.h.b16 %v836
      %v1061 = vunpack.c.l.b16 %v837
      %v1062 = vunpack.c.l.b16 %v838
      %v1063 = vunpack.c.h.b16 %v838
      %v1064 = vunpack.c.l.b16 %v839
      %v1065 = vunpack.c.l.b16 %v840
      %v1066 = vunpack.c.h.b16 %v840
      %v1067 = vunpack.c.l.b16 %v841
      %v1068 = vunpack.c.l.b16 %v842
      %v1069 = vunpack.c.h.b16 %v842
      %v1070 = vunpack.c.l.b16 %v843
      %v1071 = vunpack.c.l.b16 %v844
      %v1072 = vunpack.c.h.b16 %v844
      %v1073 = vunpack.c.l.b16 %v845
      %v1074 = vunpack.c.l.b16 %v846
      %v1075 = vunpack.c.h.b16 %v846
      %v1076 = vunpack.c.l.b16 %v847
      %v1077 = vunpack.c.l.b16 %v848
      %v1078 = vunpack.c.h.b16 %v848
      %v1079 = vunpack.c.l.b16 %v849
      %v1080 = vunpack.c.l.b16 %v850
      %v1081 = vunpack.c.h.b16 %v850
      %v1082 = vunpack.c.l.b16 %v851
      %v1083 = vunpack.c.l.b16 %v852
      %v1084 = vunpack.c.h.b16 %v852
      %v1085 = vunpack.c.l.b16 %v853
      %v1086 = vunpack.c.l.b16 %v854
      %v1087 = vunpack.c.h.b16 %v854
      %v1088 = vunpack.c.l.b16 %v855
      %v1089 = vunpack.c.l.b16 %v856
      %v1090 = vunpack.c.h.b16 %v856
      %v1091 = vunpack.c.l.b16 %v857
      %v1092 = vunpack.c.l.b16 %v858
      %v1093 = vunpack.c.h.b16 %v858
      %v1094 = vunpack.c.l.b16 %v859
      %v1095 = vunpack.c.l.b16 %v860
      %v1096 = vunpack.c.h.b16 %v860
      %v1097 = vunpack.c.l.b16 %v861
      %v1098 = vunpack.c.l.b16 %v862
      %v1099 = vunpack.c.h.b16 %v862
      %v1100 = vunpack.c.l.b16 %v863
      %v1101 = vunpack.c.l.b16 %v864
      %v1102 = vunpack.c.h.b16 %v864
      %v1103 = vunpack.c.l.b16 %v865
      %v1104 = vunpack.c.l.b16 %v866
      %v1105 = vunpack.c.h.b16 %v866
      %v1106 = vunpack.c.l.b16 %v867
      %v1107 = vunpack.c.l.b16 %v868
      %v1108 = vunpack.c.h.b16 %v868
      %v1109 = vunpack.c.l.b16 %v869
      %v1110 = vunpack.c.l.b16 %v870
      %v1111 = vunpack.c.h.b16 %v870
      %v1112 = vunpack.c.l.b16 %v871
      %v1113 = vunpack.c.l.b16 %v872
      %v1114 = vunpack.c.h.b16 %v872
      %v1115 = vunpack.c.l.b16 %v873
      %v1116 = vunpack.c.l.b16 %v874
      %v1117 = vunpack.c.h.b16 %v874
      %v1118 = vunpack.c.l.b16 %v875
      %v1119 = vunpack.c.l.b16 %v876
      %v1120 = vunpack.c.h.b16 %v876
      %v1121 = vunpack.c.l.b16 %v877
      %v1122 = vunpack.c.l.b16 %v878
      %v1123 = vunpack.c.h.b16 %v878
      %v1124 = vunpack.c.l.b16 %v879
      %v1125 = vunpack.c.l.b16 %v880
      %v1126 = vunpack.c.h.b16 %v880
      %v1127 = vunpack.c.l.b16 %v881
      %v1128 = vunpack.c.l.b16 %v882
      %v1129 = vunpack.c.h.b16 %v882
      %v1130 = vunpack.c.l.b16 %v883
      %v1131 = vunpack.c.l.b16 %v884
      %v1132 = vunpack.c.h.b16 %v884
      %v1133 = vunpack.c.l.b16 %v885
      %v1134 = vunpack.c.l.b16 %v886
      %v1135 = vunpack.c.h.b16 %v886
      %v1136 = vunpack.c.l.b16 %v887
      %v1137 = vunpack.c.l.b16 %v888
      %v1138 = vunpack.c.h.b16 %v888
      %v1139 = vunpack.c.l.b16 %v889
      %v1140 = vunpack.c.l.b16 %v890
      %v1141 = vunpack.c.h.b16 %v890
      %v1142 = vunpack.c.l.b16 %v891
      %v1143 = vunpack.c.l.b16 %v892
      %v1144 = vunpack.c.h.b16 %v892
      %v1145 = vunpack.c.l.b16 %v893
      %v1146 = vunpack.c.l.b16 %v894
      %v1147 = vunpack.c.h.b16 %v894
      %v1148 = vunpack.c.l.b16 %v895
      %v1149 = vunpack.c.l.b16 %v896
      %v1150 = vunpack.c.h.b16 %v896
      %v1151 = vunpack.c.l.b16 %v897
      %v1152 = vunpack.c.l.b16 %v898
      %v1153 = vunpack.c.h.b16 %v898
      %v1154 = vunpack.c.l.b16 %v899
      %v1155 = vunpack.c.l.b16 %v900
      %v1156 = vunpack.c.h.b16 %v900
      %v1157 = vunpack.c.l.b16 %v901
      %v1158 = vunpack.c.l.b16 %v902
      %v1159 = vunpack.c.h.b16 %v902
      %v1160 = vunpack.c.l.b16 %v903
      %v1161 = vpack.c.b16 %v1020, %v1017
      %v1162 = vpack.c.b16 %v1021, %v1018
      %v1163 = vpack.c.b16 %v1022, %v1019
      %v1164 = vpack.c.b16 %v1026, %v1023
      %v1165 = vpack.c.b16 %v1027, %v1024
      %v1166 = vpack.c.b16 %v1028, %v1025
      %v1167 = vpack.c.b16 %v1032, %v1029
      %v1168 = vpack.c.b16 %v1033, %v1030
      %v1169 = vpack.c.b16 %v1034, %v1031
      %v1170 = vpack.c.b16 %v1038, %v1035
      %v1171 = vpack.c.b16 %v1039, %v1036
      %v1172 = vpack.c.b16 %v1040, %v1037
      %v1173 = vpack.c.b16 %v1044, %v1041
      %v1174 = vpack.c.b16 %v1045, %v1042
      %v1175 = vpack.c.b16 %v1046, %v1043
      %v1176 = vpack.c.b16 %v1050, %v1047
      %v1177 = vpack.c.b16 %v1051, %v1048
      %v1178 = vpack.c.b16 %v1052, %v1049
      %v1179 = vpack.c.b16 %v1056, %v1053
      %v1180 = vpack.c.b16 %v1057, %v1054
      %v1181 = vpack.c.b16 %v1058, %v1055
      %v1182 = vpack.c.b16 %v1062, %v1059
      %v1183 = vpack.c.b16 %v1063, %v1060
      %v1184 = vpack.c.b16 %v1064, %v1061
      %v1185 = vpack.c.b16 %v1068, %v1065
      %v1186 = vpack.c.b16 %v1069, %v1066
      %v1187 = vpack.c.b16 %v1070, %v1067
      %v1188 = vpack.c.b16 %v1074, %v1071
      %v1189 = vpack.c.b16 %v1075, %v1072
      %v1190 = vpack.c.b16 %v1076, %v1073
      %v1191 = vpack.c.b16 %v1080, %v1077
      %v1192 = vpack.c.b16 %v1081, %v1078
      %v1193 = vpack.c.b16 %v1082, %v1079
      %v1194 = vpack.c.b16 %v1086, %v1083
      %v1195 = vpack.c.b16 %v1087, %v1084
      %v1196 = vpack.c.b16 %v1088, %v1085
      %v1197 = vpack.c.b16 %v1092, %v1089
      %v1198 = vpack.c.b16 %v1093, %v1090
      %v1199 = vpack.c.b16 %v1094, %v1091
      %v1200 = vpack.c.b16 %v1098, %v1095
      %v1201 = vpack.c.b16 %v1099, %v1096
      %v1202 = vpack.c.b16 %v1100, %v1097
      %v1203 = vpack.c.b16 %v1104, %v1101
      %v1204 = vpack.c.b16 %v1105, %v1102
      %v1205 = vpack.c.b16 %v1106, %v1103
      %v1206 = vpack.c.b16 %v1110, %v1107
      %v1207 = vpack.c.b16 %v1111, %v1108
      %v1208 = vpack.c.b16 %v1112, %v1109
      %v1209 = vpack.c.b16 %v1116, %v1113
      %v1210 = vpack.c.b16 %v1117, %v1114
      %v1211 = vpack.c.b16 %v1118, %v1115
      %v1212 = vpack.c.b16 %v1122, %v1119
      %v1213 = vpack.c.b16 %v1123, %v1120
      %v1214 = vpack.c.b16 %v1124, %v1121
      %v1215 = vpack.c.b16 %v1128, %v1125
      %v1216 = vpack.c.b16 %v1129, %v1126
      %v1217 = vpack.c.b16 %v1130, %v1127
      %v1218 = vpack.c.b16 %v1134, %v1131
      %v1219 = vpack.c.b16 %v1135, %v1132
      %v1220 = vpack.c.b16 %v1136, %v1133
      %v1221 = vpack.c.b16 %v1140, %v1137
      %v1222 = vpack.c.b16 %v1141, %v1138
      %v1223 = vpack.c.b16 %v1142, %v1139
      %v1224 = vpack.c.b16 %v1146, %v1143
      %v1225 = vpack.c.b16 %v1147, %v1144
      %v1226 = vpack.c.b16 %v1148, %v1145
      %v1227 = vpack.c.b16 %v1152, %v1149
      %v1228 = vpack.c.b16 %v1153, %v1150
      %v1229 = vpack.c.b16 %v1154, %v1151
      %v1230 = vpack.c.b16 %v1158, %v1155
      %v1231 = vpack.c.b16 %v1159, %v1156
      %v1232 = vpack.c.b16 %v1160, %v1157
      %1305 = vmatprep.subr.bf16.mxu0 %v1162
      %1306 = vmatpush1.bf16.msra.mxu0 %v1161
      %1307 = vmatprep.subr.bf16.mxu0 %v1165
      %1308 = vmatpush1.bf16.msra.mxu0 %v1164
      %1309 = vmatprep.subr.bf16.mxu0 %v1168
      %1310 = vmatpush1.bf16.msra.mxu0 %v1167
      %1311 = vmatprep.subr.bf16.mxu0 %v1171
      %1312 = vmatpush1.bf16.msra.mxu0 %v1170
      %1313 = vmatprep.subr.bf16.mxu0 %v1174
      %1314 = vmatpush1.bf16.msra.mxu0 %v1173
      %1315 = vmatprep.subr.bf16.mxu0 %v1177
      %1316 = vmatpush1.bf16.msra.mxu0 %v1176
      %1317 = vmatprep.subr.bf16.mxu0 %v1180
      %1318 = vmatpush1.bf16.msra.mxu0 %v1179
      %1319 = vmatprep.subr.bf16.mxu0 %v1183
      %1320 = vmatpush1.bf16.msra.mxu0 %v1182
      %1321 = vmatprep.subr.bf16.mxu0 %v1186
      %1322 = vmatpush1.bf16.msra.mxu0 %v1185
      %1323 = vmatprep.subr.bf16.mxu0 %v1189
      %1324 = vmatpush1.bf16.msra.mxu0 %v1188
      %1325 = vmatprep.subr.bf16.mxu0 %v1192
      %1326 = vmatpush1.bf16.msra.mxu0 %v1191
      %1327 = vmatprep.subr.bf16.mxu0 %v1195
      %1328 = vmatpush1.bf16.msra.mxu0 %v1194
      %1329 = vmatprep.subr.bf16.mxu0 %v1198
      %1330 = vmatpush1.bf16.msra.mxu0 %v1197
      %1331 = vmatprep.subr.bf16.mxu0 %v1201
      %1332 = vmatpush1.bf16.msra.mxu0 %v1200
      %1333 = vmatprep.subr.bf16.mxu0 %v1204
      %1334 = vmatpush1.bf16.msra.mxu0 %v1203
      %1335 = vmatprep.subr.bf16.mxu0 %v1207
      %1336 = vmatpush1.bf16.msra.mxu0 %v1206
      %1337 = vmatprep.mubr.bf16.mxu0 %v785
      %1338 = vmatmul.mubr.bf16.gmra.mrb[0].mxu0 %v784
      %v1339 = vpop.f32.mrb[0].mxu0
      %v1340 = vadd.f32 %v909, %v1339
      %v1341 = vpop.f32.mrb[0].mxu0
      %v1342 = vadd.f32 %v913, %v1341
      %v1343 = vpop.f32.mrb[0].mxu0
      %v1344 = vadd.f32 %v909, %v1343
      %v1345 = vpop.f32.mrb[0].mxu0
      %v1346 = vadd.f32 %v913, %v1345
      %1347 = vmatprep.mubr.bf16.mxu0 %v788
      %1348 = vmatmul.mubr.bf16.gmra.mrb[0].mxu0 %v787
      %v1349 = vpop.f32.mrb[0].mxu0
      %v1350 = vadd.f32 %v909, %v1349
      %v1351 = vpop.f32.mrb[0].mxu0
      %v1352 = vadd.f32 %v913, %v1351
      %v1353 = vpop.f32.mrb[0].mxu0
      %v1354 = vadd.f32 %v909, %v1353
      %v1355 = vpop.f32.mrb[0].mxu0
      %v1356 = vadd.f32 %v913, %v1355
      %1357 = vmatprep.mubr.bf16.mxu0 %v791
      %1358 = vmatmul.mubr.bf16.gmra.mrb[0].mxu0 %v790
      %v1359 = vpop.f32.mrb[0].mxu0
      %v1360 = vadd.f32 %v909, %v1359
      %v1361 = vpop.f32.mrb[0].mxu0
      %v1362 = vadd.f32 %v913, %v1361
      %v1363 = vpop.f32.mrb[0].mxu0
      %v1364 = vadd.f32 %v909, %v1363
      %v1365 = vpop.f32.mrb[0].mxu0
      %v1366 = vadd.f32 %v913, %v1365
      %1367 = vmatprep.mubr.bf16.mxu0 %v794
      %1368 = vmatmul.mubr.bf16.gmra.mrb[0].mxu0 %v793
      %v1369 = vpop.f32.mrb[0].mxu0
      %v1370 = vadd.f32 %v909, %v1369
      %v1371 = vpop.f32.mrb[0].mxu0
      %v1372 = vadd.f32 %v913, %v1371
      %v1373 = vpop.f32.mrb[0].mxu0
      %v1374 = vadd.f32 %v909, %v1373
      %v1375 = vpop.f32.mrb[0].mxu0
      %v1376 = vadd.f32 %v913, %v1375
      %1377 = vmatprep.mubr.bf16.mxu0 %v797
      %1378 = vmatmul.mubr.bf16.gmra.mrb[0].mxu0 %v796
      %v1379 = vpop.f32.mrb[0].mxu0
      %v1380 = vadd.f32 %v909, %v1379
      %v1381 = vpop.f32.mrb[0].mxu0
      %v1382 = vadd.f32 %v913, %v1381
      %v1383 = vpop.f32.mrb[0].mxu0
      %v1384 = vadd.f32 %v909, %v1383
      %v1385 = vpop.f32.mrb[0].mxu0
      %v1386 = vadd.f32 %v913, %v1385
      %1387 = vmatprep.mubr.bf16.mxu0 %v800
      %1388 = vmatmul.mubr.bf16.gmra.mrb[0].mxu0 %v799
      %v1389 = vpop.f32.mrb[0].mxu0
      %v1390 = vadd.f32 %v909, %v1389
      %v1391 = vpop.f32.mrb[0].mxu0
      %v1392 = vadd.f32 %v913, %v1391
      %v1393 = vpop.f32.mrb[0].mxu0
      %v1394 = vadd.f32 %v909, %v1393
      %v1395 = vpop.f32.mrb[0].mxu0
      %v1396 = vadd.f32 %v913, %v1395
      %1397 = vmatprep.mubr.bf16.mxu0 %v803
      %1398 = vmatmul.mubr.bf16.gmra.mrb[0].mxu0 %v802
      %v1399 = vpop.f32.mrb[0].mxu0
      %v1400 = vadd.f32 %v909, %v1399
      %v1401 = vpop.f32.mrb[0].mxu0
      %v1402 = vadd.f32 %v913, %v1401
      %v1403 = vpop.f32.mrb[0].mxu0
      %v1404 = vadd.f32 %v909, %v1403
      %v1405 = vpop.f32.mrb[0].mxu0
      %v1406 = vadd.f32 %v913, %v1405
      %1407 = vmatprep.mubr.bf16.mxu0 %v806
      %1408 = vmatmul.mubr.bf16.gmra.mrb[0].mxu0 %v805
      %v1409 = vpop.f32.mrb[0].mxu0
      %v1410 = vadd.f32 %v909, %v1409
      %v1411 = vpop.f32.mrb[0].mxu0
      %v1412 = vadd.f32 %v913, %v1411
      %v1413 = vpop.f32.mrb[0].mxu0
      %v1414 = vadd.f32 %v909, %v1413
      %v1415 = vpop.f32.mrb[0].mxu0
      %v1416 = vadd.f32 %v913, %v1415
      %1417 = vdwg.mxu0
      %1418 = vmatprep.subr.bf16.mxu0 %v1210
      %1419 = vmatpush1.bf16.msra.mxu0 %v1209
      %1420 = vmatprep.subr.bf16.mxu0 %v1213
      %1421 = vmatpush1.bf16.msra.mxu0 %v1212
      %1422 = vmatprep.subr.bf16.mxu0 %v1216
      %1423 = vmatpush1.bf16.msra.mxu0 %v1215
      %1424 = vmatprep.subr.bf16.mxu0 %v1219
      %1425 = vmatpush1.bf16.msra.mxu0 %v1218
      %1426 = vmatprep.subr.bf16.mxu0 %v1222
      %1427 = vmatpush1.bf16.msra.mxu0 %v1221
      %1428 = vmatprep.subr.bf16.mxu0 %v1225
      %1429 = vmatpush1.bf16.msra.mxu0 %v1224
      %1430 = vmatprep.subr.bf16.mxu0 %v1228
      %1431 = vmatpush1.bf16.msra.mxu0 %v1227
      %1432 = vmatprep.subr.bf16.mxu0 %v1231
      %1433 = vmatpush1.bf16.msra.mxu0 %v1230
      %1434 = vmatprep.subr.bf16.mxu0 0
      %1435 = vmatpush1.bf16.msra.mxu0 0
      %1436 = vmatprep.subr.bf16.mxu0 0
      %1437 = vmatpush1.bf16.msra.mxu0 0
      %1438 = vmatprep.subr.bf16.mxu0 0
      %1439 = vmatpush1.bf16.msra.mxu0 0
      %1440 = vmatprep.subr.bf16.mxu0 0
      %1441 = vmatpush1.bf16.msra.mxu0 0
      %1442 = vmatprep.subr.bf16.mxu0 0
      %1443 = vmatpush1.bf16.msra.mxu0 0
      %1444 = vmatprep.subr.bf16.mxu0 0
      %1445 = vmatpush1.bf16.msra.mxu0 0
      %1446 = vmatprep.subr.bf16.mxu0 0
      %1447 = vmatpush1.bf16.msra.mxu0 0
      %1448 = vmatprep.subr.bf16.mxu0 0
      %1449 = vmatpush1.bf16.msra.mxu0 0
      %1450 = vmatprep.mubr.bf16.mxu0 0
      %1451 = vmatmul.mubr.bf16.gmra.mrb[0].mxu0 %v786
      %v1452 = vpop.f32.mrb[0].mxu0
      %v1453 = vadd.f32 %v1340, %v1452
      %v1454 = vpop.f32.mrb[0].mxu0
      %v1455 = vadd.f32 %v1342, %v1454
      %v1456 = vpop.f32.mrb[0].mxu0
      %v1457 = vadd.f32 %v1344, %v1456
      %v1458 = vpop.f32.mrb[0].mxu0
      %v1459 = vadd.f32 %v1346, %v1458
      %1460 = vmatprep.mubr.bf16.mxu0 0
      %1461 = vmatmul.mubr.bf16.gmra.mrb[0].mxu0 %v789
      %v1462 = vpop.f32.mrb[0].mxu0
      %v1463 = vadd.f32 %v1350, %v1462
      %v1464 = vpop.f32.mrb[0].mxu0
      %v1465 = vadd.f32 %v1352, %v1464
      %v1466 = vpop.f32.mrb[0].mxu0
      %v1467 = vadd.f32 %v1354, %v1466
      %v1468 = vpop.f32.mrb[0].mxu0
      %v1469 = vadd.f32 %v1356, %v1468
      %1470 = vmatprep.mubr.bf16.mxu0 0
      %1471 = vmatmul.mubr.bf16.gmra.mrb[0].mxu0 %v792
      %v1472 = vpop.f32.mrb[0].mxu0
      %v1473 = vadd.f32 %v1360, %v1472
      %v1474 = vpop.f32.mrb[0].mxu0
      %v1475 = vadd.f32 %v1362, %v1474
      %v1476 = vpop.f32.mrb[0].mxu0
      %v1477 = vadd.f32 %v1364, %v1476
      %v1478 = vpop.f32.mrb[0].mxu0
      %v1479 = vadd.f32 %v1366, %v1478
      %1480 = vmatprep.mubr.bf16.mxu0 0
      %1481 = vmatmul.mubr.bf16.gmra.mrb[0].mxu0 %v795
      %v1482 = vpop.f32.mrb[0].mxu0
      %v1483 = vadd.f32 %v1370, %v1482
      %v1484 = vpop.f32.mrb[0].mxu0
      %v1485 = vadd.f32 %v1372, %v1484
      %v1486 = vpop.f32.mrb[0].mxu0
      %v1487 = vadd.f32 %v1374, %v1486
      %v1488 = vpop.f32.mrb[0].mxu0
      %v1489 = vadd.f32 %v1376, %v1488
      %1490 = vmatprep.mubr.bf16.mxu0 0
      %1491 = vmatmul.mubr.bf16.gmra.mrb[0].mxu0 %v798
      %v1492 = vpop.f32.mrb[0].mxu0
      %v1493 = vadd.f32 %v1380, %v1492
      %v1494 = vpop.f32.mrb[0].mxu0
      %v1495 = vadd.f32 %v1382, %v1494
      %v1496 = vpop.f32.mrb[0].mxu0
      %v1497 = vadd.f32 %v1384, %v1496
      %v1498 = vpop.f32.mrb[0].mxu0
      %v1499 = vadd.f32 %v1386, %v1498
      %1500 = vmatprep.mubr.bf16.mxu0 0
      %1501 = vmatmul.mubr.bf16.gmra.mrb[0].mxu0 %v801
      %v1502 = vpop.f32.mrb[0].mxu0
      %v1503 = vadd.f32 %v1390, %v1502
      %v1504 = vpop.f32.mrb[0].mxu0
      %v1505 = vadd.f32 %v1392, %v1504
      %v1506 = vpop.f32.mrb[0].mxu0
      %v1507 = vadd.f32 %v1394, %v1506
      %v1508 = vpop.f32.mrb[0].mxu0
      %v1509 = vadd.f32 %v1396, %v1508
      %1510 = vmatprep.mubr.bf16.mxu0 0
      %1511 = vmatmul.mubr.bf16.gmra.mrb[0].mxu0 %v804
      %v1512 = vpop.f32.mrb[0].mxu0
      %v1513 = vadd.f32 %v1400, %v1512
      %v1514 = vpop.f32.mrb[0].mxu0
      %v1515 = vadd.f32 %v1402, %v1514
      %v1516 = vpop.f32.mrb[0].mxu0
      %v1517 = vadd.f32 %v1404, %v1516
      %v1518 = vpop.f32.mrb[0].mxu0
      %v1519 = vadd.f32 %v1406, %v1518
      %1520 = vmatprep.mubr.bf16.mxu0 0
      %1521 = vmatmul.mubr.bf16.gmra.mrb[0].mxu0 %v807
      %v1522 = vpop.f32.mrb[0].mxu0
      %v1523 = vadd.f32 %v1410, %v1522
      %v1524 = vpop.f32.mrb[0].mxu0
      %v1525 = vadd.f32 %v1412, %v1524
      %v1526 = vpop.f32.mrb[0].mxu0
      %v1527 = vadd.f32 %v1414, %v1526
      %v1528 = vpop.f32.mrb[0].mxu0
      %v1529 = vadd.f32 %v1416, %v1528
      %1530 = vdwg.mxu0
      %1531 = vmatprep.subr.bf16.mxu0 0
      %1532 = vmatpush1.bf16.msra.mxu0 %v1163
      %1533 = vmatprep.subr.bf16.mxu0 0
      %1534 = vmatpush1.bf16.msra.mxu0 %v1166
      %1535 = vmatprep.subr.bf16.mxu0 0
      %1536 = vmatpush1.bf16.msra.mxu0 %v1169
      %1537 = vmatprep.subr.bf16.mxu0 0
      %1538 = vmatpush1.bf16.msra.mxu0 %v1172
      %1539 = vmatprep.subr.bf16.mxu0 0
      %1540 = vmatpush1.bf16.msra.mxu0 %v1175
      %1541 = vmatprep.subr.bf16.mxu0 0
      %1542 = vmatpush1.bf16.msra.mxu0 %v1178
      %1543 = vmatprep.subr.bf16.mxu0 0
      %1544 = vmatpush1.bf16.msra.mxu0 %v1181
      %1545 = vmatprep.subr.bf16.mxu0 0
      %1546 = vmatpush1.bf16.msra.mxu0 %v1184
      %1547 = vmatprep.subr.bf16.mxu0 0
      %1548 = vmatpush1.bf16.msra.mxu0 %v1187
      %1549 = vmatprep.subr.bf16.mxu0 0
      %1550 = vmatpush1.bf16.msra.mxu0 %v1190
      %1551 = vmatprep.subr.bf16.mxu0 0
      %1552 = vmatpush1.bf16.msra.mxu0 %v1193
      %1553 = vmatprep.subr.bf16.mxu0 0
      %1554 = vmatpush1.bf16.msra.mxu0 %v1196
      %1555 = vmatprep.subr.bf16.mxu0 0
      %1556 = vmatpush1.bf16.msra.mxu0 %v1199
      %1557 = vmatprep.subr.bf16.mxu0 0
      %1558 = vmatpush1.bf16.msra.mxu0 %v1202
      %1559 = vmatprep.subr.bf16.mxu0 0
      %1560 = vmatpush1.bf16.msra.mxu0 %v1205
      %1561 = vmatprep.subr.bf16.mxu0 0
      %1562 = vmatpush1.bf16.msra.mxu0 %v1208
      %1563 = vmatprep.mubr.bf16.mxu0 %v785
      %1564 = vmatmul.mubr.bf16.gmra.mrb[0].mxu0 %v784
      %v1565 = vpop.f32.mrb[0].mxu0
      %v1566 = vadd.f32 %v917, %v1565
      %v1567 = vpop.f32.mrb[0].mxu0
      %v1568 = vpop.f32.mrb[0].mxu0
      %v1569 = vadd.f32 %v917, %v1568
      %v1570 = vpop.f32.mrb[0].mxu0
      %1571 = vmatprep.mubr.bf16.mxu0 %v788
      %1572 = vmatmul.mubr.bf16.gmra.mrb[0].mxu0 %v787
      %v1573 = vpop.f32.mrb[0].mxu0
      %v1574 = vadd.f32 %v917, %v1573
      %v1575 = vpop.f32.mrb[0].mxu0
      %v1576 = vpop.f32.mrb[0].mxu0
      %v1577 = vadd.f32 %v917, %v1576
      %v1578 = vpop.f32.mrb[0].mxu0
      %1579 = vmatprep.mubr.bf16.mxu0 %v791
      %1580 = vmatmul.mubr.bf16.gmra.mrb[0].mxu0 %v790
      %v1581 = vpop.f32.mrb[0].mxu0
      %v1582 = vadd.f32 %v917, %v1581
      %v1583 = vpop.f32.mrb[0].mxu0
      %v1584 = vpop.f32.mrb[0].mxu0
      %v1585 = vadd.f32 %v917, %v1584
      %v1586 = vpop.f32.mrb[0].mxu0
      %1587 = vmatprep.mubr.bf16.mxu0 %v794
      %1588 = vmatmul.mubr.bf16.gmra.mrb[0].mxu0 %v793
      %v1589 = vpop.f32.mrb[0].mxu0
      %v1590 = vadd.f32 %v917, %v1589
      %v1591 = vpop.f32.mrb[0].mxu0
      %v1592 = vpop.f32.mrb[0].mxu0
      %v1593 = vadd.f32 %v917, %v1592
      %v1594 = vpop.f32.mrb[0].mxu0
      %1595 = vmatprep.mubr.bf16.mxu0 %v797
      %1596 = vmatmul.mubr.bf16.gmra.mrb[0].mxu0 %v796
      %v1597 = vpop.f32.mrb[0].mxu0
      %v1598 = vadd.f32 %v917, %v1597
      %v1599 = vpop.f32.mrb[0].mxu0
      %v1600 = vpop.f32.mrb[0].mxu0
      %v1601 = vadd.f32 %v917, %v1600
      %v1602 = vpop.f32.mrb[0].mxu0
      %1603 = vmatprep.mubr.bf16.mxu0 %v800
      %1604 = vmatmul.mubr.bf16.gmra.mrb[0].mxu0 %v799
      %v1605 = vpop.f32.mrb[0].mxu0
      %v1606 = vadd.f32 %v917, %v1605
      %v1607 = vpop.f32.mrb[0].mxu0
      %v1608 = vpop.f32.mrb[0].mxu0
      %v1609 = vadd.f32 %v917, %v1608
      %v1610 = vpop.f32.mrb[0].mxu0
      %1611 = vmatprep.mubr.bf16.mxu0 %v803
      %1612 = vmatmul.mubr.bf16.gmra.mrb[0].mxu0 %v802
      %v1613 = vpop.f32.mrb[0].mxu0
      %v1614 = vadd.f32 %v917, %v1613
      %v1615 = vpop.f32.mrb[0].mxu0
      %v1616 = vpop.f32.mrb[0].mxu0
      %v1617 = vadd.f32 %v917, %v1616
      %v1618 = vpop.f32.mrb[0].mxu0
      %1619 = vmatprep.mubr.bf16.mxu0 %v806
      %1620 = vmatmul.mubr.bf16.gmra.mrb[0].mxu0 %v805
      %v1621 = vpop.f32.mrb[0].mxu0
      %v1622 = vadd.f32 %v917, %v1621
      %v1623 = vpop.f32.mrb[0].mxu0
      %v1624 = vpop.f32.mrb[0].mxu0
      %v1625 = vadd.f32 %v917, %v1624
      %v1626 = vpop.f32.mrb[0].mxu0
      %1627 = vdwg.mxu0
      %1628 = vmatprep.subr.bf16.mxu0 0
      %1629 = vmatpush1.bf16.msra.mxu0 %v1211
      %1630 = vmatprep.subr.bf16.mxu0 0
      %1631 = vmatpush1.bf16.msra.mxu0 %v1214
      %1632 = vmatprep.subr.bf16.mxu0 0
      %1633 = vmatpush1.bf16.msra.mxu0 %v1217
      %1634 = vmatprep.subr.bf16.mxu0 0
      %1635 = vmatpush1.bf16.msra.mxu0 %v1220
      %1636 = vmatprep.subr.bf16.mxu0 0
      %1637 = vmatpush1.bf16.msra.mxu0 %v1223
      %1638 = vmatprep.subr.bf16.mxu0 0
      %1639 = vmatpush1.bf16.msra.mxu0 %v1226
      %1640 = vmatprep.subr.bf16.mxu0 0
      %1641 = vmatpush1.bf16.msra.mxu0 %v1229
      %1642 = vmatprep.subr.bf16.mxu0 0
      %1643 = vmatpush1.bf16.msra.mxu0 %v1232
      %1644 = vmatprep.subr.bf16.mxu0 0
      %1645 = vmatpush1.bf16.msra.mxu0 0
      %1646 = vmatprep.subr.bf16.mxu0 0
      %1647 = vmatpush1.bf16.msra.mxu0 0
      %1648 = vmatprep.subr.bf16.mxu0 0
      %1649 = vmatpush1.bf16.msra.mxu0 0
      %1650 = vmatprep.subr.bf16.mxu0 0
      %1651 = vmatpush1.bf16.msra.mxu0 0
      %1652 = vmatprep.subr.bf16.mxu0 0
      %1653 = vmatpush1.bf16.msra.mxu0 0
      %1654 = vmatprep.subr.bf16.mxu0 0
      %1655 = vmatpush1.bf16.msra.mxu0 0
      %1656 = vmatprep.subr.bf16.mxu0 0
      %1657 = vmatpush1.bf16.msra.mxu0 0
      %1658 = vmatprep.subr.bf16.mxu0 0
      %1659 = vmatpush1.bf16.msra.mxu0 0
      %1660 = vmatprep.mubr.bf16.mxu0 0
      %1661 = vmatmul.mubr.bf16.gmra.mrb[0].mxu0 %v786
      %v1662 = vpop.f32.mrb[0].mxu0
      %v1663 = vadd.f32 %v1566, %v1662
      %v1664 = vpop.f32.mrb[0].mxu0
      %v1665 = vpop.f32.mrb[0].mxu0
      %v1666 = vadd.f32 %v1569, %v1665
      %v1667 = vpop.f32.mrb[0].mxu0
      %1668 = vmatprep.mubr.bf16.mxu0 0
      %1669 = vmatmul.mubr.bf16.gmra.mrb[0].mxu0 %v789
      %v1670 = vpop.f32.mrb[0].mxu0
      %v1671 = vadd.f32 %v1574, %v1670
      %v1672 = vpop.f32.mrb[0].mxu0
      %v1673 = vpop.f32.mrb[0].mxu0
      %v1674 = vadd.f32 %v1577, %v1673
      %v1675 = vpop.f32.mrb[0].mxu0
      %1676 = vmatprep.mubr.bf16.mxu0 0
      %1677 = vmatmul.mubr.bf16.gmra.mrb[0].mxu0 %v792
      %v1678 = vpop.f32.mrb[0].mxu0
      %v1679 = vadd.f32 %v1582, %v1678
      %v1680 = vpop.f32.mrb[0].mxu0
      %v1681 = vpop.f32.mrb[0].mxu0
      %v1682 = vadd.f32 %v1585, %v1681
      %v1683 = vpop.f32.mrb[0].mxu0
      %1684 = vmatprep.mubr.bf16.mxu0 0
      %1685 = vmatmul.mubr.bf16.gmra.mrb[0].mxu0 %v795
      %v1686 = vpop.f32.mrb[0].mxu0
      %v1687 = vadd.f32 %v1590, %v1686
      %v1688 = vpop.f32.mrb[0].mxu0
      %v1689 = vpop.f32.mrb[0].mxu0
      %v1690 = vadd.f32 %v1593, %v1689
      %v1691 = vpop.f32.mrb[0].mxu0
      %1692 = vmatprep.mubr.bf16.mxu0 0
      %1693 = vmatmul.mubr.bf16.gmra.mrb[0].mxu0 %v798
      %v1694 = vpop.f32.mrb[0].mxu0
      %v1695 = vadd.f32 %v1598, %v1694
      %v1696 = vpop.f32.mrb[0].mxu0
      %v1697 = vpop.f32.mrb[0].mxu0
      %v1698 = vadd.f32 %v1601, %v1697
      %v1699 = vpop.f32.mrb[0].mxu0
      %1700 = vmatprep.mubr.bf16.mxu0 0
      %1701 = vmatmul.mubr.bf16.gmra.mrb[0].mxu0 %v801
      %v1702 = vpop.f32.mrb[0].mxu0
      %v1703 = vadd.f32 %v1606, %v1702
      %v1704 = vpop.f32.mrb[0].mxu0
      %v1705 = vpop.f32.mrb[0].mxu0
      %v1706 = vadd.f32 %v1609, %v1705
      %v1707 = vpop.f32.mrb[0].mxu0
      %1708 = vmatprep.mubr.bf16.mxu0 0
      %1709 = vmatmul.mubr.bf16.gmra.mrb[0].mxu0 %v804
      %v1710 = vpop.f32.mrb[0].mxu0
      %v1711 = vadd.f32 %v1614, %v1710
      %v1712 = vpop.f32.mrb[0].mxu0
      %v1713 = vpop.f32.mrb[0].mxu0
      %v1714 = vadd.f32 %v1617, %v1713
      %v1715 = vpop.f32.mrb[0].mxu0
      %1716 = vmatprep.mubr.bf16.mxu0 0
      %1717 = vmatmul.mubr.bf16.gmra.mrb[0].mxu0 %v807
      %v1718 = vpop.f32.mrb[0].mxu0
      %v1719 = vadd.f32 %v1622, %v1718
      %v1720 = vpop.f32.mrb[0].mxu0
      %v1721 = vpop.f32.mrb[0].mxu0
      %v1722 = vadd.f32 %v1625, %v1721
      %v1723 = vpop.f32.mrb[0].mxu0
      %1724 = vdwg.mxu0
      %v1725 = vmax.f32 %v1453, 0.0
      %v1726 = vmax.f32 %v1455, 0.0
      %v1727 = vmax.f32 %v1663, 0.0
      %v1728 = vmax.f32 %v1457, 0.0
      %v1729 = vmax.f32 %v1459, 0.0
      %v1730 = vmax.f32 %v1666, 0.0
      %v1731 = vmax.f32 %v1463, 0.0
      %v1732 = vmax.f32 %v1465, 0.0
      %v1733 = vmax.f32 %v1671, 0.0
      %v1734 = vmax.f32 %v1467, 0.0
      %v1735 = vmax.f32 %v1469, 0.0
      %v1736 = vmax.f32 %v1674, 0.0
      %v1737 = vmax.f32 %v1473, 0.0
      %v1738 = vmax.f32 %v1475, 0.0
      %v1739 = vmax.f32 %v1679, 0.0
      %v1740 = vmax.f32 %v1477, 0.0
      %v1741 = vmax.f32 %v1479, 0.0
      %v1742 = vmax.f32 %v1682, 0.0
      %v1743 = vmax.f32 %v1483, 0.0
      %v1744 = vmax.f32 %v1485, 0.0
      %v1745 = vmax.f32 %v1687, 0.0
      %v1746 = vmax.f32 %v1487, 0.0
      %v1747 = vmax.f32 %v1489, 0.0
      %v1748 = vmax.f32 %v1690, 0.0
      %v1749 = vmax.f32 %v1493, 0.0
      %v1750 = vmax.f32 %v1495, 0.0
      %v1751 = vmax.f32 %v1695, 0.0
      %v1752 = vmax.f32 %v1497, 0.0
      %v1753 = vmax.f32 %v1499, 0.0
      %v1754 = vmax.f32 %v1698, 0.0
      %v1755 = vmax.f32 %v1503, 0.0
      %v1756 = vmax.f32 %v1505, 0.0
      %v1757 = vmax.f32 %v1703, 0.0
      %v1758 = vmax.f32 %v1507, 0.0
      %v1759 = vmax.f32 %v1509, 0.0
      %v1760 = vmax.f32 %v1706, 0.0
      %v1761 = vmax.f32 %v1513, 0.0
      %v1762 = vmax.f32 %v1515, 0.0
      %v1763 = vmax.f32 %v1711, 0.0
      %v1764 = vmax.f32 %v1517, 0.0
      %v1765 = vmax.f32 %v1519, 0.0
      %v1766 = vmax.f32 %v1714, 0.0
      %v1767 = vmax.f32 %v1523, 0.0
      %v1768 = vmax.f32 %v1525, 0.0
      %v1769 = vmax.f32 %v1719, 0.0
      %v1770 = vmax.f32 %v1527, 0.0
      %v1771 = vmax.f32 %v1529, 0.0
      %v1772 = vmax.f32 %v1722, 0.0
      %v1773 = vpack.c.bf16 %v1728, %v1725
      %v1774 = vpack.c.bf16 %v1729, %v1726
      %v1775 = vpack.c.bf16 %v1730, %v1727
      %v1776 = vpack.c.bf16 %v1734, %v1731
      %v1777 = vpack.c.bf16 %v1735, %v1732
      %v1778 = vpack.c.bf16 %v1736, %v1733
      %v1779 = vpack.c.bf16 %v1740, %v1737
      %v1780 = vpack.c.bf16 %v1741, %v1738
      %v1781 = vpack.c.bf16 %v1742, %v1739
      %v1782 = vpack.c.bf16 %v1746, %v1743
      %v1783 = vpack.c.bf16 %v1747, %v1744
      %v1784 = vpack.c.bf16 %v1748, %v1745
      %v1785 = vpack.c.bf16 %v1752, %v1749
      %v1786 = vpack.c.bf16 %v1753, %v1750
      %v1787 = vpack.c.bf16 %v1754, %v1751
      %v1788 = vpack.c.bf16 %v1758, %v1755
      %v1789 = vpack.c.bf16 %v1759, %v1756
      %v1790 = vpack.c.bf16 %v1760, %v1757
      %v1791 = vpack.c.bf16 %v1764, %v1761
      %v1792 = vpack.c.bf16 %v1765, %v1762
      %v1793 = vpack.c.bf16 %v1766, %v1763
      %v1794 = vpack.c.bf16 %v1770, %v1767
      %v1795 = vpack.c.bf16 %v1771, %v1768
      %v1796 = vpack.c.bf16 %v1772, %v1769
      %v1797 = vld [vmem:[%s5] sm:$0xff]
      %v1798 = vld [vmem:[%s5 + $0x8] sm:$0xff]
      %v1799 = vld [vmem:[%s5 + $0x10] sm:$0xff]
      %v1800 = vld [vmem:[%s5 + $0x18] sm:$0xf]
      %v1801 = vld [vmem:[%s5 + $0x1c] sm:$0xff]
      %v1802 = vld [vmem:[%s5 + $0x24] sm:$0xff]
      %v1803 = vld [vmem:[%s5 + $0x2c] sm:$0xff]
      %v1804 = vld [vmem:[%s5 + $0x34] sm:$0xf]
      %v1805 = vld [vmem:[%s5 + $0x38] sm:$0xff]
      %v1806 = vld [vmem:[%s5 + $0x40] sm:$0xff]
      %v1807 = vld [vmem:[%s5 + $0x48] sm:$0xff]
      %v1808 = vld [vmem:[%s5 + $0x50] sm:$0xf]
      %v1809 = vld [vmem:[%s5 + $0x54] sm:$0xff]
      %v1810 = vld [vmem:[%s5 + $0x5c] sm:$0xff]
      %v1811 = vld [vmem:[%s5 + $0x64] sm:$0xff]
      %v1812 = vld [vmem:[%s5 + $0x6c] sm:$0xf]
      %v1813 = vld [vmem:[%s5 + $0x70] sm:$0xff]
      %v1814 = vld [vmem:[%s5 + $0x78] sm:$0xff]
      %v1815 = vld [vmem:[%s5 + $0x80] sm:$0xff]
      %v1816 = vld [vmem:[%s5 + $0x88] sm:$0xf]
      %v1817 = vld [vmem:[%s5 + $0x8c] sm:$0xff]
      %v1818 = vld [vmem:[%s5 + $0x94] sm:$0xff]
      %v1819 = vld [vmem:[%s5 + $0x9c] sm:$0xff]
      %v1820 = vld [vmem:[%s5 + $0xa4] sm:$0xf]
      %v1821 = vld [vmem:[%s5 + $0xa8] sm:$0xff]
      %v1822 = vld [vmem:[%s5 + $0xb0] sm:$0xff]
      %v1823 = vld [vmem:[%s5 + $0xb8] sm:$0xff]
      %v1824 = vld [vmem:[%s5 + $0xc0] sm:$0xf]
      %v1825 = vld [vmem:[%s5 + $0xc4] sm:$0xff]
      %v1826 = vld [vmem:[%s5 + $0xcc] sm:$0xff]
      %v1827 = vld [vmem:[%s5 + $0xd4] sm:$0xff]
      %v1828 = vld [vmem:[%s5 + $0xdc] sm:$0xf]
      %v1829 = vld [vmem:[%s5 + $0xe0] sm:$0xff]
      %v1830 = vld [vmem:[%s5 + $0xe8] sm:$0xff]
      %v1831 = vld [vmem:[%s5 + $0xf0] sm:$0xff]
      %v1832 = vld [vmem:[%s5 + $0xf8] sm:$0xf]
      %v1833 = vld [vmem:[%s5 + $0xfc] sm:$0xff]
      %v1834 = vld [vmem:[%s5 + $0x104] sm:$0xff]
      %v1835 = vld [vmem:[%s5 + $0x10c] sm:$0xff]
      %v1836 = vld [vmem:[%s5 + $0x114] sm:$0xf]
      %v1837 = vld [vmem:[%s5 + $0x118] sm:$0xff]
      %v1838 = vld [vmem:[%s5 + $0x120] sm:$0xff]
      %v1839 = vld [vmem:[%s5 + $0x128] sm:$0xff]
      %v1840 = vld [vmem:[%s5 + $0x130] sm:$0xf]
      %v1841 = vld [vmem:[%s5 + $0x134] sm:$0xff]
      %v1842 = vld [vmem:[%s5 + $0x13c] sm:$0xff]
      %v1843 = vld [vmem:[%s5 + $0x144] sm:$0xff]
      %v1844 = vld [vmem:[%s5 + $0x14c] sm:$0xf]
      %v1845 = vld [vmem:[%s5 + $0x150] sm:$0xff]
      %v1846 = vld [vmem:[%s5 + $0x158] sm:$0xff]
      %v1847 = vld [vmem:[%s5 + $0x160] sm:$0xff]
      %v1848 = vld [vmem:[%s5 + $0x168] sm:$0xf]
      %v1849 = vld [vmem:[%s5 + $0x16c] sm:$0xff]
      %v1850 = vld [vmem:[%s5 + $0x174] sm:$0xff]
      %v1851 = vld [vmem:[%s5 + $0x17c] sm:$0xff]
      %v1852 = vld [vmem:[%s5 + $0x184] sm:$0xf]
      %v1853 = vld [vmem:[%s5 + $0x188] sm:$0xff]
      %v1854 = vld [vmem:[%s5 + $0x190] sm:$0xff]
      %v1855 = vld [vmem:[%s5 + $0x198] sm:$0xff]
      %v1856 = vld [vmem:[%s5 + $0x1a0] sm:$0xf]
      %v1857 = vld [vmem:[%s5 + $0x1a4] sm:$0xff]
      %v1858 = vld [vmem:[%s5 + $0x1ac] sm:$0xff]
      %v1859 = vld [vmem:[%s5 + $0x1b4] sm:$0xff]
      %v1860 = vld [vmem:[%s5 + $0x1bc] sm:$0xf]
      %v1861 = vld [vmem:[%s5 + $0x1c0] sm:$0xff]
      %v1862 = vld [vmem:[%s5 + $0x1c8] sm:$0xff]
      %v1863 = vld [vmem:[%s5 + $0x1d0] sm:$0xff]
      %v1864 = vld [vmem:[%s5 + $0x1d8] sm:$0xf]
      %v1865 = vld [vmem:[%s5 + $0x1dc] sm:$0xff]
      %v1866 = vld [vmem:[%s5 + $0x1e4] sm:$0xff]
      %v1867 = vld [vmem:[%s5 + $0x1ec] sm:$0xff]
      %v1868 = vld [vmem:[%s5 + $0x1f4] sm:$0xf]
      %v1869 = vld [vmem:[%s5 + $0x1f8] sm:$0xff]
      %v1870 = vld [vmem:[%s5 + $0x200] sm:$0xff]
      %v1871 = vld [vmem:[%s5 + $0x208] sm:$0xff]
      %v1872 = vld [vmem:[%s5 + $0x210] sm:$0xf]
      %v1873 = vld [vmem:[%s5 + $0x214] sm:$0xff]
      %v1874 = vld [vmem:[%s5 + $0x21c] sm:$0xff]
      %v1875 = vld [vmem:[%s5 + $0x224] sm:$0xff]
      %v1876 = vld [vmem:[%s5 + $0x22c] sm:$0xf]
      %v1877 = vld [vmem:[%s5 + $0x230] sm:$0xff]
      %v1878 = vld [vmem:[%s5 + $0x238] sm:$0xff]
      %v1879 = vld [vmem:[%s5 + $0x240] sm:$0xff]
      %v1880 = vld [vmem:[%s5 + $0x248] sm:$0xf]
      %v1881 = vld [vmem:[%s5 + $0x24c] sm:$0xff]
      %v1882 = vld [vmem:[%s5 + $0x254] sm:$0xff]
      %v1883 = vld [vmem:[%s5 + $0x25c] sm:$0xff]
      %v1884 = vld [vmem:[%s5 + $0x264] sm:$0xf]
      %v1885 = vld [vmem:[%s5 + $0x268] sm:$0xff]
      %v1886 = vld [vmem:[%s5 + $0x270] sm:$0xff]
      %v1887 = vld [vmem:[%s5 + $0x278] sm:$0xff]
      %v1888 = vld [vmem:[%s5 + $0x280] sm:$0xf]
      %v1889 = vld [vmem:[%s5 + $0x284] sm:$0xff]
      %v1890 = vld [vmem:[%s5 + $0x28c] sm:$0xff]
      %v1891 = vld [vmem:[%s5 + $0x294] sm:$0xff]
      %v1892 = vld [vmem:[%s5 + $0x29c] sm:$0xf]
      %v1893 = vld [vmem:[%s5 + $0x2a0] sm:$0xff]
      %v1894 = vld [vmem:[%s5 + $0x2a8] sm:$0xff]
      %v1895 = vld [vmem:[%s5 + $0x2b0] sm:$0xff]
      %v1896 = vld [vmem:[%s5 + $0x2b8] sm:$0xf]
      %v1897 = vld [vmem:[%s5 + $0x2bc] sm:$0xff]
      %v1898 = vld [vmem:[%s5 + $0x2c4] sm:$0xff]
      %v1899 = vld [vmem:[%s5 + $0x2cc] sm:$0xff]
      %v1900 = vld [vmem:[%s5 + $0x2d4] sm:$0xf]
      %v1901 = vld [vmem:[%s5 + $0x2d8] sm:$0xff]
      %v1902 = vld [vmem:[%s5 + $0x2e0] sm:$0xff]
      %v1903 = vld [vmem:[%s5 + $0x2e8] sm:$0xff]
      %v1904 = vld [vmem:[%s5 + $0x2f0] sm:$0xf]
      %v1905 = vld [vmem:[%s5 + $0x2f4] sm:$0xff]
      %v1906 = vld [vmem:[%s5 + $0x2fc] sm:$0xff]
      %v1907 = vld [vmem:[%s5 + $0x304] sm:$0xff]
      %v1908 = vld [vmem:[%s5 + $0x30c] sm:$0xf]
      %v1909 = vld [vmem:[%s5 + $0x310] sm:$0xff]
      %v1910 = vld [vmem:[%s5 + $0x318] sm:$0xff]
      %v1911 = vld [vmem:[%s5 + $0x320] sm:$0xff]
      %v1912 = vld [vmem:[%s5 + $0x328] sm:$0xf]
      %v1913 = vld [vmem:[%s5 + $0x32c] sm:$0xff]
      %v1914 = vld [vmem:[%s5 + $0x334] sm:$0xff]
      %v1915 = vld [vmem:[%s5 + $0x33c] sm:$0xff]
      %v1916 = vld [vmem:[%s5 + $0x344] sm:$0xf]
      %v1917 = vld [vmem:[%s5 + $0x348] sm:$0xff]
      %v1918 = vld [vmem:[%s5 + $0x350] sm:$0xff]
      %v1919 = vld [vmem:[%s5 + $0x358] sm:$0xff]
      %v1920 = vld [vmem:[%s5 + $0x360] sm:$0xf]
      %v1921 = vld [vmem:[%s5 + $0x364] sm:$0xff]
      %v1922 = vld [vmem:[%s5 + $0x36c] sm:$0xff]
      %v1923 = vld [vmem:[%s5 + $0x374] sm:$0xff]
      %v1924 = vld [vmem:[%s5 + $0x37c] sm:$0xf]
      %v1925 = vld [vmem:[%s5 + $0x380] sm:$0xff]
      %v1926 = vld [vmem:[%s5 + $0x388] sm:$0xff]
      %v1927 = vld [vmem:[%s5 + $0x390] sm:$0xff]
      %v1928 = vld [vmem:[%s5 + $0x398] sm:$0xf]
      %v1929 = vld [vmem:[%s5 + $0x39c] sm:$0xff]
      %v1930 = vld [vmem:[%s5 + $0x3a4] sm:$0xff]
      %v1931 = vld [vmem:[%s5 + $0x3ac] sm:$0xff]
      %v1932 = vld [vmem:[%s5 + $0x3b4] sm:$0xf]
      %v1933 = vld [vmem:[%s5 + $0x3b8] sm:$0xff]
      %v1934 = vld [vmem:[%s5 + $0x3c0] sm:$0xff]
      %v1935 = vld [vmem:[%s5 + $0x3c8] sm:$0xff]
      %v1936 = vld [vmem:[%s5 + $0x3d0] sm:$0xf]
      %v1937 = vld [vmem:[%s5 + $0x3d4] sm:$0xff]
      %v1938 = vld [vmem:[%s5 + $0x3dc] sm:$0xff]
      %v1939 = vld [vmem:[%s5 + $0x3e4] sm:$0xff]
      %v1940 = vld [vmem:[%s5 + $0x3ec] sm:$0xf]
      %v1941 = vld [vmem:[%s5 + $0x3f0] sm:$0xff]
      %v1942 = vld [vmem:[%s5 + $0x3f8] sm:$0xff]
      %v1943 = vld [vmem:[%s5 + $0x400] sm:$0xff]
      %v1944 = vld [vmem:[%s5 + $0x408] sm:$0xf]
      %v1945 = vld [vmem:[%s5 + $0x40c] sm:$0xff]
      %v1946 = vld [vmem:[%s5 + $0x414] sm:$0xff]
      %v1947 = vld [vmem:[%s5 + $0x41c] sm:$0xff]
      %v1948 = vld [vmem:[%s5 + $0x424] sm:$0xf]
      %v1949 = vld [vmem:[%s5 + $0x428] sm:$0xff]
      %v1950 = vld [vmem:[%s5 + $0x430] sm:$0xff]
      %v1951 = vld [vmem:[%s5 + $0x438] sm:$0xff]
      %v1952 = vld [vmem:[%s5 + $0x440] sm:$0xf]
      %v1953 = vld [vmem:[%s5 + $0x444] sm:$0xff]
      %v1954 = vld [vmem:[%s5 + $0x44c] sm:$0xff]
      %v1955 = vld [vmem:[%s5 + $0x454] sm:$0xff]
      %v1956 = vld [vmem:[%s5 + $0x45c] sm:$0xf]
      %v1957 = vld [vmem:[%s5 + $0x460] sm:$0xff]
      %v1958 = vld [vmem:[%s5 + $0x468] sm:$0xff]
      %v1959 = vld [vmem:[%s5 + $0x470] sm:$0xff]
      %v1960 = vld [vmem:[%s5 + $0x478] sm:$0xf]
      %v1961 = vld [vmem:[%s5 + $0x47c] sm:$0xff]
      %v1962 = vld [vmem:[%s5 + $0x484] sm:$0xff]
      %v1963 = vld [vmem:[%s5 + $0x48c] sm:$0xff]
      %v1964 = vld [vmem:[%s5 + $0x494] sm:$0xf]
      %v1965 = vld [vmem:[%s5 + $0x498] sm:$0xff]
      %v1966 = vld [vmem:[%s5 + $0x4a0] sm:$0xff]
      %v1967 = vld [vmem:[%s5 + $0x4a8] sm:$0xff]
      %v1968 = vld [vmem:[%s5 + $0x4b0] sm:$0xf]
      %v1969 = vld [vmem:[%s5 + $0x4b4] sm:$0xff]
      %v1970 = vld [vmem:[%s5 + $0x4bc] sm:$0xff]
      %v1971 = vld [vmem:[%s5 + $0x4c4] sm:$0xff]
      %v1972 = vld [vmem:[%s5 + $0x4cc] sm:$0xf]
      %v1973 = vld [vmem:[%s5 + $0x4d0] sm:$0xff]
      %v1974 = vld [vmem:[%s5 + $0x4d8] sm:$0xff]
      %v1975 = vld [vmem:[%s5 + $0x4e0] sm:$0xff]
      %v1976 = vld [vmem:[%s5 + $0x4e8] sm:$0xf]
      %v1977 = vld [vmem:[%s5 + $0x4ec] sm:$0xff]
      %v1978 = vld [vmem:[%s5 + $0x4f4] sm:$0xff]
      %v1979 = vld [vmem:[%s5 + $0x4fc] sm:$0xff]
      %v1980 = vld [vmem:[%s5 + $0x504] sm:$0xf]
      %v1981 = vld [vmem:[%s5 + $0x508] sm:$0xff]
      %v1982 = vld [vmem:[%s5 + $0x510] sm:$0xff]
      %v1983 = vld [vmem:[%s5 + $0x518] sm:$0xff]
      %v1984 = vld [vmem:[%s5 + $0x520] sm:$0xf]
      %v1985 = vld [vmem:[%s5 + $0x524] sm:$0xff]
      %v1986 = vld [vmem:[%s5 + $0x52c] sm:$0xff]
      %v1987 = vld [vmem:[%s5 + $0x534] sm:$0xff]
      %v1988 = vld [vmem:[%s5 + $0x53c] sm:$0xf]
      %v1989 = vld [vmem:[%s6] sm:$0xff]
      %v1991 = vlaneseq
      %v1992 = vshrl.u32 %v1991, 7
      %v1993 = vsub.s32 0, %v1992
      %v1994 = vrot.slane %v1989, %v1993
      %v1995 = vlaneseq
      %v1996 = vshrl.u32 %v1995, 7
      %v1997 = vsub.s32 1, %v1996
      %v1998 = vrot.slane %v1989, %v1997
      %v1999 = vlaneseq
      %v2000 = vshrl.u32 %v1999, 7
      %v2001 = vsub.s32 2, %v2000
      %v2002 = vrot.slane %v1989, %v2001
      %v2003 = vlaneseq
      %v2004 = vshrl.u32 %v2003, 7
      %v2005 = vsub.s32 3, %v2004
      %v2006 = vrot.slane %v1989, %v2005
      %v2007 = vlaneseq
      %v2008 = vshrl.u32 %v2007, 7
      %v2009 = vsub.s32 4, %v2008
      %v2010 = vrot.slane %v1989, %v2009
      %v2011 = vlaneseq
      %v2012 = vshrl.u32 %v2011, 7
      %v2013 = vsub.s32 5, %v2012
      %v2014 = vrot.slane %v1989, %v2013
      %v2015 = vlaneseq
      %v2016 = vshrl.u32 %v2015, 7
      %v2017 = vsub.s32 6, %v2016
      %v2018 = vrot.slane %v1989, %v2017
      %v2218 = vunpack.c.l.b16 %v1797
      %v2219 = vunpack.c.h.b16 %v1797
      %v2220 = vunpack.c.l.b16 %v1798
      %v2221 = vunpack.c.h.b16 %v1798
      %v2222 = vunpack.c.l.b16 %v1799
      %v2223 = vunpack.c.h.b16 %v1799
      %v2224 = vunpack.c.l.b16 %v1800
      %v2225 = vunpack.c.l.b16 %v1801
      %v2226 = vunpack.c.h.b16 %v1801
      %v2227 = vunpack.c.l.b16 %v1802
      %v2228 = vunpack.c.h.b16 %v1802
      %v2229 = vunpack.c.l.b16 %v1803
      %v2230 = vunpack.c.h.b16 %v1803
      %v2231 = vunpack.c.l.b16 %v1804
      %v2232 = vunpack.c.l.b16 %v1805
      %v2233 = vunpack.c.h.b16 %v1805
      %v2234 = vunpack.c.l.b16 %v1806
      %v2235 = vunpack.c.h.b16 %v1806
      %v2236 = vunpack.c.l.b16 %v1807
      %v2237 = vunpack.c.h.b16 %v1807
      %v2238 = vunpack.c.l.b16 %v1808
      %v2239 = vunpack.c.l.b16 %v1809
      %v2240 = vunpack.c.h.b16 %v1809
      %v2241 = vunpack.c.l.b16 %v1810
      %v2242 = vunpack.c.h.b16 %v1810
      %v2243 = vunpack.c.l.b16 %v1811
      %v2244 = vunpack.c.h.b16 %v1811
      %v2245 = vunpack.c.l.b16 %v1812
      %v2246 = vunpack.c.l.b16 %v1813
      %v2247 = vunpack.c.h.b16 %v1813
      %v2248 = vunpack.c.l.b16 %v1814
      %v2249 = vunpack.c.h.b16 %v1814
      %v2250 = vunpack.c.l.b16 %v1815
      %v2251 = vunpack.c.h.b16 %v1815
      %v2252 = vunpack.c.l.b16 %v1816
      %v2253 = vunpack.c.l.b16 %v1817
      %v2254 = vunpack.c.h.b16 %v1817
      %v2255 = vunpack.c.l.b16 %v1818
      %v2256 = vunpack.c.h.b16 %v1818
      %v2257 = vunpack.c.l.b16 %v1819
      %v2258 = vunpack.c.h.b16 %v1819
      %v2259 = vunpack.c.l.b16 %v1820
      %v2260 = vunpack.c.l.b16 %v1821
      %v2261 = vunpack.c.h.b16 %v1821
      %v2262 = vunpack.c.l.b16 %v1822
      %v2263 = vunpack.c.h.b16 %v1822
      %v2264 = vunpack.c.l.b16 %v1823
      %v2265 = vunpack.c.h.b16 %v1823
      %v2266 = vunpack.c.l.b16 %v1824
      %v2267 = vunpack.c.l.b16 %v1825
      %v2268 = vunpack.c.h.b16 %v1825
      %v2269 = vunpack.c.l.b16 %v1826
      %v2270 = vunpack.c.h.b16 %v1826
      %v2271 = vunpack.c.l.b16 %v1827
      %v2272 = vunpack.c.h.b16 %v1827
      %v2273 = vunpack.c.l.b16 %v1828
      %v2274 = vunpack.c.l.b16 %v1829
      %v2275 = vunpack.c.h.b16 %v1829
      %v2276 = vunpack.c.l.b16 %v1830
      %v2277 = vunpack.c.h.b16 %v1830
      %v2278 = vunpack.c.l.b16 %v1831
      %v2279 = vunpack.c.h.b16 %v1831
      %v2280 = vunpack.c.l.b16 %v1832
      %v2281 = vunpack.c.l.b16 %v1833
      %v2282 = vunpack.c.h.b16 %v1833
      %v2283 = vunpack.c.l.b16 %v1834
      %v2284 = vunpack.c.h.b16 %v1834
      %v2285 = vunpack.c.l.b16 %v1835
      %v2286 = vunpack.c.h.b16 %v1835
      %v2287 = vunpack.c.l.b16 %v1836
      %v2288 = vunpack.c.l.b16 %v1837
      %v2289 = vunpack.c.h.b16 %v1837
      %v2290 = vunpack.c.l.b16 %v1838
      %v2291 = vunpack.c.h.b16 %v1838
      %v2292 = vunpack.c.l.b16 %v1839
      %v2293 = vunpack.c.h.b16 %v1839
      %v2294 = vunpack.c.l.b16 %v1840
      %v2295 = vunpack.c.l.b16 %v1841
      %v2296 = vunpack.c.h.b16 %v1841
      %v2297 = vunpack.c.l.b16 %v1842
      %v2298 = vunpack.c.h.b16 %v1842
      %v2299 = vunpack.c.l.b16 %v1843
      %v2300 = vunpack.c.h.b16 %v1843
      %v2301 = vunpack.c.l.b16 %v1844
      %v2302 = vunpack.c.l.b16 %v1845
      %v2303 = vunpack.c.h.b16 %v1845
      %v2304 = vunpack.c.l.b16 %v1846
      %v2305 = vunpack.c.h.b16 %v1846
      %v2306 = vunpack.c.l.b16 %v1847
      %v2307 = vunpack.c.h.b16 %v1847
      %v2308 = vunpack.c.l.b16 %v1848
      %v2309 = vunpack.c.l.b16 %v1849
      %v2310 = vunpack.c.h.b16 %v1849
      %v2311 = vunpack.c.l.b16 %v1850
      %v2312 = vunpack.c.h.b16 %v1850
      %v2313 = vunpack.c.l.b16 %v1851
      %v2314 = vunpack.c.h.b16 %v1851
      %v2315 = vunpack.c.l.b16 %v1852
      %v2316 = vunpack.c.l.b16 %v1853
      %v2317 = vunpack.c.h.b16 %v1853
      %v2318 = vunpack.c.l.b16 %v1854
      %v2319 = vunpack.c.h.b16 %v1854
      %v2320 = vunpack.c.l.b16 %v1855
      %v2321 = vunpack.c.h.b16 %v1855
      %v2322 = vunpack.c.l.b16 %v1856
      %v2323 = vunpack.c.l.b16 %v1857
      %v2324 = vunpack.c.h.b16 %v1857
      %v2325 = vunpack.c.l.b16 %v1858
      %v2326 = vunpack.c.h.b16 %v1858
      %v2327 = vunpack.c.l.b16 %v1859
      %v2328 = vunpack.c.h.b16 %v1859
      %v2329 = vunpack.c.l.b16 %v1860
      %v2330 = vunpack.c.l.b16 %v1861
      %v2331 = vunpack.c.h.b16 %v1861
      %v2332 = vunpack.c.l.b16 %v1862
      %v2333 = vunpack.c.h.b16 %v1862
      %v2334 = vunpack.c.l.b16 %v1863
      %v2335 = vunpack.c.h.b16 %v1863
      %v2336 = vunpack.c.l.b16 %v1864
      %v2337 = vunpack.c.l.b16 %v1865
      %v2338 = vunpack.c.h.b16 %v1865
      %v2339 = vunpack.c.l.b16 %v1866
      %v2340 = vunpack.c.h.b16 %v1866
      %v2341 = vunpack.c.l.b16 %v1867
      %v2342 = vunpack.c.h.b16 %v1867
      %v2343 = vunpack.c.l.b16 %v1868
      %v2344 = vunpack.c.l.b16 %v1869
      %v2345 = vunpack.c.h.b16 %v1869
      %v2346 = vunpack.c.l.b16 %v1870
      %v2347 = vunpack.c.h.b16 %v1870
      %v2348 = vunpack.c.l.b16 %v1871
      %v2349 = vunpack.c.h.b16 %v1871
      %v2350 = vunpack.c.l.b16 %v1872
      %v2351 = vunpack.c.l.b16 %v1873
      %v2352 = vunpack.c.h.b16 %v1873
      %v2353 = vunpack.c.l.b16 %v1874
      %v2354 = vunpack.c.h.b16 %v1874
      %v2355 = vunpack.c.l.b16 %v1875
      %v2356 = vunpack.c.h.b16 %v1875
      %v2357 = vunpack.c.l.b16 %v1876
      %v2358 = vunpack.c.l.b16 %v1877
      %v2359 = vunpack.c.h.b16 %v1877
      %v2360 = vunpack.c.l.b16 %v1878
      %v2361 = vunpack.c.h.b16 %v1878
      %v2362 = vunpack.c.l.b16 %v1879
      %v2363 = vunpack.c.h.b16 %v1879
      %v2364 = vunpack.c.l.b16 %v1880
      %v2365 = vunpack.c.l.b16 %v1881
      %v2366 = vunpack.c.h.b16 %v1881
      %v2367 = vunpack.c.l.b16 %v1882
      %v2368 = vunpack.c.h.b16 %v1882
      %v2369 = vunpack.c.l.b16 %v1883
      %v2370 = vunpack.c.h.b16 %v1883
      %v2371 = vunpack.c.l.b16 %v1884
      %v2372 = vunpack.c.l.b16 %v1885
      %v2373 = vunpack.c.h.b16 %v1885
      %v2374 = vunpack.c.l.b16 %v1886
      %v2375 = vunpack.c.h.b16 %v1886
      %v2376 = vunpack.c.l.b16 %v1887
      %v2377 = vunpack.c.h.b16 %v1887
      %v2378 = vunpack.c.l.b16 %v1888
      %v2379 = vunpack.c.l.b16 %v1889
      %v2380 = vunpack.c.h.b16 %v1889
      %v2381 = vunpack.c.l.b16 %v1890
      %v2382 = vunpack.c.h.b16 %v1890
      %v2383 = vunpack.c.l.b16 %v1891
      %v2384 = vunpack.c.h.b16 %v1891
      %v2385 = vunpack.c.l.b16 %v1892
      %v2386 = vunpack.c.l.b16 %v1893
      %v2387 = vunpack.c.h.b16 %v1893
      %v2388 = vunpack.c.l.b16 %v1894
      %v2389 = vunpack.c.h.b16 %v1894
      %v2390 = vunpack.c.l.b16 %v1895
      %v2391 = vunpack.c.h.b16 %v1895
      %v2392 = vunpack.c.l.b16 %v1896
      %v2393 = vunpack.c.l.b16 %v1897
      %v2394 = vunpack.c.h.b16 %v1897
      %v2395 = vunpack.c.l.b16 %v1898
      %v2396 = vunpack.c.h.b16 %v1898
      %v2397 = vunpack.c.l.b16 %v1899
      %v2398 = vunpack.c.h.b16 %v1899
      %v2399 = vunpack.c.l.b16 %v1900
      %v2400 = vunpack.c.l.b16 %v1901
      %v2401 = vunpack.c.h.b16 %v1901
      %v2402 = vunpack.c.l.b16 %v1902
      %v2403 = vunpack.c.h.b16 %v1902
      %v2404 = vunpack.c.l.b16 %v1903
      %v2405 = vunpack.c.h.b16 %v1903
      %v2406 = vunpack.c.l.b16 %v1904
      %v2407 = vunpack.c.l.b16 %v1905
      %v2408 = vunpack.c.h.b16 %v1905
      %v2409 = vunpack.c.l.b16 %v1906
      %v2410 = vunpack.c.h.b16 %v1906
      %v2411 = vunpack.c.l.b16 %v1907
      %v2412 = vunpack.c.h.b16 %v1907
      %v2413 = vunpack.c.l.b16 %v1908
      %v2414 = vunpack.c.l.b16 %v1909
      %v2415 = vunpack.c.h.b16 %v1909
      %v2416 = vunpack.c.l.b16 %v1910
      %v2417 = vunpack.c.h.b16 %v1910
      %v2418 = vunpack.c.l.b16 %v1911
      %v2419 = vunpack.c.h.b16 %v1911
      %v2420 = vunpack.c.l.b16 %v1912
      %v2421 = vunpack.c.l.b16 %v1913
      %v2422 = vunpack.c.h.b16 %v1913
      %v2423 = vunpack.c.l.b16 %v1914
      %v2424 = vunpack.c.h.b16 %v1914
      %v2425 = vunpack.c.l.b16 %v1915
      %v2426 = vunpack.c.h.b16 %v1915
      %v2427 = vunpack.c.l.b16 %v1916
      %v2428 = vunpack.c.l.b16 %v1917
      %v2429 = vunpack.c.h.b16 %v1917
      %v2430 = vunpack.c.l.b16 %v1918
      %v2431 = vunpack.c.h.b16 %v1918
      %v2432 = vunpack.c.l.b16 %v1919
      %v2433 = vunpack.c.h.b16 %v1919
      %v2434 = vunpack.c.l.b16 %v1920
      %v2435 = vunpack.c.l.b16 %v1921
      %v2436 = vunpack.c.h.b16 %v1921
      %v2437 = vunpack.c.l.b16 %v1922
      %v2438 = vunpack.c.h.b16 %v1922
      %v2439 = vunpack.c.l.b16 %v1923
      %v2440 = vunpack.c.h.b16 %v1923
      %v2441 = vunpack.c.l.b16 %v1924
      %v2442 = vunpack.c.l.b16 %v1925
      %v2443 = vunpack.c.h.b16 %v1925
      %v2444 = vunpack.c.l.b16 %v1926
      %v2445 = vunpack.c.h.b16 %v1926
      %v2446 = vunpack.c.l.b16 %v1927
      %v2447 = vunpack.c.h.b16 %v1927
      %v2448 = vunpack.c.l.b16 %v1928
      %v2449 = vunpack.c.l.b16 %v1929
      %v2450 = vunpack.c.h.b16 %v1929
      %v2451 = vunpack.c.l.b16 %v1930
      %v2452 = vunpack.c.h.b16 %v1930
      %v2453 = vunpack.c.l.b16 %v1931
      %v2454 = vunpack.c.h.b16 %v1931
      %v2455 = vunpack.c.l.b16 %v1932
      %v2456 = vunpack.c.l.b16 %v1933
      %v2457 = vunpack.c.h.b16 %v1933
      %v2458 = vunpack.c.l.b16 %v1934
      %v2459 = vunpack.c.h.b16 %v1934
      %v2460 = vunpack.c.l.b16 %v1935
      %v2461 = vunpack.c.h.b16 %v1935
      %v2462 = vunpack.c.l.b16 %v1936
      %v2463 = vunpack.c.l.b16 %v1937
      %v2464 = vunpack.c.h.b16 %v1937
      %v2465 = vunpack.c.l.b16 %v1938
      %v2466 = vunpack.c.h.b16 %v1938
      %v2467 = vunpack.c.l.b16 %v1939
      %v2468 = vunpack.c.h.b16 %v1939
      %v2469 = vunpack.c.l.b16 %v1940
      %v2470 = vunpack.c.l.b16 %v1941
      %v2471 = vunpack.c.h.b16 %v1941
      %v2472 = vunpack.c.l.b16 %v1942
      %v2473 = vunpack.c.h.b16 %v1942
      %v2474 = vunpack.c.l.b16 %v1943
      %v2475 = vunpack.c.h.b16 %v1943
      %v2476 = vunpack.c.l.b16 %v1944
      %v2477 = vunpack.c.l.b16 %v1945
      %v2478 = vunpack.c.h.b16 %v1945
      %v2479 = vunpack.c.l.b16 %v1946
      %v2480 = vunpack.c.h.b16 %v1946
      %v2481 = vunpack.c.l.b16 %v1947
      %v2482 = vunpack.c.h.b16 %v1947
      %v2483 = vunpack.c.l.b16 %v1948
      %v2484 = vunpack.c.l.b16 %v1949
      %v2485 = vunpack.c.h.b16 %v1949
      %v2486 = vunpack.c.l.b16 %v1950
      %v2487 = vunpack.c.h.b16 %v1950
      %v2488 = vunpack.c.l.b16 %v1951
      %v2489 = vunpack.c.h.b16 %v1951
      %v2490 = vunpack.c.l.b16 %v1952
      %v2491 = vunpack.c.l.b16 %v1953
      %v2492 = vunpack.c.h.b16 %v1953
      %v2493 = vunpack.c.l.b16 %v1954
      %v2494 = vunpack.c.h.b16 %v1954
      %v2495 = vunpack.c.l.b16 %v1955
      %v2496 = vunpack.c.h.b16 %v1955
      %v2497 = vunpack.c.l.b16 %v1956
      %v2498 = vunpack.c.l.b16 %v1957
      %v2499 = vunpack.c.h.b16 %v1957
      %v2500 = vunpack.c.l.b16 %v1958
      %v2501 = vunpack.c.h.b16 %v1958
      %v2502 = vunpack.c.l.b16 %v1959
      %v2503 = vunpack.c.h.b16 %v1959
      %v2504 = vunpack.c.l.b16 %v1960
      %v2505 = vunpack.c.l.b16 %v1961
      %v2506 = vunpack.c.h.b16 %v1961
      %v2507 = vunpack.c.l.b16 %v1962
      %v2508 = vunpack.c.h.b16 %v1962
      %v2509 = vunpack.c.l.b16 %v1963
      %v2510 = vunpack.c.h.b16 %v1963
      %v2511 = vunpack.c.l.b16 %v1964
      %v2512 = vunpack.c.l.b16 %v1965
      %v2513 = vunpack.c.h.b16 %v1965
      %v2514 = vunpack.c.l.b16 %v1966
      %v2515 = vunpack.c.h.b16 %v1966
      %v2516 = vunpack.c.l.b16 %v1967
      %v2517 = vunpack.c.h.b16 %v1967
      %v2518 = vunpack.c.l.b16 %v1968
      %v2519 = vunpack.c.l.b16 %v1969
      %v2520 = vunpack.c.h.b16 %v1969
      %v2521 = vunpack.c.l.b16 %v1970
      %v2522 = vunpack.c.h.b16 %v1970
      %v2523 = vunpack.c.l.b16 %v1971
      %v2524 = vunpack.c.h.b16 %v1971
      %v2525 = vunpack.c.l.b16 %v1972
      %v2526 = vunpack.c.l.b16 %v1973
      %v2527 = vunpack.c.h.b16 %v1973
      %v2528 = vunpack.c.l.b16 %v1974
      %v2529 = vunpack.c.h.b16 %v1974
      %v2530 = vunpack.c.l.b16 %v1975
      %v2531 = vunpack.c.h.b16 %v1975
      %v2532 = vunpack.c.l.b16 %v1976
      %v2533 = vunpack.c.l.b16 %v1977
      %v2534 = vunpack.c.h.b16 %v1977
      %v2535 = vunpack.c.l.b16 %v1978
      %v2536 = vunpack.c.h.b16 %v1978
      %v2537 = vunpack.c.l.b16 %v1979
      %v2538 = vunpack.c.h.b16 %v1979
      %v2539 = vunpack.c.l.b16 %v1980
      %v2540 = vunpack.c.l.b16 %v1981
      %v2541 = vunpack.c.h.b16 %v1981
      %v2542 = vunpack.c.l.b16 %v1982
      %v2543 = vunpack.c.h.b16 %v1982
      %v2544 = vunpack.c.l.b16 %v1983
      %v2545 = vunpack.c.h.b16 %v1983
      %v2546 = vunpack.c.l.b16 %v1984
      %v2547 = vunpack.c.l.b16 %v1985
      %v2548 = vunpack.c.h.b16 %v1985
      %v2549 = vunpack.c.l.b16 %v1986
      %v2550 = vunpack.c.h.b16 %v1986
      %v2551 = vunpack.c.l.b16 %v1987
      %v2552 = vunpack.c.h.b16 %v1987
      %v2553 = vunpack.c.l.b16 %v1988
      %v2554 = vpack.c.b16 %v2225, %v2218
      %v2555 = vpack.c.b16 %v2226, %v2219
      %v2556 = vpack.c.b16 %v2227, %v2220
      %v2557 = vpack.c.b16 %v2228, %v2221
      %v2558 = vpack.c.b16 %v2229, %v2222
      %v2559 = vpack.c.b16 %v2230, %v2223
      %v2560 = vpack.c.b16 %v2231, %v2224
      %v2561 = vpack.c.b16 %v2239, %v2232
      %v2562 = vpack.c.b16 %v2240, %v2233
      %v2563 = vpack.c.b16 %v2241, %v2234
      %v2564 = vpack.c.b16 %v2242, %v2235
      %v2565 = vpack.c.b16 %v2243, %v2236
      %v2566 = vpack.c.b16 %v2244, %v2237
      %v2567 = vpack.c.b16 %v2245, %v2238
      %v2568 = vpack.c.b16 %v2253, %v2246
      %v2569 = vpack.c.b16 %v2254, %v2247
      %v2570 = vpack.c.b16 %v2255, %v2248
      %v2571 = vpack.c.b16 %v2256, %v2249
      %v2572 = vpack.c.b16 %v2257, %v2250
      %v2573 = vpack.c.b16 %v2258, %v2251
      %v2574 = vpack.c.b16 %v2259, %v2252
      %v2575 = vpack.c.b16 %v2267, %v2260
      %v2576 = vpack.c.b16 %v2268, %v2261
      %v2577 = vpack.c.b16 %v2269, %v2262
      %v2578 = vpack.c.b16 %v2270, %v2263
      %v2579 = vpack.c.b16 %v2271, %v2264
      %v2580 = vpack.c.b16 %v2272, %v2265
      %v2581 = vpack.c.b16 %v2273, %v2266
      %v2582 = vpack.c.b16 %v2281, %v2274
      %v2583 = vpack.c.b16 %v2282, %v2275
      %v2584 = vpack.c.b16 %v2283, %v2276
      %v2585 = vpack.c.b16 %v2284, %v2277
      %v2586 = vpack.c.b16 %v2285, %v2278
      %v2587 = vpack.c.b16 %v2286, %v2279
      %v2588 = vpack.c.b16 %v2287, %v2280
      %v2589 = vpack.c.b16 %v2295, %v2288
      %v2590 = vpack.c.b16 %v2296, %v2289
      %v2591 = vpack.c.b16 %v2297, %v2290
      %v2592 = vpack.c.b16 %v2298, %v2291
      %v2593 = vpack.c.b16 %v2299, %v2292
      %v2594 = vpack.c.b16 %v2300, %v2293
      %v2595 = vpack.c.b16 %v2301, %v2294
      %v2596 = vpack.c.b16 %v2309, %v2302
      %v2597 = vpack.c.b16 %v2310, %v2303
      %v2598 = vpack.c.b16 %v2311, %v2304
      %v2599 = vpack.c.b16 %v2312, %v2305
      %v2600 = vpack.c.b16 %v2313, %v2306
      %v2601 = vpack.c.b16 %v2314, %v2307
      %v2602 = vpack.c.b16 %v2315, %v2308
      %v2603 = vpack.c.b16 %v2323, %v2316
      %v2604 = vpack.c.b16 %v2324, %v2317
      %v2605 = vpack.c.b16 %v2325, %v2318
      %v2606 = vpack.c.b16 %v2326, %v2319
      %v2607 = vpack.c.b16 %v2327, %v2320
      %v2608 = vpack.c.b16 %v2328, %v2321
      %v2609 = vpack.c.b16 %v2329, %v2322
      %v2610 = vpack.c.b16 %v2337, %v2330
      %v2611 = vpack.c.b16 %v2338, %v2331
      %v2612 = vpack.c.b16 %v2339, %v2332
      %v2613 = vpack.c.b16 %v2340, %v2333
      %v2614 = vpack.c.b16 %v2341, %v2334
      %v2615 = vpack.c.b16 %v2342, %v2335
      %v2616 = vpack.c.b16 %v2343, %v2336
      %v2617 = vpack.c.b16 %v2351, %v2344
      %v2618 = vpack.c.b16 %v2352, %v2345
      %v2619 = vpack.c.b16 %v2353, %v2346
      %v2620 = vpack.c.b16 %v2354, %v2347
      %v2621 = vpack.c.b16 %v2355, %v2348
      %v2622 = vpack.c.b16 %v2356, %v2349
      %v2623 = vpack.c.b16 %v2357, %v2350
      %v2624 = vpack.c.b16 %v2365, %v2358
      %v2625 = vpack.c.b16 %v2366, %v2359
      %v2626 = vpack.c.b16 %v2367, %v2360
      %v2627 = vpack.c.b16 %v2368, %v2361
      %v2628 = vpack.c.b16 %v2369, %v2362
      %v2629 = vpack.c.b16 %v2370, %v2363
      %v2630 = vpack.c.b16 %v2371, %v2364
      %v2631 = vpack.c.b16 %v2379, %v2372
      %v2632 = vpack.c.b16 %v2380, %v2373
      %v2633 = vpack.c.b16 %v2381, %v2374
      %v2634 = vpack.c.b16 %v2382, %v2375
      %v2635 = vpack.c.b16 %v2383, %v2376
      %v2636 = vpack.c.b16 %v2384, %v2377
      %v2637 = vpack.c.b16 %v2385, %v2378
      %v2638 = vpack.c.b16 %v2393, %v2386
      %v2639 = vpack.c.b16 %v2394, %v2387
      %v2640 = vpack.c.b16 %v2395, %v2388
      %v2641 = vpack.c.b16 %v2396, %v2389
      %v2642 = vpack.c.b16 %v2397, %v2390
      %v2643 = vpack.c.b16 %v2398, %v2391
      %v2644 = vpack.c.b16 %v2399, %v2392
      %v2645 = vpack.c.b16 %v2407, %v2400
      %v2646 = vpack.c.b16 %v2408, %v2401
      %v2647 = vpack.c.b16 %v2409, %v2402
      %v2648 = vpack.c.b16 %v2410, %v2403
      %v2649 = vpack.c.b16 %v2411, %v2404
      %v2650 = vpack.c.b16 %v2412, %v2405
      %v2651 = vpack.c.b16 %v2413, %v2406
      %v2652 = vpack.c.b16 %v2421, %v2414
      %v2653 = vpack.c.b16 %v2422, %v2415
      %v2654 = vpack.c.b16 %v2423, %v2416
      %v2655 = vpack.c.b16 %v2424, %v2417
      %v2656 = vpack.c.b16 %v2425, %v2418
      %v2657 = vpack.c.b16 %v2426, %v2419
      %v2658 = vpack.c.b16 %v2427, %v2420
      %v2659 = vpack.c.b16 %v2435, %v2428
      %v2660 = vpack.c.b16 %v2436, %v2429
      %v2661 = vpack.c.b16 %v2437, %v2430
      %v2662 = vpack.c.b16 %v2438, %v2431
      %v2663 = vpack.c.b16 %v2439, %v2432
      %v2664 = vpack.c.b16 %v2440, %v2433
      %v2665 = vpack.c.b16 %v2441, %v2434
      %v2666 = vpack.c.b16 %v2449, %v2442
      %v2667 = vpack.c.b16 %v2450, %v2443
      %v2668 = vpack.c.b16 %v2451, %v2444
      %v2669 = vpack.c.b16 %v2452, %v2445
      %v2670 = vpack.c.b16 %v2453, %v2446
      %v2671 = vpack.c.b16 %v2454, %v2447
      %v2672 = vpack.c.b16 %v2455, %v2448
      %v2673 = vpack.c.b16 %v2463, %v2456
      %v2674 = vpack.c.b16 %v2464, %v2457
      %v2675 = vpack.c.b16 %v2465, %v2458
      %v2676 = vpack.c.b16 %v2466, %v2459
      %v2677 = vpack.c.b16 %v2467, %v2460
      %v2678 = vpack.c.b16 %v2468, %v2461
      %v2679 = vpack.c.b16 %v2469, %v2462
      %v2680 = vpack.c.b16 %v2477, %v2470
      %v2681 = vpack.c.b16 %v2478, %v2471
      %v2682 = vpack.c.b16 %v2479, %v2472
      %v2683 = vpack.c.b16 %v2480, %v2473
      %v2684 = vpack.c.b16 %v2481, %v2474
      %v2685 = vpack.c.b16 %v2482, %v2475
      %v2686 = vpack.c.b16 %v2483, %v2476
      %v2687 = vpack.c.b16 %v2491, %v2484
      %v2688 = vpack.c.b16 %v2492, %v2485
      %v2689 = vpack.c.b16 %v2493, %v2486
      %v2690 = vpack.c.b16 %v2494, %v2487
      %v2691 = vpack.c.b16 %v2495, %v2488
      %v2692 = vpack.c.b16 %v2496, %v2489
      %v2693 = vpack.c.b16 %v2497, %v2490
      %v2694 = vpack.c.b16 %v2505, %v2498
      %v2695 = vpack.c.b16 %v2506, %v2499
      %v2696 = vpack.c.b16 %v2507, %v2500
      %v2697 = vpack.c.b16 %v2508, %v2501
      %v2698 = vpack.c.b16 %v2509, %v2502
      %v2699 = vpack.c.b16 %v2510, %v2503
      %v2700 = vpack.c.b16 %v2511, %v2504
      %v2701 = vpack.c.b16 %v2519, %v2512
      %v2702 = vpack.c.b16 %v2520, %v2513
      %v2703 = vpack.c.b16 %v2521, %v2514
      %v2704 = vpack.c.b16 %v2522, %v2515
      %v2705 = vpack.c.b16 %v2523, %v2516
      %v2706 = vpack.c.b16 %v2524, %v2517
      %v2707 = vpack.c.b16 %v2525, %v2518
      %v2708 = vpack.c.b16 %v2533, %v2526
      %v2709 = vpack.c.b16 %v2534, %v2527
      %v2710 = vpack.c.b16 %v2535, %v2528
      %v2711 = vpack.c.b16 %v2536, %v2529
      %v2712 = vpack.c.b16 %v2537, %v2530
      %v2713 = vpack.c.b16 %v2538, %v2531
      %v2714 = vpack.c.b16 %v2539, %v2532
      %v2715 = vpack.c.b16 %v2547, %v2540
      %v2716 = vpack.c.b16 %v2548, %v2541
      %v2717 = vpack.c.b16 %v2549, %v2542
      %v2718 = vpack.c.b16 %v2550, %v2543
      %v2719 = vpack.c.b16 %v2551, %v2544
      %v2720 = vpack.c.b16 %v2552, %v2545
      %v2721 = vpack.c.b16 %v2553, %v2546
      %2890 = vmatprep.subr.bf16.mxu0 %v2555
      %2891 = vmatpush1.bf16.msra.mxu0 %v2554
      %2892 = vmatprep.subr.bf16.mxu0 %v2562
      %2893 = vmatpush1.bf16.msra.mxu0 %v2561
      %2894 = vmatprep.subr.bf16.mxu0 %v2569
      %2895 = vmatpush1.bf16.msra.mxu0 %v2568
      %2896 = vmatprep.subr.bf16.mxu0 %v2576
      %2897 = vmatpush1.bf16.msra.mxu0 %v2575
      %2898 = vmatprep.subr.bf16.mxu0 %v2583
      %2899 = vmatpush1.bf16.msra.mxu0 %v2582
      %2900 = vmatprep.subr.bf16.mxu0 %v2590
      %2901 = vmatpush1.bf16.msra.mxu0 %v2589
      %2902 = vmatprep.subr.bf16.mxu0 %v2597
      %2903 = vmatpush1.bf16.msra.mxu0 %v2596
      %2904 = vmatprep.subr.bf16.mxu0 %v2604
      %2905 = vmatpush1.bf16.msra.mxu0 %v2603
      %2906 = vmatprep.subr.bf16.mxu0 %v2611
      %2907 = vmatpush1.bf16.msra.mxu0 %v2610
      %2908 = vmatprep.subr.bf16.mxu0 %v2618
      %2909 = vmatpush1.bf16.msra.mxu0 %v2617
      %2910 = vmatprep.subr.bf16.mxu0 %v2625
      %2911 = vmatpush1.bf16.msra.mxu0 %v2624
      %2912 = vmatprep.subr.bf16.mxu0 %v2632
      %2913 = vmatpush1.bf16.msra.mxu0 %v2631
      %2914 = vmatprep.subr.bf16.mxu0 %v2639
      %2915 = vmatpush1.bf16.msra.mxu0 %v2638
      %2916 = vmatprep.subr.bf16.mxu0 %v2646
      %2917 = vmatpush1.bf16.msra.mxu0 %v2645
      %2918 = vmatprep.subr.bf16.mxu0 %v2653
      %2919 = vmatpush1.bf16.msra.mxu0 %v2652
      %2920 = vmatprep.subr.bf16.mxu0 %v2660
      %2921 = vmatpush1.bf16.msra.mxu0 %v2659
      %2922 = vmatprep.mubr.bf16.mxu0 %v1774
      %2923 = vmatmul.mubr.bf16.gmra.mrb[0].mxu0 %v1773
      %v2924 = vpop.f32.mrb[0].mxu0
      %v2925 = vadd.f32 %v1994, %v2924
      %v2926 = vpop.f32.mrb[0].mxu0
      %v2927 = vadd.f32 %v1998, %v2926
      %v2928 = vpop.f32.mrb[0].mxu0
      %v2929 = vadd.f32 %v1994, %v2928
      %v2930 = vpop.f32.mrb[0].mxu0
      %v2931 = vadd.f32 %v1998, %v2930
      %2932 = vmatprep.mubr.bf16.mxu0 %v1777
      %2933 = vmatmul.mubr.bf16.gmra.mrb[0].mxu0 %v1776
      %v2934 = vpop.f32.mrb[0].mxu0
      %v2935 = vadd.f32 %v1994, %v2934
      %v2936 = vpop.f32.mrb[0].mxu0
      %v2937 = vadd.f32 %v1998, %v2936
      %v2938 = vpop.f32.mrb[0].mxu0
      %v2939 = vadd.f32 %v1994, %v2938
      %v2940 = vpop.f32.mrb[0].mxu0
      %v2941 = vadd.f32 %v1998, %v2940
      %2942 = vmatprep.mubr.bf16.mxu0 %v1780
      %2943 = vmatmul.mubr.bf16.gmra.mrb[0].mxu0 %v1779
      %v2944 = vpop.f32.mrb[0].mxu0
      %v2945 = vadd.f32 %v1994, %v2944
      %v2946 = vpop.f32.mrb[0].mxu0
      %v2947 = vadd.f32 %v1998, %v2946
      %v2948 = vpop.f32.mrb[0].mxu0
      %v2949 = vadd.f32 %v1994, %v2948
      %v2950 = vpop.f32.mrb[0].mxu0
      %v2951 = vadd.f32 %v1998, %v2950
      %2952 = vmatprep.mubr.bf16.mxu0 %v1783
      %2953 = vmatmul.mubr.bf16.gmra.mrb[0].mxu0 %v1782
      %v2954 = vpop.f32.mrb[0].mxu0
      %v2955 = vadd.f32 %v1994, %v2954
      %v2956 = vpop.f32.mrb[0].mxu0
      %v2957 = vadd.f32 %v1998, %v2956
      %v2958 = vpop.f32.mrb[0].mxu0
      %v2959 = vadd.f32 %v1994, %v2958
      %v2960 = vpop.f32.mrb[0].mxu0
      %v2961 = vadd.f32 %v1998, %v2960
      %2962 = vmatprep.mubr.bf16.mxu0 %v1786
      %2963 = vmatmul.mubr.bf16.gmra.mrb[0].mxu0 %v1785
      %v2964 = vpop.f32.mrb[0].mxu0
      %v2965 = vadd.f32 %v1994, %v2964
      %v2966 = vpop.f32.mrb[0].mxu0
      %v2967 = vadd.f32 %v1998, %v2966
      %v2968 = vpop.f32.mrb[0].mxu0
      %v2969 = vadd.f32 %v1994, %v2968
      %v2970 = vpop.f32.mrb[0].mxu0
      %v2971 = vadd.f32 %v1998, %v2970
      %2972 = vmatprep.mubr.bf16.mxu0 %v1789
      %2973 = vmatmul.mubr.bf16.gmra.mrb[0].mxu0 %v1788
      %v2974 = vpop.f32.mrb[0].mxu0
      %v2975 = vadd.f32 %v1994, %v2974
      %v2976 = vpop.f32.mrb[0].mxu0
      %v2977 = vadd.f32 %v1998, %v2976
      %v2978 = vpop.f32.mrb[0].mxu0
      %v2979 = vadd.f32 %v1994, %v2978
      %v2980 = vpop.f32.mrb[0].mxu0
      %v2981 = vadd.f32 %v1998, %v2980
      %2982 = vmatprep.mubr.bf16.mxu0 %v1792
      %2983 = vmatmul.mubr.bf16.gmra.mrb[0].mxu0 %v1791
      %v2984 = vpop.f32.mrb[0].mxu0
      %v2985 = vadd.f32 %v1994, %v2984
      %v2986 = vpop.f32.mrb[0].mxu0
      %v2987 = vadd.f32 %v1998, %v2986
      %v2988 = vpop.f32.mrb[0].mxu0
      %v2989 = vadd.f32 %v1994, %v2988
      %v2990 = vpop.f32.mrb[0].mxu0
      %v2991 = vadd.f32 %v1998, %v2990
      %2992 = vmatprep.mubr.bf16.mxu0 %v1795
      %2993 = vmatmul.mubr.bf16.gmra.mrb[0].mxu0 %v1794
      %v2994 = vpop.f32.mrb[0].mxu0
      %v2995 = vadd.f32 %v1994, %v2994
      %v2996 = vpop.f32.mrb[0].mxu0
      %v2997 = vadd.f32 %v1998, %v2996
      %v2998 = vpop.f32.mrb[0].mxu0
      %v2999 = vadd.f32 %v1994, %v2998
      %v3000 = vpop.f32.mrb[0].mxu0
      %v3001 = vadd.f32 %v1998, %v3000
      %3002 = vdwg.mxu0
      %3003 = vmatprep.subr.bf16.mxu0 %v2667
      %3004 = vmatpush1.bf16.msra.mxu0 %v2666
      %3005 = vmatprep.subr.bf16.mxu0 %v2674
      %3006 = vmatpush1.bf16.msra.mxu0 %v2673
      %3007 = vmatprep.subr.bf16.mxu0 %v2681
      %3008 = vmatpush1.bf16.msra.mxu0 %v2680
      %3009 = vmatprep.subr.bf16.mxu0 %v2688
      %3010 = vmatpush1.bf16.msra.mxu0 %v2687
      %3011 = vmatprep.subr.bf16.mxu0 %v2695
      %3012 = vmatpush1.bf16.msra.mxu0 %v2694
      %3013 = vmatprep.subr.bf16.mxu0 %v2702
      %3014 = vmatpush1.bf16.msra.mxu0 %v2701
      %3015 = vmatprep.subr.bf16.mxu0 %v2709
      %3016 = vmatpush1.bf16.msra.mxu0 %v2708
      %3017 = vmatprep.subr.bf16.mxu0 %v2716
      %3018 = vmatpush1.bf16.msra.mxu0 %v2715
      %3019 = vmatprep.subr.bf16.mxu0 0
      %3020 = vmatpush1.bf16.msra.mxu0 0
      %3021 = vmatprep.subr.bf16.mxu0 0
      %3022 = vmatpush1.bf16.msra.mxu0 0
      %3023 = vmatprep.subr.bf16.mxu0 0
      %3024 = vmatpush1.bf16.msra.mxu0 0
      %3025 = vmatprep.subr.bf16.mxu0 0
      %3026 = vmatpush1.bf16.msra.mxu0 0
      %3027 = vmatprep.subr.bf16.mxu0 0
      %3028 = vmatpush1.bf16.msra.mxu0 0
      %3029 = vmatprep.subr.bf16.mxu0 0
      %3030 = vmatpush1.bf16.msra.mxu0 0
      %3031 = vmatprep.subr.bf16.mxu0 0
      %3032 = vmatpush1.bf16.msra.mxu0 0
      %3033 = vmatprep.subr.bf16.mxu0 0
      %3034 = vmatpush1.bf16.msra.mxu0 0
      %3035 = vmatprep.mubr.bf16.mxu0 0
      %3036 = vmatmul.mubr.bf16.gmra.mrb[0].mxu0 %v1775
      %v3037 = vpop.f32.mrb[0].mxu0
      %v3038 = vadd.f32 %v2925, %v3037
      %v3039 = vpop.f32.mrb[0].mxu0
      %v3040 = vadd.f32 %v2927, %v3039
      %v3041 = vpop.f32.mrb[0].mxu0
      %v3042 = vadd.f32 %v2929, %v3041
      %v3043 = vpop.f32.mrb[0].mxu0
      %v3044 = vadd.f32 %v2931, %v3043
      %3045 = vmatprep.mubr.bf16.mxu0 0
      %3046 = vmatmul.mubr.bf16.gmra.mrb[0].mxu0 %v1778
      %v3047 = vpop.f32.mrb[0].mxu0
      %v3048 = vadd.f32 %v2935, %v3047
      %v3049 = vpop.f32.mrb[0].mxu0
      %v3050 = vadd.f32 %v2937, %v3049
      %v3051 = vpop.f32.mrb[0].mxu0
      %v3052 = vadd.f32 %v2939, %v3051
      %v3053 = vpop.f32.mrb[0].mxu0
      %v3054 = vadd.f32 %v2941, %v3053
      %3055 = vmatprep.mubr.bf16.mxu0 0
      %3056 = vmatmul.mubr.bf16.gmra.mrb[0].mxu0 %v1781
      %v3057 = vpop.f32.mrb[0].mxu0
      %v3058 = vadd.f32 %v2945, %v3057
      %v3059 = vpop.f32.mrb[0].mxu0
      %v3060 = vadd.f32 %v2947, %v3059
      %v3061 = vpop.f32.mrb[0].mxu0
      %v3062 = vadd.f32 %v2949, %v3061
      %v3063 = vpop.f32.mrb[0].mxu0
      %v3064 = vadd.f32 %v2951, %v3063
      %3065 = vmatprep.mubr.bf16.mxu0 0
      %3066 = vmatmul.mubr.bf16.gmra.mrb[0].mxu0 %v1784
      %v3067 = vpop.f32.mrb[0].mxu0
      %v3068 = vadd.f32 %v2955, %v3067
      %v3069 = vpop.f32.mrb[0].mxu0
      %v3070 = vadd.f32 %v2957, %v3069
      %v3071 = vpop.f32.mrb[0].mxu0
      %v3072 = vadd.f32 %v2959, %v3071
      %v3073 = vpop.f32.mrb[0].mxu0
      %v3074 = vadd.f32 %v2961, %v3073
      %3075 = vmatprep.mubr.bf16.mxu0 0
      %3076 = vmatmul.mubr.bf16.gmra.mrb[0].mxu0 %v1787
      %v3077 = vpop.f32.mrb[0].mxu0
      %v3078 = vadd.f32 %v2965, %v3077
      %v3079 = vpop.f32.mrb[0].mxu0
      %v3080 = vadd.f32 %v2967, %v3079
      %v3081 = vpop.f32.mrb[0].mxu0
      %v3082 = vadd.f32 %v2969, %v3081
      %v3083 = vpop.f32.mrb[0].mxu0
      %v3084 = vadd.f32 %v2971, %v3083
      %3085 = vmatprep.mubr.bf16.mxu0 0
      %3086 = vmatmul.mubr.bf16.gmra.mrb[0].mxu0 %v1790
      %v3087 = vpop.f32.mrb[0].mxu0
      %v3088 = vadd.f32 %v2975, %v3087
      %v3089 = vpop.f32.mrb[0].mxu0
      %v3090 = vadd.f32 %v2977, %v3089
      %v3091 = vpop.f32.mrb[0].mxu0
      %v3092 = vadd.f32 %v2979, %v3091
      %v3093 = vpop.f32.mrb[0].mxu0
      %v3094 = vadd.f32 %v2981, %v3093
      %3095 = vmatprep.mubr.bf16.mxu0 0
      %3096 = vmatmul.mubr.bf16.gmra.mrb[0].mxu0 %v1793
      %v3097 = vpop.f32.mrb[0].mxu0
      %v3098 = vadd.f32 %v2985, %v3097
      %v3099 = vpop.f32.mrb[0].mxu0
      %v3100 = vadd.f32 %v2987, %v3099
      %v3101 = vpop.f32.mrb[0].mxu0
      %v3102 = vadd.f32 %v2989, %v3101
      %v3103 = vpop.f32.mrb[0].mxu0
      %v3104 = vadd.f32 %v2991, %v3103
      %3105 = vmatprep.mubr.bf16.mxu0 0
      %3106 = vmatmul.mubr.bf16.gmra.mrb[0].mxu0 %v1796
      %v3107 = vpop.f32.mrb[0].mxu0
      %v3108 = vadd.f32 %v2995, %v3107
      %v3109 = vpop.f32.mrb[0].mxu0
      %v3110 = vadd.f32 %v2997, %v3109
      %v3111 = vpop.f32.mrb[0].mxu0
      %v3112 = vadd.f32 %v2999, %v3111
      %v3113 = vpop.f32.mrb[0].mxu0
      %v3114 = vadd.f32 %v3001, %v3113
      %3115 = vdwg.mxu0
      %3116 = vmatprep.subr.bf16.mxu0 %v2557
      %3117 = vmatpush1.bf16.msra.mxu0 %v2556
      %3118 = vmatprep.subr.bf16.mxu0 %v2564
      %3119 = vmatpush1.bf16.msra.mxu0 %v2563
      %3120 = vmatprep.subr.bf16.mxu0 %v2571
      %3121 = vmatpush1.bf16.msra.mxu0 %v2570
      %3122 = vmatprep.subr.bf16.mxu0 %v2578
      %3123 = vmatpush1.bf16.msra.mxu0 %v2577
      %3124 = vmatprep.subr.bf16.mxu0 %v2585
      %3125 = vmatpush1.bf16.msra.mxu0 %v2584
      %3126 = vmatprep.subr.bf16.mxu0 %v2592
      %3127 = vmatpush1.bf16.msra.mxu0 %v2591
      %3128 = vmatprep.subr.bf16.mxu0 %v2599
      %3129 = vmatpush1.bf16.msra.mxu0 %v2598
      %3130 = vmatprep.subr.bf16.mxu0 %v2606
      %3131 = vmatpush1.bf16.msra.mxu0 %v2605
      %3132 = vmatprep.subr.bf16.mxu0 %v2613
      %3133 = vmatpush1.bf16.msra.mxu0 %v2612
      %3134 = vmatprep.subr.bf16.mxu0 %v2620
      %3135 = vmatpush1.bf16.msra.mxu0 %v2619
      %3136 = vmatprep.subr.bf16.mxu0 %v2627
      %3137 = vmatpush1.bf16.msra.mxu0 %v2626
      %3138 = vmatprep.subr.bf16.mxu0 %v2634
      %3139 = vmatpush1.bf16.msra.mxu0 %v2633
      %3140 = vmatprep.subr.bf16.mxu0 %v2641
      %3141 = vmatpush1.bf16.msra.mxu0 %v2640
      %3142 = vmatprep.subr.bf16.mxu0 %v2648
      %3143 = vmatpush1.bf16.msra.mxu0 %v2647
      %3144 = vmatprep.subr.bf16.mxu0 %v2655
      %3145 = vmatpush1.bf16.msra.mxu0 %v2654
      %3146 = vmatprep.subr.bf16.mxu0 %v2662
      %3147 = vmatpush1.bf16.msra.mxu0 %v2661
      %3148 = vmatprep.mubr.bf16.mxu0 %v1774
      %3149 = vmatmul.mubr.bf16.gmra.mrb[0].mxu0 %v1773
      %v3150 = vpop.f32.mrb[0].mxu0
      %v3151 = vadd.f32 %v2002, %v3150
      %v3152 = vpop.f32.mrb[0].mxu0
      %v3153 = vadd.f32 %v2006, %v3152
      %v3154 = vpop.f32.mrb[0].mxu0
      %v3155 = vadd.f32 %v2002, %v3154
      %v3156 = vpop.f32.mrb[0].mxu0
      %v3157 = vadd.f32 %v2006, %v3156
      %3158 = vmatprep.mubr.bf16.mxu0 %v1777
      %3159 = vmatmul.mubr.bf16.gmra.mrb[0].mxu0 %v1776
      %v3160 = vpop.f32.mrb[0].mxu0
      %v3161 = vadd.f32 %v2002, %v3160
      %v3162 = vpop.f32.mrb[0].mxu0
      %v3163 = vadd.f32 %v2006, %v3162
      %v3164 = vpop.f32.mrb[0].mxu0
      %v3165 = vadd.f32 %v2002, %v3164
      %v3166 = vpop.f32.mrb[0].mxu0
      %v3167 = vadd.f32 %v2006, %v3166
      %3168 = vmatprep.mubr.bf16.mxu0 %v1780
      %3169 = vmatmul.mubr.bf16.gmra.mrb[0].mxu0 %v1779
      %v3170 = vpop.f32.mrb[0].mxu0
      %v3171 = vadd.f32 %v2002, %v3170
      %v3172 = vpop.f32.mrb[0].mxu0
      %v3173 = vadd.f32 %v2006, %v3172
      %v3174 = vpop.f32.mrb[0].mxu0
      %v3175 = vadd.f32 %v2002, %v3174
      %v3176 = vpop.f32.mrb[0].mxu0
      %v3177 = vadd.f32 %v2006, %v3176
      %3178 = vmatprep.mubr.bf16.mxu0 %v1783
      %3179 = vmatmul.mubr.bf16.gmra.mrb[0].mxu0 %v1782
      %v3180 = vpop.f32.mrb[0].mxu0
      %v3181 = vadd.f32 %v2002, %v3180
      %v3182 = vpop.f32.mrb[0].mxu0
      %v3183 = vadd.f32 %v2006, %v3182
      %v3184 = vpop.f32.mrb[0].mxu0
      %v3185 = vadd.f32 %v2002, %v3184
      %v3186 = vpop.f32.mrb[0].mxu0
      %v3187 = vadd.f32 %v2006, %v3186
      %3188 = vmatprep.mubr.bf16.mxu0 %v1786
      %3189 = vmatmul.mubr.bf16.gmra.mrb[0].mxu0 %v1785
      %v3190 = vpop.f32.mrb[0].mxu0
      %v3191 = vadd.f32 %v2002, %v3190
      %v3192 = vpop.f32.mrb[0].mxu0
      %v3193 = vadd.f32 %v2006, %v3192
      %v3194 = vpop.f32.mrb[0].mxu0
      %v3195 = vadd.f32 %v2002, %v3194
      %v3196 = vpop.f32.mrb[0].mxu0
      %v3197 = vadd.f32 %v2006, %v3196
      %3198 = vmatprep.mubr.bf16.mxu0 %v1789
      %3199 = vmatmul.mubr.bf16.gmra.mrb[0].mxu0 %v1788
      %v3200 = vpop.f32.mrb[0].mxu0
      %v3201 = vadd.f32 %v2002, %v3200
      %v3202 = vpop.f32.mrb[0].mxu0
      %v3203 = vadd.f32 %v2006, %v3202
      %v3204 = vpop.f32.mrb[0].mxu0
      %v3205 = vadd.f32 %v2002, %v3204
      %v3206 = vpop.f32.mrb[0].mxu0
      %v3207 = vadd.f32 %v2006, %v3206
      %3208 = vmatprep.mubr.bf16.mxu0 %v1792
      %3209 = vmatmul.mubr.bf16.gmra.mrb[0].mxu0 %v1791
      %v3210 = vpop.f32.mrb[0].mxu0
      %v3211 = vadd.f32 %v2002, %v3210
      %v3212 = vpop.f32.mrb[0].mxu0
      %v3213 = vadd.f32 %v2006, %v3212
      %v3214 = vpop.f32.mrb[0].mxu0
      %v3215 = vadd.f32 %v2002, %v3214
      %v3216 = vpop.f32.mrb[0].mxu0
      %v3217 = vadd.f32 %v2006, %v3216
      %3218 = vmatprep.mubr.bf16.mxu0 %v1795
      %3219 = vmatmul.mubr.bf16.gmra.mrb[0].mxu0 %v1794
      %v3220 = vpop.f32.mrb[0].mxu0
      %v3221 = vadd.f32 %v2002, %v3220
      %v3222 = vpop.f32.mrb[0].mxu0
      %v3223 = vadd.f32 %v2006, %v3222
      %v3224 = vpop.f32.mrb[0].mxu0
      %v3225 = vadd.f32 %v2002, %v3224
      %v3226 = vpop.f32.mrb[0].mxu0
      %v3227 = vadd.f32 %v2006, %v3226
      %3228 = vdwg.mxu0
      %3229 = vmatprep.subr.bf16.mxu0 %v2669
      %3230 = vmatpush1.bf16.msra.mxu0 %v2668
      %3231 = vmatprep.subr.bf16.mxu0 %v2676
      %3232 = vmatpush1.bf16.msra.mxu0 %v2675
      %3233 = vmatprep.subr.bf16.mxu0 %v2683
      %3234 = vmatpush1.bf16.msra.mxu0 %v2682
      %3235 = vmatprep.subr.bf16.mxu0 %v2690
      %3236 = vmatpush1.bf16.msra.mxu0 %v2689
      %3237 = vmatprep.subr.bf16.mxu0 %v2697
      %3238 = vmatpush1.bf16.msra.mxu0 %v2696
      %3239 = vmatprep.subr.bf16.mxu0 %v2704
      %3240 = vmatpush1.bf16.msra.mxu0 %v2703
      %3241 = vmatprep.subr.bf16.mxu0 %v2711
      %3242 = vmatpush1.bf16.msra.mxu0 %v2710
      %3243 = vmatprep.subr.bf16.mxu0 %v2718
      %3244 = vmatpush1.bf16.msra.mxu0 %v2717
      %3245 = vmatprep.subr.bf16.mxu0 0
      %3246 = vmatpush1.bf16.msra.mxu0 0
      %3247 = vmatprep.subr.bf16.mxu0 0
      %3248 = vmatpush1.bf16.msra.mxu0 0
      %3249 = vmatprep.subr.bf16.mxu0 0
      %3250 = vmatpush1.bf16.msra.mxu0 0
      %3251 = vmatprep.subr.bf16.mxu0 0
      %3252 = vmatpush1.bf16.msra.mxu0 0
      %3253 = vmatprep.subr.bf16.mxu0 0
      %3254 = vmatpush1.bf16.msra.mxu0 0
      %3255 = vmatprep.subr.bf16.mxu0 0
      %3256 = vmatpush1.bf16.msra.mxu0 0
      %3257 = vmatprep.subr.bf16.mxu0 0
      %3258 = vmatpush1.bf16.msra.mxu0 0
      %3259 = vmatprep.subr.bf16.mxu0 0
      %3260 = vmatpush1.bf16.msra.mxu0 0
      %3261 = vmatprep.mubr.bf16.mxu0 0
      %3262 = vmatmul.mubr.bf16.gmra.mrb[0].mxu0 %v1775
      %v3263 = vpop.f32.mrb[0].mxu0
      %v3264 = vadd.f32 %v3151, %v3263
      %v3265 = vpop.f32.mrb[0].mxu0
      %v3266 = vadd.f32 %v3153, %v3265
      %v3267 = vpop.f32.mrb[0].mxu0
      %v3268 = vadd.f32 %v3155, %v3267
      %v3269 = vpop.f32.mrb[0].mxu0
      %v3270 = vadd.f32 %v3157, %v3269
      %3271 = vmatprep.mubr.bf16.mxu0 0
      %3272 = vmatmul.mubr.bf16.gmra.mrb[0].mxu0 %v1778
      %v3273 = vpop.f32.mrb[0].mxu0
      %v3274 = vadd.f32 %v3161, %v3273
      %v3275 = vpop.f32.mrb[0].mxu0
      %v3276 = vadd.f32 %v3163, %v3275
      %v3277 = vpop.f32.mrb[0].mxu0
      %v3278 = vadd.f32 %v3165, %v3277
      %v3279 = vpop.f32.mrb[0].mxu0
      %v3280 = vadd.f32 %v3167, %v3279
      %3281 = vmatprep.mubr.bf16.mxu0 0
      %3282 = vmatmul.mubr.bf16.gmra.mrb[0].mxu0 %v1781
      %v3283 = vpop.f32.mrb[0].mxu0
      %v3284 = vadd.f32 %v3171, %v3283
      %v3285 = vpop.f32.mrb[0].mxu0
      %v3286 = vadd.f32 %v3173, %v3285
      %v3287 = vpop.f32.mrb[0].mxu0
      %v3288 = vadd.f32 %v3175, %v3287
      %v3289 = vpop.f32.mrb[0].mxu0
      %v3290 = vadd.f32 %v3177, %v3289
      %3291 = vmatprep.mubr.bf16.mxu0 0
      %3292 = vmatmul.mubr.bf16.gmra.mrb[0].mxu0 %v1784
      %v3293 = vpop.f32.mrb[0].mxu0
      %v3294 = vadd.f32 %v3181, %v3293
      %v3295 = vpop.f32.mrb[0].mxu0
      %v3296 = vadd.f32 %v3183, %v3295
      %v3297 = vpop.f32.mrb[0].mxu0
      %v3298 = vadd.f32 %v3185, %v3297
      %v3299 = vpop.f32.mrb[0].mxu0
      %v3300 = vadd.f32 %v3187, %v3299
      %3301 = vmatprep.mubr.bf16.mxu0 0
      %3302 = vmatmul.mubr.bf16.gmra.mrb[0].mxu0 %v1787
      %v3303 = vpop.f32.mrb[0].mxu0
      %v3304 = vadd.f32 %v3191, %v3303
      %v3305 = vpop.f32.mrb[0].mxu0
      %v3306 = vadd.f32 %v3193, %v3305
      %v3307 = vpop.f32.mrb[0].mxu0
      %v3308 = vadd.f32 %v3195, %v3307
      %v3309 = vpop.f32.mrb[0].mxu0
      %v3310 = vadd.f32 %v3197, %v3309
      %3311 = vmatprep.mubr.bf16.mxu0 0
      %3312 = vmatmul.mubr.bf16.gmra.mrb[0].mxu0 %v1790
      %v3313 = vpop.f32.mrb[0].mxu0
      %v3314 = vadd.f32 %v3201, %v3313
      %v3315 = vpop.f32.mrb[0].mxu0
      %v3316 = vadd.f32 %v3203, %v3315
      %v3317 = vpop.f32.mrb[0].mxu0
      %v3318 = vadd.f32 %v3205, %v3317
      %v3319 = vpop.f32.mrb[0].mxu0
      %v3320 = vadd.f32 %v3207, %v3319
      %3321 = vmatprep.mubr.bf16.mxu0 0
      %3322 = vmatmul.mubr.bf16.gmra.mrb[0].mxu0 %v1793
      %v3323 = vpop.f32.mrb[0].mxu0
      %v3324 = vadd.f32 %v3211, %v3323
      %v3325 = vpop.f32.mrb[0].mxu0
      %v3326 = vadd.f32 %v3213, %v3325
      %v3327 = vpop.f32.mrb[0].mxu0
      %v3328 = vadd.f32 %v3215, %v3327
      %v3329 = vpop.f32.mrb[0].mxu0
      %v3330 = vadd.f32 %v3217, %v3329
      %3331 = vmatprep.mubr.bf16.mxu0 0
      %3332 = vmatmul.mubr.bf16.gmra.mrb[0].mxu0 %v1796
      %v3333 = vpop.f32.mrb[0].mxu0
      %v3334 = vadd.f32 %v3221, %v3333
      %v3335 = vpop.f32.mrb[0].mxu0
      %v3336 = vadd.f32 %v3223, %v3335
      %v3337 = vpop.f32.mrb[0].mxu0
      %v3338 = vadd.f32 %v3225, %v3337
      %v3339 = vpop.f32.mrb[0].mxu0
      %v3340 = vadd.f32 %v3227, %v3339
      %3341 = vdwg.mxu0
      %3342 = vmatprep.subr.bf16.mxu0 %v2559
      %3343 = vmatpush1.bf16.msra.mxu0 %v2558
      %3344 = vmatprep.subr.bf16.mxu0 %v2566
      %3345 = vmatpush1.bf16.msra.mxu0 %v2565
      %3346 = vmatprep.subr.bf16.mxu0 %v2573
      %3347 = vmatpush1.bf16.msra.mxu0 %v2572
      %3348 = vmatprep.subr.bf16.mxu0 %v2580
      %3349 = vmatpush1.bf16.msra.mxu0 %v2579
      %3350 = vmatprep.subr.bf16.mxu0 %v2587
      %3351 = vmatpush1.bf16.msra.mxu0 %v2586
      %3352 = vmatprep.subr.bf16.mxu0 %v2594
      %3353 = vmatpush1.bf16.msra.mxu0 %v2593
      %3354 = vmatprep.subr.bf16.mxu0 %v2601
      %3355 = vmatpush1.bf16.msra.mxu0 %v2600
      %3356 = vmatprep.subr.bf16.mxu0 %v2608
      %3357 = vmatpush1.bf16.msra.mxu0 %v2607
      %3358 = vmatprep.subr.bf16.mxu0 %v2615
      %3359 = vmatpush1.bf16.msra.mxu0 %v2614
      %3360 = vmatprep.subr.bf16.mxu0 %v2622
      %3361 = vmatpush1.bf16.msra.mxu0 %v2621
      %3362 = vmatprep.subr.bf16.mxu0 %v2629
      %3363 = vmatpush1.bf16.msra.mxu0 %v2628
      %3364 = vmatprep.subr.bf16.mxu0 %v2636
      %3365 = vmatpush1.bf16.msra.mxu0 %v2635
      %3366 = vmatprep.subr.bf16.mxu0 %v2643
      %3367 = vmatpush1.bf16.msra.mxu0 %v2642
      %3368 = vmatprep.subr.bf16.mxu0 %v2650
      %3369 = vmatpush1.bf16.msra.mxu0 %v2649
      %3370 = vmatprep.subr.bf16.mxu0 %v2657
      %3371 = vmatpush1.bf16.msra.mxu0 %v2656
      %3372 = vmatprep.subr.bf16.mxu0 %v2664
      %3373 = vmatpush1.bf16.msra.mxu0 %v2663
      %3374 = vmatprep.mubr.bf16.mxu0 %v1774
      %3375 = vmatmul.mubr.bf16.gmra.mrb[0].mxu0 %v1773
      %v3376 = vpop.f32.mrb[0].mxu0
      %v3377 = vadd.f32 %v2010, %v3376
      %v3378 = vpop.f32.mrb[0].mxu0
      %v3379 = vadd.f32 %v2014, %v3378
      %v3380 = vpop.f32.mrb[0].mxu0
      %v3381 = vadd.f32 %v2010, %v3380
      %v3382 = vpop.f32.mrb[0].mxu0
      %v3383 = vadd.f32 %v2014, %v3382
      %3384 = vmatprep.mubr.bf16.mxu0 %v1777
      %3385 = vmatmul.mubr.bf16.gmra.mrb[0].mxu0 %v1776
      %v3386 = vpop.f32.mrb[0].mxu0
      %v3387 = vadd.f32 %v2010, %v3386
      %v3388 = vpop.f32.mrb[0].mxu0
      %v3389 = vadd.f32 %v2014, %v3388
      %v3390 = vpop.f32.mrb[0].mxu0
      %v3391 = vadd.f32 %v2010, %v3390
      %v3392 = vpop.f32.mrb[0].mxu0
      %v3393 = vadd.f32 %v2014, %v3392
      %3394 = vmatprep.mubr.bf16.mxu0 %v1780
      %3395 = vmatmul.mubr.bf16.gmra.mrb[0].mxu0 %v1779
      %v3396 = vpop.f32.mrb[0].mxu0
      %v3397 = vadd.f32 %v2010, %v3396
      %v3398 = vpop.f32.mrb[0].mxu0
      %v3399 = vadd.f32 %v2014, %v3398
      %v3400 = vpop.f32.mrb[0].mxu0
      %v3401 = vadd.f32 %v2010, %v3400
      %v3402 = vpop.f32.mrb[0].mxu0
      %v3403 = vadd.f32 %v2014, %v3402
      %3404 = vmatprep.mubr.bf16.mxu0 %v1783
      %3405 = vmatmul.mubr.bf16.gmra.mrb[0].mxu0 %v1782
      %v3406 = vpop.f32.mrb[0].mxu0
      %v3407 = vadd.f32 %v2010, %v3406
      %v3408 = vpop.f32.mrb[0].mxu0
      %v3409 = vadd.f32 %v2014, %v3408
      %v3410 = vpop.f32.mrb[0].mxu0
      %v3411 = vadd.f32 %v2010, %v3410
      %v3412 = vpop.f32.mrb[0].mxu0
      %v3413 = vadd.f32 %v2014, %v3412
      %3414 = vmatprep.mubr.bf16.mxu0 %v1786
      %3415 = vmatmul.mubr.bf16.gmra.mrb[0].mxu0 %v1785
      %v3416 = vpop.f32.mrb[0].mxu0
      %v3417 = vadd.f32 %v2010, %v3416
      %v3418 = vpop.f32.mrb[0].mxu0
      %v3419 = vadd.f32 %v2014, %v3418
      %v3420 = vpop.f32.mrb[0].mxu0
      %v3421 = vadd.f32 %v2010, %v3420
      %v3422 = vpop.f32.mrb[0].mxu0
      %v3423 = vadd.f32 %v2014, %v3422
      %3424 = vmatprep.mubr.bf16.mxu0 %v1789
      %3425 = vmatmul.mubr.bf16.gmra.mrb[0].mxu0 %v1788
      %v3426 = vpop.f32.mrb[0].mxu0
      %v3427 = vadd.f32 %v2010, %v3426
      %v3428 = vpop.f32.mrb[0].mxu0
      %v3429 = vadd.f32 %v2014, %v3428
      %v3430 = vpop.f32.mrb[0].mxu0
      %v3431 = vadd.f32 %v2010, %v3430
      %v3432 = vpop.f32.mrb[0].mxu0
      %v3433 = vadd.f32 %v2014, %v3432
      %3434 = vmatprep.mubr.bf16.mxu0 %v1792
      %3435 = vmatmul.mubr.bf16.gmra.mrb[0].mxu0 %v1791
      %v3436 = vpop.f32.mrb[0].mxu0
      %v3437 = vadd.f32 %v2010, %v3436
      %v3438 = vpop.f32.mrb[0].mxu0
      %v3439 = vadd.f32 %v2014, %v3438
      %v3440 = vpop.f32.mrb[0].mxu0
      %v3441 = vadd.f32 %v2010, %v3440
      %v3442 = vpop.f32.mrb[0].mxu0
      %v3443 = vadd.f32 %v2014, %v3442
      %3444 = vmatprep.mubr.bf16.mxu0 %v1795
      %3445 = vmatmul.mubr.bf16.gmra.mrb[0].mxu0 %v1794
      %v3446 = vpop.f32.mrb[0].mxu0
      %v3447 = vadd.f32 %v2010, %v3446
      %v3448 = vpop.f32.mrb[0].mxu0
      %v3449 = vadd.f32 %v2014, %v3448
      %v3450 = vpop.f32.mrb[0].mxu0
      %v3451 = vadd.f32 %v2010, %v3450
      %v3452 = vpop.f32.mrb[0].mxu0
      %v3453 = vadd.f32 %v2014, %v3452
      %3454 = vdwg.mxu0
      %3455 = vmatprep.subr.bf16.mxu0 %v2671
      %3456 = vmatpush1.bf16.msra.mxu0 %v2670
      %3457 = vmatprep.subr.bf16.mxu0 %v2678
      %3458 = vmatpush1.bf16.msra.mxu0 %v2677
      %3459 = vmatprep.subr.bf16.mxu0 %v2685
      %3460 = vmatpush1.bf16.msra.mxu0 %v2684
      %3461 = vmatprep.subr.bf16.mxu0 %v2692
      %3462 = vmatpush1.bf16.msra.mxu0 %v2691
      %3463 = vmatprep.subr.bf16.mxu0 %v2699
      %3464 = vmatpush1.bf16.msra.mxu0 %v2698
      %3465 = vmatprep.subr.bf16.mxu0 %v2706
      %3466 = vmatpush1.bf16.msra.mxu0 %v2705
      %3467 = vmatprep.subr.bf16.mxu0 %v2713
      %3468 = vmatpush1.bf16.msra.mxu0 %v2712
      %3469 = vmatprep.subr.bf16.mxu0 %v2720
      %3470 = vmatpush1.bf16.msra.mxu0 %v2719
      %3471 = vmatprep.subr.bf16.mxu0 0
      %3472 = vmatpush1.bf16.msra.mxu0 0
      %3473 = vmatprep.subr.bf16.mxu0 0
      %3474 = vmatpush1.bf16.msra.mxu0 0
      %3475 = vmatprep.subr.bf16.mxu0 0
      %3476 = vmatpush1.bf16.msra.mxu0 0
      %3477 = vmatprep.subr.bf16.mxu0 0
      %3478 = vmatpush1.bf16.msra.mxu0 0
      %3479 = vmatprep.subr.bf16.mxu0 0
      %3480 = vmatpush1.bf16.msra.mxu0 0
      %3481 = vmatprep.subr.bf16.mxu0 0
      %3482 = vmatpush1.bf16.msra.mxu0 0
      %3483 = vmatprep.subr.bf16.mxu0 0
      %3484 = vmatpush1.bf16.msra.mxu0 0
      %3485 = vmatprep.subr.bf16.mxu0 0
      %3486 = vmatpush1.bf16.msra.mxu0 0
      %3487 = vmatprep.mubr.bf16.mxu0 0
      %3488 = vmatmul.mubr.bf16.gmra.mrb[0].mxu0 %v1775
      %v3489 = vpop.f32.mrb[0].mxu0
      %v3490 = vadd.f32 %v3377, %v3489
      %v3491 = vpop.f32.mrb[0].mxu0
      %v3492 = vadd.f32 %v3379, %v3491
      %v3493 = vpop.f32.mrb[0].mxu0
      %v3494 = vadd.f32 %v3381, %v3493
      %v3495 = vpop.f32.mrb[0].mxu0
      %v3496 = vadd.f32 %v3383, %v3495
      %3497 = vmatprep.mubr.bf16.mxu0 0
      %3498 = vmatmul.mubr.bf16.gmra.mrb[0].mxu0 %v1778
      %v3499 = vpop.f32.mrb[0].mxu0
      %v3500 = vadd.f32 %v3387, %v3499
      %v3501 = vpop.f32.mrb[0].mxu0
      %v3502 = vadd.f32 %v3389, %v3501
      %v3503 = vpop.f32.mrb[0].mxu0
      %v3504 = vadd.f32 %v3391, %v3503
      %v3505 = vpop.f32.mrb[0].mxu0
      %v3506 = vadd.f32 %v3393, %v3505
      %3507 = vmatprep.mubr.bf16.mxu0 0
      %3508 = vmatmul.mubr.bf16.gmra.mrb[0].mxu0 %v1781
      %v3509 = vpop.f32.mrb[0].mxu0
      %v3510 = vadd.f32 %v3397, %v3509
      %v3511 = vpop.f32.mrb[0].mxu0
      %v3512 = vadd.f32 %v3399, %v3511
      %v3513 = vpop.f32.mrb[0].mxu0
      %v3514 = vadd.f32 %v3401, %v3513
      %v3515 = vpop.f32.mrb[0].mxu0
      %v3516 = vadd.f32 %v3403, %v3515
      %3517 = vmatprep.mubr.bf16.mxu0 0
      %3518 = vmatmul.mubr.bf16.gmra.mrb[0].mxu0 %v1784
      %v3519 = vpop.f32.mrb[0].mxu0
      %v3520 = vadd.f32 %v3407, %v3519
      %v3521 = vpop.f32.mrb[0].mxu0
      %v3522 = vadd.f32 %v3409, %v3521
      %v3523 = vpop.f32.mrb[0].mxu0
      %v3524 = vadd.f32 %v3411, %v3523
      %v3525 = vpop.f32.mrb[0].mxu0
      %v3526 = vadd.f32 %v3413, %v3525
      %3527 = vmatprep.mubr.bf16.mxu0 0
      %3528 = vmatmul.mubr.bf16.gmra.mrb[0].mxu0 %v1787
      %v3529 = vpop.f32.mrb[0].mxu0
      %v3530 = vadd.f32 %v3417, %v3529
      %v3531 = vpop.f32.mrb[0].mxu0
      %v3532 = vadd.f32 %v3419, %v3531
      %v3533 = vpop.f32.mrb[0].mxu0
      %v3534 = vadd.f32 %v3421, %v3533
      %v3535 = vpop.f32.mrb[0].mxu0
      %v3536 = vadd.f32 %v3423, %v3535
      %3537 = vmatprep.mubr.bf16.mxu0 0
      %3538 = vmatmul.mubr.bf16.gmra.mrb[0].mxu0 %v1790
      %v3539 = vpop.f32.mrb[0].mxu0
      %v3540 = vadd.f32 %v3427, %v3539
      %v3541 = vpop.f32.mrb[0].mxu0
      %v3542 = vadd.f32 %v3429, %v3541
      %v3543 = vpop.f32.mrb[0].mxu0
      %v3544 = vadd.f32 %v3431, %v3543
      %v3545 = vpop.f32.mrb[0].mxu0
      %v3546 = vadd.f32 %v3433, %v3545
      %3547 = vmatprep.mubr.bf16.mxu0 0
      %3548 = vmatmul.mubr.bf16.gmra.mrb[0].mxu0 %v1793
      %v3549 = vpop.f32.mrb[0].mxu0
      %v3550 = vadd.f32 %v3437, %v3549
      %v3551 = vpop.f32.mrb[0].mxu0
      %v3552 = vadd.f32 %v3439, %v3551
      %v3553 = vpop.f32.mrb[0].mxu0
      %v3554 = vadd.f32 %v3441, %v3553
      %v3555 = vpop.f32.mrb[0].mxu0
      %v3556 = vadd.f32 %v3443, %v3555
      %3557 = vmatprep.mubr.bf16.mxu0 0
      %3558 = vmatmul.mubr.bf16.gmra.mrb[0].mxu0 %v1796
      %v3559 = vpop.f32.mrb[0].mxu0
      %v3560 = vadd.f32 %v3447, %v3559
      %v3561 = vpop.f32.mrb[0].mxu0
      %v3562 = vadd.f32 %v3449, %v3561
      %v3563 = vpop.f32.mrb[0].mxu0
      %v3564 = vadd.f32 %v3451, %v3563
      %v3565 = vpop.f32.mrb[0].mxu0
      %v3566 = vadd.f32 %v3453, %v3565
      %3567 = vdwg.mxu0
      %3568 = vmatprep.subr.bf16.mxu0 0
      %3569 = vmatpush1.bf16.msra.mxu0 %v2560
      %3570 = vmatprep.subr.bf16.mxu0 0
      %3571 = vmatpush1.bf16.msra.mxu0 %v2567
      %3572 = vmatprep.subr.bf16.mxu0 0
      %3573 = vmatpush1.bf16.msra.mxu0 %v2574
      %3574 = vmatprep.subr.bf16.mxu0 0
      %3575 = vmatpush1.bf16.msra.mxu0 %v2581
      %3576 = vmatprep.subr.bf16.mxu0 0
      %3577 = vmatpush1.bf16.msra.mxu0 %v2588
      %3578 = vmatprep.subr.bf16.mxu0 0
      %3579 = vmatpush1.bf16.msra.mxu0 %v2595
      %3580 = vmatprep.subr.bf16.mxu0 0
      %3581 = vmatpush1.bf16.msra.mxu0 %v2602
      %3582 = vmatprep.subr.bf16.mxu0 0
      %3583 = vmatpush1.bf16.msra.mxu0 %v2609
      %3584 = vmatprep.subr.bf16.mxu0 0
      %3585 = vmatpush1.bf16.msra.mxu0 %v2616
      %3586 = vmatprep.subr.bf16.mxu0 0
      %3587 = vmatpush1.bf16.msra.mxu0 %v2623
      %3588 = vmatprep.subr.bf16.mxu0 0
      %3589 = vmatpush1.bf16.msra.mxu0 %v2630
      %3590 = vmatprep.subr.bf16.mxu0 0
      %3591 = vmatpush1.bf16.msra.mxu0 %v2637
      %3592 = vmatprep.subr.bf16.mxu0 0
      %3593 = vmatpush1.bf16.msra.mxu0 %v2644
      %3594 = vmatprep.subr.bf16.mxu0 0
      %3595 = vmatpush1.bf16.msra.mxu0 %v2651
      %3596 = vmatprep.subr.bf16.mxu0 0
      %3597 = vmatpush1.bf16.msra.mxu0 %v2658
      %3598 = vmatprep.subr.bf16.mxu0 0
      %3599 = vmatpush1.bf16.msra.mxu0 %v2665
      %3600 = vmatprep.mubr.bf16.mxu0 %v1774
      %3601 = vmatmul.mubr.bf16.gmra.mrb[0].mxu0 %v1773
      %v3602 = vpop.f32.mrb[0].mxu0
      %v3603 = vadd.f32 %v2018, %v3602
      %v3604 = vpop.f32.mrb[0].mxu0
      %v3605 = vpop.f32.mrb[0].mxu0
      %v3606 = vadd.f32 %v2018, %v3605
      %v3607 = vpop.f32.mrb[0].mxu0
      %3608 = vmatprep.mubr.bf16.mxu0 %v1777
      %3609 = vmatmul.mubr.bf16.gmra.mrb[0].mxu0 %v1776
      %v3610 = vpop.f32.mrb[0].mxu0
      %v3611 = vadd.f32 %v2018, %v3610
      %v3612 = vpop.f32.mrb[0].mxu0
      %v3613 = vpop.f32.mrb[0].mxu0
      %v3614 = vadd.f32 %v2018, %v3613
      %v3615 = vpop.f32.mrb[0].mxu0
      %3616 = vmatprep.mubr.bf16.mxu0 %v1780
      %3617 = vmatmul.mubr.bf16.gmra.mrb[0].mxu0 %v1779
      %v3618 = vpop.f32.mrb[0].mxu0
      %v3619 = vadd.f32 %v2018, %v3618
      %v3620 = vpop.f32.mrb[0].mxu0
      %v3621 = vpop.f32.mrb[0].mxu0
      %v3622 = vadd.f32 %v2018, %v3621
      %v3623 = vpop.f32.mrb[0].mxu0
      %3624 = vmatprep.mubr.bf16.mxu0 %v1783
      %3625 = vmatmul.mubr.bf16.gmra.mrb[0].mxu0 %v1782
      %v3626 = vpop.f32.mrb[0].mxu0
      %v3627 = vadd.f32 %v2018, %v3626
      %v3628 = vpop.f32.mrb[0].mxu0
      %v3629 = vpop.f32.mrb[0].mxu0
      %v3630 = vadd.f32 %v2018, %v3629
      %v3631 = vpop.f32.mrb[0].mxu0
      %3632 = vmatprep.mubr.bf16.mxu0 %v1786
      %3633 = vmatmul.mubr.bf16.gmra.mrb[0].mxu0 %v1785
      %v3634 = vpop.f32.mrb[0].mxu0
      %v3635 = vadd.f32 %v2018, %v3634
      %v3636 = vpop.f32.mrb[0].mxu0
      %v3637 = vpop.f32.mrb[0].mxu0
      %v3638 = vadd.f32 %v2018, %v3637
      %v3639 = vpop.f32.mrb[0].mxu0
      %3640 = vmatprep.mubr.bf16.mxu0 %v1789
      %3641 = vmatmul.mubr.bf16.gmra.mrb[0].mxu0 %v1788
      %v3642 = vpop.f32.mrb[0].mxu0
      %v3643 = vadd.f32 %v2018, %v3642
      %v3644 = vpop.f32.mrb[0].mxu0
      %v3645 = vpop.f32.mrb[0].mxu0
      %v3646 = vadd.f32 %v2018, %v3645
      %v3647 = vpop.f32.mrb[0].mxu0
      %3648 = vmatprep.mubr.bf16.mxu0 %v1792
      %3649 = vmatmul.mubr.bf16.gmra.mrb[0].mxu0 %v1791
      %v3650 = vpop.f32.mrb[0].mxu0
      %v3651 = vadd.f32 %v2018, %v3650
      %v3652 = vpop.f32.mrb[0].mxu0
      %v3653 = vpop.f32.mrb[0].mxu0
      %v3654 = vadd.f32 %v2018, %v3653
      %v3655 = vpop.f32.mrb[0].mxu0
      %3656 = vmatprep.mubr.bf16.mxu0 %v1795
      %3657 = vmatmul.mubr.bf16.gmra.mrb[0].mxu0 %v1794
      %v3658 = vpop.f32.mrb[0].mxu0
      %v3659 = vadd.f32 %v2018, %v3658
      %v3660 = vpop.f32.mrb[0].mxu0
      %v3661 = vpop.f32.mrb[0].mxu0
      %v3662 = vadd.f32 %v2018, %v3661
      %v3663 = vpop.f32.mrb[0].mxu0
      %3664 = vdwg.mxu0
      %3665 = vmatprep.subr.bf16.mxu0 0
      %3666 = vmatpush1.bf16.msra.mxu0 %v2672
      %3667 = vmatprep.subr.bf16.mxu0 0
      %3668 = vmatpush1.bf16.msra.mxu0 %v2679
      %3669 = vmatprep.subr.bf16.mxu0 0
      %3670 = vmatpush1.bf16.msra.mxu0 %v2686
      %3671 = vmatprep.subr.bf16.mxu0 0
      %3672 = vmatpush1.bf16.msra.mxu0 %v2693
      %3673 = vmatprep.subr.bf16.mxu0 0
      %3674 = vmatpush1.bf16.msra.mxu0 %v2700
      %3675 = vmatprep.subr.bf16.mxu0 0
      %3676 = vmatpush1.bf16.msra.mxu0 %v2707
      %3677 = vmatprep.subr.bf16.mxu0 0
      %3678 = vmatpush1.bf16.msra.mxu0 %v2714
      %3679 = vmatprep.subr.bf16.mxu0 0
      %3680 = vmatpush1.bf16.msra.mxu0 %v2721
      %3681 = vmatprep.subr.bf16.mxu0 0
      %3682 = vmatpush1.bf16.msra.mxu0 0
      %3683 = vmatprep.subr.bf16.mxu0 0
      %3684 = vmatpush1.bf16.msra.mxu0 0
      %3685 = vmatprep.subr.bf16.mxu0 0
      %3686 = vmatpush1.bf16.msra.mxu0 0
      %3687 = vmatprep.subr.bf16.mxu0 0
      %3688 = vmatpush1.bf16.msra.mxu0 0
      %3689 = vmatprep.subr.bf16.mxu0 0
      %3690 = vmatpush1.bf16.msra.mxu0 0
      %3691 = vmatprep.subr.bf16.mxu0 0
      %3692 = vmatpush1.bf16.msra.mxu0 0
      %3693 = vmatprep.subr.bf16.mxu0 0
      %3694 = vmatpush1.bf16.msra.mxu0 0
      %3695 = vmatprep.subr.bf16.mxu0 0
      %3696 = vmatpush1.bf16.msra.mxu0 0
      %3697 = vmatprep.mubr.bf16.mxu0 0
      %3698 = vmatmul.mubr.bf16.gmra.mrb[0].mxu0 %v1775
      %v3699 = vpop.f32.mrb[0].mxu0
      %v3700 = vadd.f32 %v3603, %v3699
      %v3701 = vpop.f32.mrb[0].mxu0
      %v3702 = vpop.f32.mrb[0].mxu0
      %v3703 = vadd.f32 %v3606, %v3702
      %v3704 = vpop.f32.mrb[0].mxu0
      %3705 = vmatprep.mubr.bf16.mxu0 0
      %3706 = vmatmul.mubr.bf16.gmra.mrb[0].mxu0 %v1778
      %v3707 = vpop.f32.mrb[0].mxu0
      %v3708 = vadd.f32 %v3611, %v3707
      %v3709 = vpop.f32.mrb[0].mxu0
      %v3710 = vpop.f32.mrb[0].mxu0
      %v3711 = vadd.f32 %v3614, %v3710
      %v3712 = vpop.f32.mrb[0].mxu0
      %3713 = vmatprep.mubr.bf16.mxu0 0
      %3714 = vmatmul.mubr.bf16.gmra.mrb[0].mxu0 %v1781
      %v3715 = vpop.f32.mrb[0].mxu0
      %v3716 = vadd.f32 %v3619, %v3715
      %v3717 = vpop.f32.mrb[0].mxu0
      %v3718 = vpop.f32.mrb[0].mxu0
      %v3719 = vadd.f32 %v3622, %v3718
      %v3720 = vpop.f32.mrb[0].mxu0
      %3721 = vmatprep.mubr.bf16.mxu0 0
      %3722 = vmatmul.mubr.bf16.gmra.mrb[0].mxu0 %v1784
      %v3723 = vpop.f32.mrb[0].mxu0
      %v3724 = vadd.f32 %v3627, %v3723
      %v3725 = vpop.f32.mrb[0].mxu0
      %v3726 = vpop.f32.mrb[0].mxu0
      %v3727 = vadd.f32 %v3630, %v3726
      %v3728 = vpop.f32.mrb[0].mxu0
      %3729 = vmatprep.mubr.bf16.mxu0 0
      %3730 = vmatmul.mubr.bf16.gmra.mrb[0].mxu0 %v1787
      %v3731 = vpop.f32.mrb[0].mxu0
      %v3732 = vadd.f32 %v3635, %v3731
      %v3733 = vpop.f32.mrb[0].mxu0
      %v3734 = vpop.f32.mrb[0].mxu0
      %v3735 = vadd.f32 %v3638, %v3734
      %v3736 = vpop.f32.mrb[0].mxu0
      %3737 = vmatprep.mubr.bf16.mxu0 0
      %3738 = vmatmul.mubr.bf16.gmra.mrb[0].mxu0 %v1790
      %v3739 = vpop.f32.mrb[0].mxu0
      %v3740 = vadd.f32 %v3643, %v3739
      %v3741 = vpop.f32.mrb[0].mxu0
      %v3742 = vpop.f32.mrb[0].mxu0
      %v3743 = vadd.f32 %v3646, %v3742
      %v3744 = vpop.f32.mrb[0].mxu0
      %3745 = vmatprep.mubr.bf16.mxu0 0
      %3746 = vmatmul.mubr.bf16.gmra.mrb[0].mxu0 %v1793
      %v3747 = vpop.f32.mrb[0].mxu0
      %v3748 = vadd.f32 %v3651, %v3747
      %v3749 = vpop.f32.mrb[0].mxu0
      %v3750 = vpop.f32.mrb[0].mxu0
      %v3751 = vadd.f32 %v3654, %v3750
      %v3752 = vpop.f32.mrb[0].mxu0
      %3753 = vmatprep.mubr.bf16.mxu0 0
      %3754 = vmatmul.mubr.bf16.gmra.mrb[0].mxu0 %v1796
      %v3755 = vpop.f32.mrb[0].mxu0
      %v3756 = vadd.f32 %v3659, %v3755
      %v3757 = vpop.f32.mrb[0].mxu0
      %v3758 = vpop.f32.mrb[0].mxu0
      %v3759 = vadd.f32 %v3662, %v3758
      %v3760 = vpop.f32.mrb[0].mxu0
      %3761 = vdwg.mxu0
      %v3762 = vxor.u32 %v3038, 2147483648
      %v3763 = vxor.u32 %v3040, 2147483648
      %v3764 = vxor.u32 %v3264, 2147483648
      %v3765 = vxor.u32 %v3266, 2147483648
      %v3766 = vxor.u32 %v3490, 2147483648
      %v3767 = vxor.u32 %v3492, 2147483648
      %v3768 = vxor.u32 %v3700, 2147483648
      %v3769 = vxor.u32 %v3042, 2147483648
      %v3770 = vxor.u32 %v3044, 2147483648
      %v3771 = vxor.u32 %v3268, 2147483648
      %v3772 = vxor.u32 %v3270, 2147483648
      %v3773 = vxor.u32 %v3494, 2147483648
      %v3774 = vxor.u32 %v3496, 2147483648
      %v3775 = vxor.u32 %v3703, 2147483648
      %v3776 = vxor.u32 %v3048, 2147483648
      %v3777 = vxor.u32 %v3050, 2147483648
      %v3778 = vxor.u32 %v3274, 2147483648
      %v3779 = vxor.u32 %v3276, 2147483648
      %v3780 = vxor.u32 %v3500, 2147483648
      %v3781 = vxor.u32 %v3502, 2147483648
      %v3782 = vxor.u32 %v3708, 2147483648
      %v3783 = vxor.u32 %v3052, 2147483648
      %v3784 = vxor.u32 %v3054, 2147483648
      %v3785 = vxor.u32 %v3278, 2147483648
      %v3786 = vxor.u32 %v3280, 2147483648
      %v3787 = vxor.u32 %v3504, 2147483648
      %v3788 = vxor.u32 %v3506, 2147483648
      %v3789 = vxor.u32 %v3711, 2147483648
      %v3790 = vxor.u32 %v3058, 2147483648
      %v3791 = vxor.u32 %v3060, 2147483648
      %v3792 = vxor.u32 %v3284, 2147483648
      %v3793 = vxor.u32 %v3286, 2147483648
      %v3794 = vxor.u32 %v3510, 2147483648
      %v3795 = vxor.u32 %v3512, 2147483648
      %v3796 = vxor.u32 %v3716, 2147483648
      %v3797 = vxor.u32 %v3062, 2147483648
      %v3798 = vxor.u32 %v3064, 2147483648
      %v3799 = vxor.u32 %v3288, 2147483648
      %v3800 = vxor.u32 %v3290, 2147483648
      %v3801 = vxor.u32 %v3514, 2147483648
      %v3802 = vxor.u32 %v3516, 2147483648
      %v3803 = vxor.u32 %v3719, 2147483648
      %v3804 = vxor.u32 %v3068, 2147483648
      %v3805 = vxor.u32 %v3070, 2147483648
      %v3806 = vxor.u32 %v3294, 2147483648
      %v3807 = vxor.u32 %v3296, 2147483648
      %v3808 = vxor.u32 %v3520, 2147483648
      %v3809 = vxor.u32 %v3522, 2147483648
      %v3810 = vxor.u32 %v3724, 2147483648
      %v3811 = vxor.u32 %v3072, 2147483648
      %v3812 = vxor.u32 %v3074, 2147483648
      %v3813 = vxor.u32 %v3298, 2147483648
      %v3814 = vxor.u32 %v3300, 2147483648
      %v3815 = vxor.u32 %v3524, 2147483648
      %v3816 = vxor.u32 %v3526, 2147483648
      %v3817 = vxor.u32 %v3727, 2147483648
      %v3818 = vxor.u32 %v3078, 2147483648
      %v3819 = vxor.u32 %v3080, 2147483648
      %v3820 = vxor.u32 %v3304, 2147483648
      %v3821 = vxor.u32 %v3306, 2147483648
      %v3822 = vxor.u32 %v3530, 2147483648
      %v3823 = vxor.u32 %v3532, 2147483648
      %v3824 = vxor.u32 %v3732, 2147483648
      %v3825 = vxor.u32 %v3082, 2147483648
      %v3826 = vxor.u32 %v3084, 2147483648
      %v3827 = vxor.u32 %v3308, 2147483648
      %v3828 = vxor.u32 %v3310, 2147483648
      %v3829 = vxor.u32 %v3534, 2147483648
      %v3830 = vxor.u32 %v3536, 2147483648
      %v3831 = vxor.u32 %v3735, 2147483648
      %v3832 = vxor.u32 %v3088, 2147483648
      %v3833 = vxor.u32 %v3090, 2147483648
      %v3834 = vxor.u32 %v3314, 2147483648
      %v3835 = vxor.u32 %v3316, 2147483648
      %v3836 = vxor.u32 %v3540, 2147483648
      %v3837 = vxor.u32 %v3542, 2147483648
      %v3838 = vxor.u32 %v3740, 2147483648
      %v3839 = vxor.u32 %v3092, 2147483648
      %v3840 = vxor.u32 %v3094, 2147483648
      %v3841 = vxor.u32 %v3318, 2147483648
      %v3842 = vxor.u32 %v3320, 2147483648
      %v3843 = vxor.u32 %v3544, 2147483648
      %v3844 = vxor.u32 %v3546, 2147483648
      %v3845 = vxor.u32 %v3743, 2147483648
      %v3846 = vxor.u32 %v3098, 2147483648
      %v3847 = vxor.u32 %v3100, 2147483648
      %v3848 = vxor.u32 %v3324, 2147483648
      %v3849 = vxor.u32 %v3326, 2147483648
      %v3850 = vxor.u32 %v3550, 2147483648
      %v3851 = vxor.u32 %v3552, 2147483648
      %v3852 = vxor.u32 %v3748, 2147483648
      %v3853 = vxor.u32 %v3102, 2147483648
      %v3854 = vxor.u32 %v3104, 2147483648
      %v3855 = vxor.u32 %v3328, 2147483648
      %v3856 = vxor.u32 %v3330, 2147483648
      %v3857 = vxor.u32 %v3554, 2147483648
      %v3858 = vxor.u32 %v3556, 2147483648
      %v3859 = vxor.u32 %v3751, 2147483648
      %v3860 = vxor.u32 %v3108, 2147483648
      %v3861 = vxor.u32 %v3110, 2147483648
      %v3862 = vxor.u32 %v3334, 2147483648
      %v3863 = vxor.u32 %v3336, 2147483648
      %v3864 = vxor.u32 %v3560, 2147483648
      %v3865 = vxor.u32 %v3562, 2147483648
      %v3866 = vxor.u32 %v3756, 2147483648
      %v3867 = vxor.u32 %v3112, 2147483648
      %v3868 = vxor.u32 %v3114, 2147483648
      %v3869 = vxor.u32 %v3338, 2147483648
      %v3870 = vxor.u32 %v3340, 2147483648
      %v3871 = vxor.u32 %v3564, 2147483648
      %v3872 = vxor.u32 %v3566, 2147483648
      %v3873 = vxor.u32 %v3759, 2147483648
      %v3874 = vmul.f32 %v3762, 1.442695
      %v3875 = vpow.pop %v3874
      %v3876 = vmul.f32 %v3763, 1.442695
      %v3877 = vpow.pop %v3876
      %v3878 = vmul.f32 %v3764, 1.442695
      %v3879 = vpow.pop %v3878
      %v3880 = vmul.f32 %v3765, 1.442695
      %v3881 = vpow.pop %v3880
      %v3882 = vmul.f32 %v3766, 1.442695
      %v3883 = vpow.pop %v3882
      %v3884 = vmul.f32 %v3767, 1.442695
      %v3885 = vpow.pop %v3884
      %v3886 = vmul.f32 %v3768, 1.442695
      %v3887 = vpow.pop %v3886
      %v3888 = vmul.f32 %v3769, 1.442695
      %v3889 = vpow.pop %v3888
      %v3890 = vmul.f32 %v3770, 1.442695
      %v3891 = vpow.pop %v3890
      %v3892 = vmul.f32 %v3771, 1.442695
      %v3893 = vpow.pop %v3892
      %v3894 = vmul.f32 %v3772, 1.442695
      %v3895 = vpow.pop %v3894
      %v3896 = vmul.f32 %v3773, 1.442695
      %v3897 = vpow.pop %v3896
      %v3898 = vmul.f32 %v3774, 1.442695
      %v3899 = vpow.pop %v3898
      %v3900 = vmul.f32 %v3775, 1.442695
      %v3901 = vpow.pop %v3900
      %v3902 = vmul.f32 %v3776, 1.442695
      %v3903 = vpow.pop %v3902
      %v3904 = vmul.f32 %v3777, 1.442695
      %v3905 = vpow.pop %v3904
      %v3906 = vmul.f32 %v3778, 1.442695
      %v3907 = vpow.pop %v3906
      %v3908 = vmul.f32 %v3779, 1.442695
      %v3909 = vpow.pop %v3908
      %v3910 = vmul.f32 %v3780, 1.442695
      %v3911 = vpow.pop %v3910
      %v3912 = vmul.f32 %v3781, 1.442695
      %v3913 = vpow.pop %v3912
      %v3914 = vmul.f32 %v3782, 1.442695
      %v3915 = vpow.pop %v3914
      %v3916 = vmul.f32 %v3783, 1.442695
      %v3917 = vpow.pop %v3916
      %v3918 = vmul.f32 %v3784, 1.442695
      %v3919 = vpow.pop %v3918
      %v3920 = vmul.f32 %v3785, 1.442695
      %v3921 = vpow.pop %v3920
      %v3922 = vmul.f32 %v3786, 1.442695
      %v3923 = vpow.pop %v3922
      %v3924 = vmul.f32 %v3787, 1.442695
      %v3925 = vpow.pop %v3924
      %v3926 = vmul.f32 %v3788, 1.442695
      %v3927 = vpow.pop %v3926
      %v3928 = vmul.f32 %v3789, 1.442695
      %v3929 = vpow.pop %v3928
      %v3930 = vmul.f32 %v3790, 1.442695
      %v3931 = vpow.pop %v3930
      %v3932 = vmul.f32 %v3791, 1.442695
      %v3933 = vpow.pop %v3932
      %v3934 = vmul.f32 %v3792, 1.442695
      %v3935 = vpow.pop %v3934
      %v3936 = vmul.f32 %v3793, 1.442695
      %v3937 = vpow.pop %v3936
      %v3938 = vmul.f32 %v3794, 1.442695
      %v3939 = vpow.pop %v3938
      %v3940 = vmul.f32 %v3795, 1.442695
      %v3941 = vpow.pop %v3940
      %v3942 = vmul.f32 %v3796, 1.442695
      %v3943 = vpow.pop %v3942
      %v3944 = vmul.f32 %v3797, 1.442695
      %v3945 = vpow.pop %v3944
      %v3946 = vmul.f32 %v3798, 1.442695
      %v3947 = vpow.pop %v3946
      %v3948 = vmul.f32 %v3799, 1.442695
      %v3949 = vpow.pop %v3948
      %v3950 = vmul.f32 %v3800, 1.442695
      %v3951 = vpow.pop %v3950
      %v3952 = vmul.f32 %v3801, 1.442695
      %v3953 = vpow.pop %v3952
      %v3954 = vmul.f32 %v3802, 1.442695
      %v3955 = vpow.pop %v3954
      %v3956 = vmul.f32 %v3803, 1.442695
      %v3957 = vpow.pop %v3956
      %v3958 = vmul.f32 %v3804, 1.442695
      %v3959 = vpow.pop %v3958
      %v3960 = vmul.f32 %v3805, 1.442695
      %v3961 = vpow.pop %v3960
      %v3962 = vmul.f32 %v3806, 1.442695
      %v3963 = vpow.pop %v3962
      %v3964 = vmul.f32 %v3807, 1.442695
      %v3965 = vpow.pop %v3964
      %v3966 = vmul.f32 %v3808, 1.442695
      %v3967 = vpow.pop %v3966
      %v3968 = vmul.f32 %v3809, 1.442695
      %v3969 = vpow.pop %v3968
      %v3970 = vmul.f32 %v3810, 1.442695
      %v3971 = vpow.pop %v3970
      %v3972 = vmul.f32 %v3811, 1.442695
      %v3973 = vpow.pop %v3972
      %v3974 = vmul.f32 %v3812, 1.442695
      %v3975 = vpow.pop %v3974
      %v3976 = vmul.f32 %v3813, 1.442695
      %v3977 = vpow.pop %v3976
      %v3978 = vmul.f32 %v3814, 1.442695
      %v3979 = vpow.pop %v3978
      %v3980 = vmul.f32 %v3815, 1.442695
      %v3981 = vpow.pop %v3980
      %v3982 = vmul.f32 %v3816, 1.442695
      %v3983 = vpow.pop %v3982
      %v3984 = vmul.f32 %v3817, 1.442695
      %v3985 = vpow.pop %v3984
      %v3986 = vmul.f32 %v3818, 1.442695
      %v3987 = vpow.pop %v3986
      %v3988 = vmul.f32 %v3819, 1.442695
      %v3989 = vpow.pop %v3988
      %v3990 = vmul.f32 %v3820, 1.442695
      %v3991 = vpow.pop %v3990
      %v3992 = vmul.f32 %v3821, 1.442695
      %v3993 = vpow.pop %v3992
      %v3994 = vmul.f32 %v3822, 1.442695
      %v3995 = vpow.pop %v3994
      %v3996 = vmul.f32 %v3823, 1.442695
      %v3997 = vpow.pop %v3996
      %v3998 = vmul.f32 %v3824, 1.442695
      %v3999 = vpow.pop %v3998
      %v4000 = vmul.f32 %v3825, 1.442695
      %v4001 = vpow.pop %v4000
      %v4002 = vmul.f32 %v3826, 1.442695
      %v4003 = vpow.pop %v4002
      %v4004 = vmul.f32 %v3827, 1.442695
      %v4005 = vpow.pop %v4004
      %v4006 = vmul.f32 %v3828, 1.442695
      %v4007 = vpow.pop %v4006
      %v4008 = vmul.f32 %v3829, 1.442695
      %v4009 = vpow.pop %v4008
      %v4010 = vmul.f32 %v3830, 1.442695
      %v4011 = vpow.pop %v4010
      %v4012 = vmul.f32 %v3831, 1.442695
      %v4013 = vpow.pop %v4012
      %v4014 = vmul.f32 %v3832, 1.442695
      %v4015 = vpow.pop %v4014
      %v4016 = vmul.f32 %v3833, 1.442695
      %v4017 = vpow.pop %v4016
      %v4018 = vmul.f32 %v3834, 1.442695
      %v4019 = vpow.pop %v4018
      %v4020 = vmul.f32 %v3835, 1.442695
      %v4021 = vpow.pop %v4020
      %v4022 = vmul.f32 %v3836, 1.442695
      %v4023 = vpow.pop %v4022
      %v4024 = vmul.f32 %v3837, 1.442695
      %v4025 = vpow.pop %v4024
      %v4026 = vmul.f32 %v3838, 1.442695
      %v4027 = vpow.pop %v4026
      %v4028 = vmul.f32 %v3839, 1.442695
      %v4029 = vpow.pop %v4028
      %v4030 = vmul.f32 %v3840, 1.442695
      %v4031 = vpow.pop %v4030
      %v4032 = vmul.f32 %v3841, 1.442695
      %v4033 = vpow.pop %v4032
      %v4034 = vmul.f32 %v3842, 1.442695
      %v4035 = vpow.pop %v4034
      %v4036 = vmul.f32 %v3843, 1.442695
      %v4037 = vpow.pop %v4036
      %v4038 = vmul.f32 %v3844, 1.442695
      %v4039 = vpow.pop %v4038
      %v4040 = vmul.f32 %v3845, 1.442695
      %v4041 = vpow.pop %v4040
      %v4042 = vmul.f32 %v3846, 1.442695
      %v4043 = vpow.pop %v4042
      %v4044 = vmul.f32 %v3847, 1.442695
      %v4045 = vpow.pop %v4044
      %v4046 = vmul.f32 %v3848, 1.442695
      %v4047 = vpow.pop %v4046
      %v4048 = vmul.f32 %v3849, 1.442695
      %v4049 = vpow.pop %v4048
      %v4050 = vmul.f32 %v3850, 1.442695
      %v4051 = vpow.pop %v4050
      %v4052 = vmul.f32 %v3851, 1.442695
      %v4053 = vpow.pop %v4052
      %v4054 = vmul.f32 %v3852, 1.442695
      %v4055 = vpow.pop %v4054
      %v4056 = vmul.f32 %v3853, 1.442695
      %v4057 = vpow.pop %v4056
      %v4058 = vmul.f32 %v3854, 1.442695
      %v4059 = vpow.pop %v4058
      %v4060 = vmul.f32 %v3855, 1.442695
      %v4061 = vpow.pop %v4060
      %v4062 = vmul.f32 %v3856, 1.442695
      %v4063 = vpow.pop %v4062
      %v4064 = vmul.f32 %v3857, 1.442695
      %v4065 = vpow.pop %v4064
      %v4066 = vmul.f32 %v3858, 1.442695
      %v4067 = vpow.pop %v4066
      %v4068 = vmul.f32 %v3859, 1.442695
      %v4069 = vpow.pop %v4068
      %v4070 = vmul.f32 %v3860, 1.442695
      %v4071 = vpow.pop %v4070
      %v4072 = vmul.f32 %v3861, 1.442695
      %v4073 = vpow.pop %v4072
      %v4074 = vmul.f32 %v3862, 1.442695
      %v4075 = vpow.pop %v4074
      %v4076 = vmul.f32 %v3863, 1.442695
      %v4077 = vpow.pop %v4076
      %v4078 = vmul.f32 %v3864, 1.442695
      %v4079 = vpow.pop %v4078
      %v4080 = vmul.f32 %v3865, 1.442695
      %v4081 = vpow.pop %v4080
      %v4082 = vmul.f32 %v3866, 1.442695
      %v4083 = vpow.pop %v4082
      %v4084 = vmul.f32 %v3867, 1.442695
      %v4085 = vpow.pop %v4084
      %v4086 = vmul.f32 %v3868, 1.442695
      %v4087 = vpow.pop %v4086
      %v4088 = vmul.f32 %v3869, 1.442695
      %v4089 = vpow.pop %v4088
      %v4090 = vmul.f32 %v3870, 1.442695
      %v4091 = vpow.pop %v4090
      %v4092 = vmul.f32 %v3871, 1.442695
      %v4093 = vpow.pop %v4092
      %v4094 = vmul.f32 %v3872, 1.442695
      %v4095 = vpow.pop %v4094
      %v4096 = vmul.f32 %v3873, 1.442695
      %v4097 = vpow.pop %v4096
      %v4098 = vadd.f32 %v3875, 1.0
      %v4099 = vadd.f32 %v3877, 1.0
      %v4100 = vadd.f32 %v3879, 1.0
      %v4101 = vadd.f32 %v3881, 1.0
      %v4102 = vadd.f32 %v3883, 1.0
      %v4103 = vadd.f32 %v3885, 1.0
      %v4104 = vadd.f32 %v3887, 1.0
      %v4105 = vadd.f32 %v3889, 1.0
      %v4106 = vadd.f32 %v3891, 1.0
      %v4107 = vadd.f32 %v3893, 1.0
      %v4108 = vadd.f32 %v3895, 1.0
      %v4109 = vadd.f32 %v3897, 1.0
      %v4110 = vadd.f32 %v3899, 1.0
      %v4111 = vadd.f32 %v3901, 1.0
      %v4112 = vadd.f32 %v3903, 1.0
      %v4113 = vadd.f32 %v3905, 1.0
      %v4114 = vadd.f32 %v3907, 1.0
      %v4115 = vadd.f32 %v3909, 1.0
      %v4116 = vadd.f32 %v3911, 1.0
      %v4117 = vadd.f32 %v3913, 1.0
      %v4118 = vadd.f32 %v3915, 1.0
      %v4119 = vadd.f32 %v3917, 1.0
      %v4120 = vadd.f32 %v3919, 1.0
      %v4121 = vadd.f32 %v3921, 1.0
      %v4122 = vadd.f32 %v3923, 1.0
      %v4123 = vadd.f32 %v3925, 1.0
      %v4124 = vadd.f32 %v3927, 1.0
      %v4125 = vadd.f32 %v3929, 1.0
      %v4126 = vadd.f32 %v3931, 1.0
      %v4127 = vadd.f32 %v3933, 1.0
      %v4128 = vadd.f32 %v3935, 1.0
      %v4129 = vadd.f32 %v3937, 1.0
      %v4130 = vadd.f32 %v3939, 1.0
      %v4131 = vadd.f32 %v3941, 1.0
      %v4132 = vadd.f32 %v3943, 1.0
      %v4133 = vadd.f32 %v3945, 1.0
      %v4134 = vadd.f32 %v3947, 1.0
      %v4135 = vadd.f32 %v3949, 1.0
      %v4136 = vadd.f32 %v3951, 1.0
      %v4137 = vadd.f32 %v3953, 1.0
      %v4138 = vadd.f32 %v3955, 1.0
      %v4139 = vadd.f32 %v3957, 1.0
      %v4140 = vadd.f32 %v3959, 1.0
      %v4141 = vadd.f32 %v3961, 1.0
      %v4142 = vadd.f32 %v3963, 1.0
      %v4143 = vadd.f32 %v3965, 1.0
      %v4144 = vadd.f32 %v3967, 1.0
      %v4145 = vadd.f32 %v3969, 1.0
      %v4146 = vadd.f32 %v3971, 1.0
      %v4147 = vadd.f32 %v3973, 1.0
      %v4148 = vadd.f32 %v3975, 1.0
      %v4149 = vadd.f32 %v3977, 1.0
      %v4150 = vadd.f32 %v3979, 1.0
      %v4151 = vadd.f32 %v3981, 1.0
      %v4152 = vadd.f32 %v3983, 1.0
      %v4153 = vadd.f32 %v3985, 1.0
      %v4154 = vadd.f32 %v3987, 1.0
      %v4155 = vadd.f32 %v3989, 1.0
      %v4156 = vadd.f32 %v3991, 1.0
      %v4157 = vadd.f32 %v3993, 1.0
      %v4158 = vadd.f32 %v3995, 1.0
      %v4159 = vadd.f32 %v3997, 1.0
      %v4160 = vadd.f32 %v3999, 1.0
      %v4161 = vadd.f32 %v4001, 1.0
      %v4162 = vadd.f32 %v4003, 1.0
      %v4163 = vadd.f32 %v4005, 1.0
      %v4164 = vadd.f32 %v4007, 1.0
      %v4165 = vadd.f32 %v4009, 1.0
      %v4166 = vadd.f32 %v4011, 1.0
      %v4167 = vadd.f32 %v4013, 1.0
      %v4168 = vadd.f32 %v4015, 1.0
      %v4169 = vadd.f32 %v4017, 1.0
      %v4170 = vadd.f32 %v4019, 1.0
      %v4171 = vadd.f32 %v4021, 1.0
      %v4172 = vadd.f32 %v4023, 1.0
      %v4173 = vadd.f32 %v4025, 1.0
      %v4174 = vadd.f32 %v4027, 1.0
      %v4175 = vadd.f32 %v4029, 1.0
      %v4176 = vadd.f32 %v4031, 1.0
      %v4177 = vadd.f32 %v4033, 1.0
      %v4178 = vadd.f32 %v4035, 1.0
      %v4179 = vadd.f32 %v4037, 1.0
      %v4180 = vadd.f32 %v4039, 1.0
      %v4181 = vadd.f32 %v4041, 1.0
      %v4182 = vadd.f32 %v4043, 1.0
      %v4183 = vadd.f32 %v4045, 1.0
      %v4184 = vadd.f32 %v4047, 1.0
      %v4185 = vadd.f32 %v4049, 1.0
      %v4186 = vadd.f32 %v4051, 1.0
      %v4187 = vadd.f32 %v4053, 1.0
      %v4188 = vadd.f32 %v4055, 1.0
      %v4189 = vadd.f32 %v4057, 1.0
      %v4190 = vadd.f32 %v4059, 1.0
      %v4191 = vadd.f32 %v4061, 1.0
      %v4192 = vadd.f32 %v4063, 1.0
      %v4193 = vadd.f32 %v4065, 1.0
      %v4194 = vadd.f32 %v4067, 1.0
      %v4195 = vadd.f32 %v4069, 1.0
      %v4196 = vadd.f32 %v4071, 1.0
      %v4197 = vadd.f32 %v4073, 1.0
      %v4198 = vadd.f32 %v4075, 1.0
      %v4199 = vadd.f32 %v4077, 1.0
      %v4200 = vadd.f32 %v4079, 1.0
      %v4201 = vadd.f32 %v4081, 1.0
      %v4202 = vadd.f32 %v4083, 1.0
      %v4203 = vadd.f32 %v4085, 1.0
      %v4204 = vadd.f32 %v4087, 1.0
      %v4205 = vadd.f32 %v4089, 1.0
      %v4206 = vadd.f32 %v4091, 1.0
      %v4207 = vadd.f32 %v4093, 1.0
      %v4208 = vadd.f32 %v4095, 1.0
      %v4209 = vadd.f32 %v4097, 1.0
      %v4210 = vrcp.pop %v4098
      %v4211 = vmul.f32 1.0, %v4210
      %v4212 = vrcp.pop %v4099
      %v4213 = vmul.f32 1.0, %v4212
      %v4214 = vrcp.pop %v4100
      %v4215 = vmul.f32 1.0, %v4214
      %v4216 = vrcp.pop %v4101
      %v4217 = vmul.f32 1.0, %v4216
      %v4218 = vrcp.pop %v4102
      %v4219 = vmul.f32 1.0, %v4218
      %v4220 = vrcp.pop %v4103
      %v4221 = vmul.f32 1.0, %v4220
      %v4222 = vrcp.pop %v4104
      %v4223 = vmul.f32 1.0, %v4222
      %v4224 = vrcp.pop %v4105
      %v4225 = vmul.f32 1.0, %v4224
      %v4226 = vrcp.pop %v4106
      %v4227 = vmul.f32 1.0, %v4226
      %v4228 = vrcp.pop %v4107
      %v4229 = vmul.f32 1.0, %v4228
      %v4230 = vrcp.pop %v4108
      %v4231 = vmul.f32 1.0, %v4230
      %v4232 = vrcp.pop %v4109
      %v4233 = vmul.f32 1.0, %v4232
      %v4234 = vrcp.pop %v4110
      %v4235 = vmul.f32 1.0, %v4234
      %v4236 = vrcp.pop %v4111
      %v4237 = vmul.f32 1.0, %v4236
      %v4238 = vrcp.pop %v4112
      %v4239 = vmul.f32 1.0, %v4238
      %v4240 = vrcp.pop %v4113
      %v4241 = vmul.f32 1.0, %v4240
      %v4242 = vrcp.pop %v4114
      %v4243 = vmul.f32 1.0, %v4242
      %v4244 = vrcp.pop %v4115
      %v4245 = vmul.f32 1.0, %v4244
      %v4246 = vrcp.pop %v4116
      %v4247 = vmul.f32 1.0, %v4246
      %v4248 = vrcp.pop %v4117
      %v4249 = vmul.f32 1.0, %v4248
      %v4250 = vrcp.pop %v4118
      %v4251 = vmul.f32 1.0, %v4250
      %v4252 = vrcp.pop %v4119
      %v4253 = vmul.f32 1.0, %v4252
      %v4254 = vrcp.pop %v4120
      %v4255 = vmul.f32 1.0, %v4254
      %v4256 = vrcp.pop %v4121
      %v4257 = vmul.f32 1.0, %v4256
      %v4258 = vrcp.pop %v4122
      %v4259 = vmul.f32 1.0, %v4258
      %v4260 = vrcp.pop %v4123
      %v4261 = vmul.f32 1.0, %v4260
      %v4262 = vrcp.pop %v4124
      %v4263 = vmul.f32 1.0, %v4262
      %v4264 = vrcp.pop %v4125
      %v4265 = vmul.f32 1.0, %v4264
      %v4266 = vrcp.pop %v4126
      %v4267 = vmul.f32 1.0, %v4266
      %v4268 = vrcp.pop %v4127
      %v4269 = vmul.f32 1.0, %v4268
      %v4270 = vrcp.pop %v4128
      %v4271 = vmul.f32 1.0, %v4270
      %v4272 = vrcp.pop %v4129
      %v4273 = vmul.f32 1.0, %v4272
      %v4274 = vrcp.pop %v4130
      %v4275 = vmul.f32 1.0, %v4274
      %v4276 = vrcp.pop %v4131
      %v4277 = vmul.f32 1.0, %v4276
      %v4278 = vrcp.pop %v4132
      %v4279 = vmul.f32 1.0, %v4278
      %v4280 = vrcp.pop %v4133
      %v4281 = vmul.f32 1.0, %v4280
      %v4282 = vrcp.pop %v4134
      %v4283 = vmul.f32 1.0, %v4282
      %v4284 = vrcp.pop %v4135
      %v4285 = vmul.f32 1.0, %v4284
      %v4286 = vrcp.pop %v4136
      %v4287 = vmul.f32 1.0, %v4286
      %v4288 = vrcp.pop %v4137
      %v4289 = vmul.f32 1.0, %v4288
      %v4290 = vrcp.pop %v4138
      %v4291 = vmul.f32 1.0, %v4290
      %v4292 = vrcp.pop %v4139
      %v4293 = vmul.f32 1.0, %v4292
      %v4294 = vrcp.pop %v4140
      %v4295 = vmul.f32 1.0, %v4294
      %v4296 = vrcp.pop %v4141
      %v4297 = vmul.f32 1.0, %v4296
      %v4298 = vrcp.pop %v4142
      %v4299 = vmul.f32 1.0, %v4298
      %v4300 = vrcp.pop %v4143
      %v4301 = vmul.f32 1.0, %v4300
      %v4302 = vrcp.pop %v4144
      %v4303 = vmul.f32 1.0, %v4302
      %v4304 = vrcp.pop %v4145
      %v4305 = vmul.f32 1.0, %v4304
      %v4306 = vrcp.pop %v4146
      %v4307 = vmul.f32 1.0, %v4306
      %v4308 = vrcp.pop %v4147
      %v4309 = vmul.f32 1.0, %v4308
      %v4310 = vrcp.pop %v4148
      %v4311 = vmul.f32 1.0, %v4310
      %v4312 = vrcp.pop %v4149
      %v4313 = vmul.f32 1.0, %v4312
      %v4314 = vrcp.pop %v4150
      %v4315 = vmul.f32 1.0, %v4314
      %v4316 = vrcp.pop %v4151
      %v4317 = vmul.f32 1.0, %v4316
      %v4318 = vrcp.pop %v4152
      %v4319 = vmul.f32 1.0, %v4318
      %v4320 = vrcp.pop %v4153
      %v4321 = vmul.f32 1.0, %v4320
      %v4322 = vrcp.pop %v4154
      %v4323 = vmul.f32 1.0, %v4322
      %v4324 = vrcp.pop %v4155
      %v4325 = vmul.f32 1.0, %v4324
      %v4326 = vrcp.pop %v4156
      %v4327 = vmul.f32 1.0, %v4326
      %v4328 = vrcp.pop %v4157
      %v4329 = vmul.f32 1.0, %v4328
      %v4330 = vrcp.pop %v4158
      %v4331 = vmul.f32 1.0, %v4330
      %v4332 = vrcp.pop %v4159
      %v4333 = vmul.f32 1.0, %v4332
      %v4334 = vrcp.pop %v4160
      %v4335 = vmul.f32 1.0, %v4334
      %v4336 = vrcp.pop %v4161
      %v4337 = vmul.f32 1.0, %v4336
      %v4338 = vrcp.pop %v4162
      %v4339 = vmul.f32 1.0, %v4338
      %v4340 = vrcp.pop %v4163
      %v4341 = vmul.f32 1.0, %v4340
      %v4342 = vrcp.pop %v4164
      %v4343 = vmul.f32 1.0, %v4342
      %v4344 = vrcp.pop %v4165
      %v4345 = vmul.f32 1.0, %v4344
      %v4346 = vrcp.pop %v4166
      %v4347 = vmul.f32 1.0, %v4346
      %v4348 = vrcp.pop %v4167
      %v4349 = vmul.f32 1.0, %v4348
      %v4350 = vrcp.pop %v4168
      %v4351 = vmul.f32 1.0, %v4350
      %v4352 = vrcp.pop %v4169
      %v4353 = vmul.f32 1.0, %v4352
      %v4354 = vrcp.pop %v4170
      %v4355 = vmul.f32 1.0, %v4354
      %v4356 = vrcp.pop %v4171
      %v4357 = vmul.f32 1.0, %v4356
      %v4358 = vrcp.pop %v4172
      %v4359 = vmul.f32 1.0, %v4358
      %v4360 = vrcp.pop %v4173
      %v4361 = vmul.f32 1.0, %v4360
      %v4362 = vrcp.pop %v4174
      %v4363 = vmul.f32 1.0, %v4362
      %v4364 = vrcp.pop %v4175
      %v4365 = vmul.f32 1.0, %v4364
      %v4366 = vrcp.pop %v4176
      %v4367 = vmul.f32 1.0, %v4366
      %v4368 = vrcp.pop %v4177
      %v4369 = vmul.f32 1.0, %v4368
      %v4370 = vrcp.pop %v4178
      %v4371 = vmul.f32 1.0, %v4370
      %v4372 = vrcp.pop %v4179
      %v4373 = vmul.f32 1.0, %v4372
      %v4374 = vrcp.pop %v4180
      %v4375 = vmul.f32 1.0, %v4374
      %v4376 = vrcp.pop %v4181
      %v4377 = vmul.f32 1.0, %v4376
      %v4378 = vrcp.pop %v4182
      %v4379 = vmul.f32 1.0, %v4378
      %v4380 = vrcp.pop %v4183
      %v4381 = vmul.f32 1.0, %v4380
      %v4382 = vrcp.pop %v4184
      %v4383 = vmul.f32 1.0, %v4382
      %v4384 = vrcp.pop %v4185
      %v4385 = vmul.f32 1.0, %v4384
      %v4386 = vrcp.pop %v4186
      %v4387 = vmul.f32 1.0, %v4386
      %v4388 = vrcp.pop %v4187
      %v4389 = vmul.f32 1.0, %v4388
      %v4390 = vrcp.pop %v4188
      %v4391 = vmul.f32 1.0, %v4390
      %v4392 = vrcp.pop %v4189
      %v4393 = vmul.f32 1.0, %v4392
      %v4394 = vrcp.pop %v4190
      %v4395 = vmul.f32 1.0, %v4394
      %v4396 = vrcp.pop %v4191
      %v4397 = vmul.f32 1.0, %v4396
      %v4398 = vrcp.pop %v4192
      %v4399 = vmul.f32 1.0, %v4398
      %v4400 = vrcp.pop %v4193
      %v4401 = vmul.f32 1.0, %v4400
      %v4402 = vrcp.pop %v4194
      %v4403 = vmul.f32 1.0, %v4402
      %v4404 = vrcp.pop %v4195
      %v4405 = vmul.f32 1.0, %v4404
      %v4406 = vrcp.pop %v4196
      %v4407 = vmul.f32 1.0, %v4406
      %v4408 = vrcp.pop %v4197
      %v4409 = vmul.f32 1.0, %v4408
      %v4410 = vrcp.pop %v4198
      %v4411 = vmul.f32 1.0, %v4410
      %v4412 = vrcp.pop %v4199
      %v4413 = vmul.f32 1.0, %v4412
      %v4414 = vrcp.pop %v4200
      %v4415 = vmul.f32 1.0, %v4414
      %v4416 = vrcp.pop %v4201
      %v4417 = vmul.f32 1.0, %v4416
      %v4418 = vrcp.pop %v4202
      %v4419 = vmul.f32 1.0, %v4418
      %v4420 = vrcp.pop %v4203
      %v4421 = vmul.f32 1.0, %v4420
      %v4422 = vrcp.pop %v4204
      %v4423 = vmul.f32 1.0, %v4422
      %v4424 = vrcp.pop %v4205
      %v4425 = vmul.f32 1.0, %v4424
      %v4426 = vrcp.pop %v4206
      %v4427 = vmul.f32 1.0, %v4426
      %v4428 = vrcp.pop %v4207
      %v4429 = vmul.f32 1.0, %v4428
      %v4430 = vrcp.pop %v4208
      %v4431 = vmul.f32 1.0, %v4430
      %v4432 = vrcp.pop %v4209
      %v4433 = vmul.f32 1.0, %v4432
      %4434 = vst [vmem:[%s282] sm:$0xff] %v4211
      %4435 = vst [vmem:[%s282 + $0x8] sm:$0xff] %v4213
      %4436 = vst [vmem:[%s282 + $0x10] sm:$0xff] %v4215
      %4437 = vst [vmem:[%s282 + $0x18] sm:$0xff] %v4217
      %4438 = vst [vmem:[%s282 + $0x20] sm:$0xff] %v4219
      %4439 = vst [vmem:[%s282 + $0x28] sm:$0xff] %v4221
      %4440 = vst [vmem:[%s282 + $0x30] sm:$0xff] %v4223
      %4441 = vst [vmem:[%s282 + $0x38] sm:$0xff] %v4225
      %4442 = vst [vmem:[%s282 + $0x40] sm:$0xff] %v4227
      %4443 = vst [vmem:[%s282 + $0x48] sm:$0xff] %v4229
      %4444 = vst [vmem:[%s282 + $0x50] sm:$0xff] %v4231
      %4445 = vst [vmem:[%s282 + $0x58] sm:$0xff] %v4233
      %4446 = vst [vmem:[%s282 + $0x60] sm:$0xff] %v4235
      %4447 = vst [vmem:[%s282 + $0x68] sm:$0xff] %v4237
      %4448 = vst [vmem:[%s282 + $0x70] sm:$0xff] %v4239
      %4449 = vst [vmem:[%s282 + $0x78] sm:$0xff] %v4241
      %4450 = vst [vmem:[%s282 + $0x80] sm:$0xff] %v4243
      %4451 = vst [vmem:[%s282 + $0x88] sm:$0xff] %v4245
      %4452 = vst [vmem:[%s282 + $0x90] sm:$0xff] %v4247
      %4453 = vst [vmem:[%s282 + $0x98] sm:$0xff] %v4249
      %4454 = vst [vmem:[%s282 + $0xa0] sm:$0xff] %v4251
      %4455 = vst [vmem:[%s282 + $0xa8] sm:$0xff] %v4253
      %4456 = vst [vmem:[%s282 + $0xb0] sm:$0xff] %v4255
      %4457 = vst [vmem:[%s282 + $0xb8] sm:$0xff] %v4257
      %4458 = vst [vmem:[%s282 + $0xc0] sm:$0xff] %v4259
      %4459 = vst [vmem:[%s282 + $0xc8] sm:$0xff] %v4261
      %4460 = vst [vmem:[%s282 + $0xd0] sm:$0xff] %v4263
      %4461 = vst [vmem:[%s282 + $0xd8] sm:$0xff] %v4265
      %4462 = vst [vmem:[%s282 + $0xe0] sm:$0xff] %v4267
      %4463 = vst [vmem:[%s282 + $0xe8] sm:$0xff] %v4269
      %4464 = vst [vmem:[%s282 + $0xf0] sm:$0xff] %v4271
      %4465 = vst [vmem:[%s282 + $0xf8] sm:$0xff] %v4273
      %4466 = vst [vmem:[%s282 + $0x100] sm:$0xff] %v4275
      %4467 = vst [vmem:[%s282 + $0x108] sm:$0xff] %v4277
      %4468 = vst [vmem:[%s282 + $0x110] sm:$0xff] %v4279
      %4469 = vst [vmem:[%s282 + $0x118] sm:$0xff] %v4281
      %4470 = vst [vmem:[%s282 + $0x120] sm:$0xff] %v4283
      %4471 = vst [vmem:[%s282 + $0x128] sm:$0xff] %v4285
      %4472 = vst [vmem:[%s282 + $0x130] sm:$0xff] %v4287
      %4473 = vst [vmem:[%s282 + $0x138] sm:$0xff] %v4289
      %4474 = vst [vmem:[%s282 + $0x140] sm:$0xff] %v4291
      %4475 = vst [vmem:[%s282 + $0x148] sm:$0xff] %v4293
      %4476 = vst [vmem:[%s282 + $0x150] sm:$0xff] %v4295
      %4477 = vst [vmem:[%s282 + $0x158] sm:$0xff] %v4297
      %4478 = vst [vmem:[%s282 + $0x160] sm:$0xff] %v4299
      %4479 = vst [vmem:[%s282 + $0x168] sm:$0xff] %v4301
      %4480 = vst [vmem:[%s282 + $0x170] sm:$0xff] %v4303
      %4481 = vst [vmem:[%s282 + $0x178] sm:$0xff] %v4305
      %4482 = vst [vmem:[%s282 + $0x180] sm:$0xff] %v4307
      %4483 = vst [vmem:[%s282 + $0x188] sm:$0xff] %v4309
      %4484 = vst [vmem:[%s282 + $0x190] sm:$0xff] %v4311
      %4485 = vst [vmem:[%s282 + $0x198] sm:$0xff] %v4313
      %4486 = vst [vmem:[%s282 + $0x1a0] sm:$0xff] %v4315
      %4487 = vst [vmem:[%s282 + $0x1a8] sm:$0xff] %v4317
      %4488 = vst [vmem:[%s282 + $0x1b0] sm:$0xff] %v4319
      %4489 = vst [vmem:[%s282 + $0x1b8] sm:$0xff] %v4321
      %4490 = vst [vmem:[%s282 + $0x1c0] sm:$0xff] %v4323
      %4491 = vst [vmem:[%s282 + $0x1c8] sm:$0xff] %v4325
      %4492 = vst [vmem:[%s282 + $0x1d0] sm:$0xff] %v4327
      %4493 = vst [vmem:[%s282 + $0x1d8] sm:$0xff] %v4329
      %4494 = vst [vmem:[%s282 + $0x1e0] sm:$0xff] %v4331
      %4495 = vst [vmem:[%s282 + $0x1e8] sm:$0xff] %v4333
      %4496 = vst [vmem:[%s282 + $0x1f0] sm:$0xff] %v4335
      %4497 = vst [vmem:[%s282 + $0x1f8] sm:$0xff] %v4337
      %4498 = vst [vmem:[%s282 + $0x200] sm:$0xff] %v4339
      %4499 = vst [vmem:[%s282 + $0x208] sm:$0xff] %v4341
      %4500 = vst [vmem:[%s282 + $0x210] sm:$0xff] %v4343
      %4501 = vst [vmem:[%s282 + $0x218] sm:$0xff] %v4345
      %4502 = vst [vmem:[%s282 + $0x220] sm:$0xff] %v4347
      %4503 = vst [vmem:[%s282 + $0x228] sm:$0xff] %v4349
      %4504 = vst [vmem:[%s282 + $0x230] sm:$0xff] %v4351
      %4505 = vst [vmem:[%s282 + $0x238] sm:$0xff] %v4353
      %4506 = vst [vmem:[%s282 + $0x240] sm:$0xff] %v4355
      %4507 = vst [vmem:[%s282 + $0x248] sm:$0xff] %v4357
      %4508 = vst [vmem:[%s282 + $0x250] sm:$0xff] %v4359
      %4509 = vst [vmem:[%s282 + $0x258] sm:$0xff] %v4361
      %4510 = vst [vmem:[%s282 + $0x260] sm:$0xff] %v4363
      %4511 = vst [vmem:[%s282 + $0x268] sm:$0xff] %v4365
      %4512 = vst [vmem:[%s282 + $0x270] sm:$0xff] %v4367
      %4513 = vst [vmem:[%s282 + $0x278] sm:$0xff] %v4369
      %4514 = vst [vmem:[%s282 + $0x280] sm:$0xff] %v4371
      %4515 = vst [vmem:[%s282 + $0x288] sm:$0xff] %v4373
      %4516 = vst [vmem:[%s282 + $0x290] sm:$0xff] %v4375
      %4517 = vst [vmem:[%s282 + $0x298] sm:$0xff] %v4377
      %4518 = vst [vmem:[%s282 + $0x2a0] sm:$0xff] %v4379
      %4519 = vst [vmem:[%s282 + $0x2a8] sm:$0xff] %v4381
      %4520 = vst [vmem:[%s282 + $0x2b0] sm:$0xff] %v4383
      %4521 = vst [vmem:[%s282 + $0x2b8] sm:$0xff] %v4385
      %4522 = vst [vmem:[%s282 + $0x2c0] sm:$0xff] %v4387
      %4523 = vst [vmem:[%s282 + $0x2c8] sm:$0xff] %v4389
      %4524 = vst [vmem:[%s282 + $0x2d0] sm:$0xff] %v4391
      %4525 = vst [vmem:[%s282 + $0x2d8] sm:$0xff] %v4393
      %4526 = vst [vmem:[%s282 + $0x2e0] sm:$0xff] %v4395
      %4527 = vst [vmem:[%s282 + $0x2e8] sm:$0xff] %v4397
      %4528 = vst [vmem:[%s282 + $0x2f0] sm:$0xff] %v4399
      %4529 = vst [vmem:[%s282 + $0x2f8] sm:$0xff] %v4401
      %4530 = vst [vmem:[%s282 + $0x300] sm:$0xff] %v4403
      %4531 = vst [vmem:[%s282 + $0x308] sm:$0xff] %v4405
      %4532 = vst [vmem:[%s282 + $0x310] sm:$0xff] %v4407
      %4533 = vst [vmem:[%s282 + $0x318] sm:$0xff] %v4409
      %4534 = vst [vmem:[%s282 + $0x320] sm:$0xff] %v4411
      %4535 = vst [vmem:[%s282 + $0x328] sm:$0xff] %v4413
      %4536 = vst [vmem:[%s282 + $0x330] sm:$0xff] %v4415
      %4537 = vst [vmem:[%s282 + $0x338] sm:$0xff] %v4417
      %4538 = vst [vmem:[%s282 + $0x340] sm:$0xff] %v4419
      %4539 = vst [vmem:[%s282 + $0x348] sm:$0xff] %v4421
      %4540 = vst [vmem:[%s282 + $0x350] sm:$0xff] %v4423
      %4541 = vst [vmem:[%s282 + $0x358] sm:$0xff] %v4425
      %4542 = vst [vmem:[%s282 + $0x360] sm:$0xff] %v4427
      %4543 = vst [vmem:[%s282 + $0x368] sm:$0xff] %v4429
      %4544 = vst [vmem:[%s282 + $0x370] sm:$0xff] %v4431
      %4545 = vst [vmem:[%s282 + $0x378] sm:$0xff] %v4433
      %s4546 = smul.u32 16, %s18
      %p4547 = scmp.lt.s32.totalorder %s4546, 31
      %s4548 = scalar_select %p4547, %s4546, 31
      %s4549 = smul.addr %s4548, 7
      %s4550 = smul.addr %s4549, 8
      %s4551 = scalar_lea.vmem %s7, %s4550
      // Predicated region
      $region49: #{gan_g_forward.1} parent=47 // pred_check
        %p4552 = pneg %p188
      $region50: #{gan_g_forward.1} parent=47 // pred_check_branch
        %4554 = sbr.rel (%p4552) target = $region52
      $region51: #{gan_g_forward.1} parent=47 // pred_region
        %s4555 = smul.u32 16, %s18
      $region52: #{gan_g_forward.1} parent=47 // pred_fallthru
        _
    $region48: #{gan_g_forward.1} parent=5 // pred_fallthru
      _
    %p4556 = scmp.le.s32.totalorder 2, %s13
    // Predicated region
    $region53: #{gan_g_forward.1} parent=5 // pred_check
      %p4557 = pneg %p4556
    $region54: #{gan_g_forward.1} parent=5 // pred_check_branch
      %4559 = sbr.rel (%p4557) target = $region56
    $region55: #{gan_g_forward.1} parent=5 // pred_region
      %s4560 = ssub.s32 %s13, 2
      // Predicated region
      $region57: #{gan_g_forward.1} parent=55 // pred_check
        %p4561 = pneg %p194
      $region58: #{gan_g_forward.1} parent=55 // pred_check_branch
        %4563 = sbr.rel (%p4561) target = $region60
      $region59: #{gan_g_forward.1} parent=55 // pred_region
        %s4564 = smul.u32 16, %s19
        %p4565 = scmp.lt.s32.totalorder %s4564, 31
        %s4566 = scalar_select %p4565, %s4564, 31
        %s4567 = smul.addr %s4566, 7
        %s4568 = smul.addr %s4567, 8
        %s4569 = scalar_lea.vmem %s7, %s4568
      $region60: #{gan_g_forward.1} parent=55 // pred_fallthru
        _
    $region56: #{gan_g_forward.1} parent=5 // pred_fallthru
      _
  $region6: #{gan_g_forward.1} parent=0 // loop_footer
    %s17 = sadd.s32 1, %s13
  $region7: #{gan_g_forward.1} parent=0 // loop_footer_branch
    %12 = sbr.rel target = $region3
  $region8: #{gan_g_forward.1} parent=0 // loop_exit
    _

</llo_original>
